<compile_context>
chip_gen: v5e
topology: v5e:2x2
jax: 0.10.0
libtpu: 0.0.40
codegen_flags: <defaults>
</compile_context>

<pallas_src>
import functools

import jax
import jax.numpy as jnp
from jax.experimental import pallas as pl
from jax.experimental.pallas import tpu as pltpu

ATOM_LIST = ['H', 'B', 'C', 'N', 'O', 'F', 'P', 'S', 'Cl', 'Br', 'I']

_VMEM = pl.BlockSpec(memory_space=pltpu.MemorySpace.VMEM)
_VMEM_LIMIT = 64 * 1024 * 1024   # explicit scoped-VMEM ceiling; fits v5e/v6e/v7x


def _cparams(*sem):
    return pltpu.CompilerParams(dimension_semantics=sem,
                                vmem_limit_bytes=_VMEM_LIMIT)


def _tile(dim, target, floor):
    """Largest tile <= target that divides dim (power-of-two descent); else full dim."""
    if dim <= target:
        return dim
    t = target
    while dim % t:
        t //= 2
        if t < floor:
            return dim
    return t


def _pad_cols(x, multiple=128):
    n = x.shape[-1]
    pad = (-n) % multiple
    if pad == 0:
        return x
    return jnp.pad(x, [(0, 0)] * (x.ndim - 1) + [(0, pad)])


# ----------------------------- tiled matmul kernels -----------------------------

def _matmul_kernel(x_ref, w_ref, o_ref, acc_ref):
    @pl.when(pl.program_id(2) == 0)
    def _():
        acc_ref[...] = jnp.zeros_like(acc_ref)

    acc_ref[...] += jnp.dot(x_ref[...], w_ref[...],
                            preferred_element_type=jnp.float32)

    @pl.when(pl.program_id(2) == pl.num_programs(2) - 1)
    def _():
        o_ref[...] = acc_ref[...].astype(o_ref.dtype)


def _matmul_add_kernel(x_ref, w_ref, a_ref, o_ref, acc_ref):
    # `a` is either a (1, tn) bias or a (tm, tn) residual; added at finalize.
    @pl.when(pl.program_id(2) == 0)
    def _():
        acc_ref[...] = jnp.zeros_like(acc_ref)

    acc_ref[...] += jnp.dot(x_ref[...], w_ref[...],
                            preferred_element_type=jnp.float32)

    @pl.when(pl.program_id(2) == pl.num_programs(2) - 1)
    def _():
        o_ref[...] = (acc_ref[...] + a_ref[...].astype(jnp.float32)).astype(o_ref.dtype)


def matmul(x, w, add=None, add_is_bias=False, out_dtype=jnp.bfloat16,
           tm=512, tn=1024, tk=512):
    """x:(M,K) @ w:(K,N) [+ bias(1,N) or residual(M,N)], tiled with f32 accumulator."""
    M, K = x.shape
    N = w.shape[1]
    tm = _tile(M, tm, 8)
    tn = _tile(N, tn, 128)
    tk = _tile(K, tk, 128)
    grid = (M // tm, N // tn, K // tk)

    in_specs = [pl.BlockSpec((tm, tk), lambda i, j, k: (i, k)),
                pl.BlockSpec((tk, tn), lambda i, j, k: (k, j))]
    args = [x, w]
    if add is None:
        kernel = _matmul_kernel
    else:
        kernel = _matmul_add_kernel
        if add_is_bias:
            in_specs.append(pl.BlockSpec((1, tn), lambda i, j, k: (0, j)))
        else:
            in_specs.append(pl.BlockSpec((tm, tn), lambda i, j, k: (i, j)))
        args.append(add)

    return pl.pallas_call(
        kernel,
        out_shape=jax.ShapeDtypeStruct((M, N), out_dtype),
        grid_spec=pltpu.PrefetchScalarGridSpec(
            num_scalar_prefetch=0,
            grid=grid,
            in_specs=in_specs,
            out_specs=pl.BlockSpec((tm, tn), lambda i, j, k: (i, j)),
            scratch_shapes=[pltpu.VMEM((tm, tn), jnp.float32)]),
        compiler_params=_cparams("parallel", "parallel", "arbitrary"),
    )(*args)


# --------------------- fused RMSNorm + projection kernels ---------------------
# The normalized row tile is cached in VMEM scratch and only recomputed when the row
# tile changes (column axis is "arbitrary"), so the kernel stays MXU-bound.

def _rms_matmul_kernel(x_ref, g_ref, w_ref, o_ref, xn_ref):
    @pl.when(pl.program_id(1) == 0)
    def _():
        x = x_ref[...].astype(jnp.float32)
        ms = jnp.mean(x * x, axis=-1, keepdims=True)
        xn_ref[...] = (x * jax.lax.rsqrt(ms + 1e-6)
                       * g_ref[...].astype(jnp.float32)).astype(xn_ref.dtype)

    o_ref[...] = jnp.dot(xn_ref[...], w_ref[...],
                         preferred_element_type=jnp.float32).astype(o_ref.dtype)


def rms_matmul(x, g, w, out_dtype=jnp.bfloat16, tm=512, tn=512):
    """rmsnorm(x) @ w; K (=D) untiled so the norm sees the full row."""
    M, D = x.shape
    N = w.shape[1]
    tm = _tile(M, tm, 8)
    tn = _tile(N, tn, 128)
    grid = (M // tm, N // tn)
    return pl.pallas_call(
        _rms_matmul_kernel,
        out_shape=jax.ShapeDtypeStruct((M, N), out_dtype),
        grid_spec=pltpu.PrefetchScalarGridSpec(
            num_scalar_prefetch=0,
            grid=grid,
            in_specs=[pl.BlockSpec((tm, D), lambda i, j: (i, 0)),
                      pl.BlockSpec((1, D), lambda i, j: (0, 0)),
                      pl.BlockSpec((D, tn), lambda i, j: (0, j))],
            out_specs=pl.BlockSpec((tm, tn), lambda i, j: (i, j)),
            scratch_shapes=[pltpu.VMEM((tm, D), jnp.bfloat16)]),
        compiler_params=_cparams("parallel", "arbitrary"),
    )(x, g, w)


def _rms_swiglu_kernel(x_ref, g_ref, w1_ref, w3_ref, h_ref, xn_ref):
    @pl.when(pl.program_id(1) == 0)
    def _():
        x = x_ref[...].astype(jnp.float32)
        ms = jnp.mean(x * x, axis=-1, keepdims=True)
        xn_ref[...] = (x * jax.lax.rsqrt(ms + 1e-6)
                       * g_ref[...].astype(jnp.float32)).astype(xn_ref.dtype)

    xn = xn_ref[...]
    a = jnp.dot(xn, w1_ref[...], preferred_element_type=jnp.float32)
    b = jnp.dot(xn, w3_ref[...], preferred_element_type=jnp.float32)
    h_ref[...] = (a * jax.nn.sigmoid(a) * b).astype(h_ref.dtype)   # silu(x@w1)*(x@w3)


def rms_swiglu(x, g, w1, w3, out_dtype=jnp.bfloat16, tm=512, tf=512):
    M, D = x.shape
    F = w1.shape[1]
    tm = _tile(M, tm, 8)
    tf = _tile(F, tf, 128)
    grid = (M // tm, F // tf)
    return pl.pallas_call(
        _rms_swiglu_kernel,
        out_shape=jax.ShapeDtypeStruct((M, F), out_dtype),
        grid_spec=pltpu.PrefetchScalarGridSpec(
            num_scalar_prefetch=0,
            grid=grid,
            in_specs=[pl.BlockSpec((tm, D), lambda i, j: (i, 0)),
                      pl.BlockSpec((1, D), lambda i, j: (0, 0)),
                      pl.BlockSpec((D, tf), lambda i, j: (0, j)),
                      pl.BlockSpec((D, tf), lambda i, j: (0, j))],
            out_specs=pl.BlockSpec((tm, tf), lambda i, j: (i, j)),
            scratch_shapes=[pltpu.VMEM((tm, D), jnp.bfloat16)]),
        compiler_params=_cparams("parallel", "arbitrary"),
    )(x, g, w1, w3)


# --------------------------- flash attention kernel ---------------------------

def _rope_rotate(x, cos, sin):
    """Rotate-half RoPE (GPT-NeoX convention). x/cos/sin: (T, Dh) f32."""
    half = x.shape[-1] // 2
    xr = jnp.concatenate([-x[:, half:], x[:, :half]], axis=-1)
    return x * cos + xr * sin


def _flash_kernel(q_ref, k_ref, v_ref, *rest, causal, rope):
    if rope:
        cosq_ref, sinq_ref, cosk_ref, sink_ref = rest[:4]
        o_ref, m_sc, l_sc, acc_sc, q_sc = rest[4:]
    else:
        o_ref, m_sc, l_sc, acc_sc, q_sc = rest

    qi = pl.program_id(1)
    ki = pl.program_id(2)
    tq = q_ref.shape[1]
    tk = k_ref.shape[1]
    dh = q_ref.shape[2]
    scale = 1.0 / (dh ** 0.5)

    @pl.when(ki == 0)
    def _():
        m_sc[...] = jnp.full_like(m_sc, -jnp.inf)
        l_sc[...] = jnp.zeros_like(l_sc)
        acc_sc[...] = jnp.zeros_like(acc_sc)
        q = q_ref[0].astype(jnp.float32)
        if rope:
            q = _rope_rotate(q, cosq_ref[...], sinq_ref[...])
        q_sc[...] = (q * scale).astype(q_sc.dtype)      # scale folded into q once

    def _body():
        k = k_ref[0]
        if rope:
            k = _rope_rotate(k.astype(jnp.float32),
                             cosk_ref[...], sink_ref[...]).astype(k_ref.dtype)
        v = v_ref[0]
        s = jax.lax.dot_general(q_sc[...], k, (((1,), (1,)), ((), ())),
                                preferred_element_type=jnp.float32)   # (tq, tk) f32
        if causal:
            rows = qi * tq + jax.lax.broadcasted_iota(jnp.int32, (tq, tk), 0)
            cols = ki * tk + jax.lax.broadcasted_iota(jnp.int32, (tq, tk), 1)
            s = jnp.where(cols <= rows, s, -1e9)

        m_prev = m_sc[...]
        m_new = jnp.maximum(m_prev, jnp.max(s, axis=-1, keepdims=True))
        alpha = jnp.exp(m_prev - m_new)
        p = jnp.exp(s - m_new)
        l_sc[...] = alpha * l_sc[...] + jnp.sum(p, axis=-1, keepdims=True)
        acc_sc[...] = alpha * acc_sc[...] + jnp.dot(p.astype(v.dtype), v,
                                                    preferred_element_type=jnp.float32)
        m_sc[...] = m_new

    if causal:
        # Skip kv tiles that lie entirely above the diagonal (no unmasked element).
        @pl.when(ki * tk <= qi * tq + tq - 1)
        def _():
            _body()
    else:
        _body()

    @pl.when(ki == pl.num_programs(2) - 1)
    def _():
        inv = pl.reciprocal(l_sc[...], approx=True)
        o_ref[0] = (acc_sc[...] * inv).astype(o_ref.dtype)


def flash_attention(q, k, v, *, causal, cos=None, sin=None, tq=256, tk=256):
    """q:(BH,Sq,Dh), k/v:(BH,Sk,Dh) -> (BH,Sq,Dh). Online softmax, no mask DMA.
    If cos/sin are given ((>=S, Dh) tables), RoPE is applied to q and k in-kernel."""
    BH, Sq, Dh = q.shape
    Sk = k.shape[1]
    tq = _tile(Sq, tq, 8)
    tk = _tile(Sk, tk, 8)
    grid = (BH, Sq // tq, Sk // tk)
    rope = cos is not None

    in_specs = [pl.BlockSpec((1, tq, Dh), lambda b, i, j: (b, i, 0)),
                pl.BlockSpec((1, tk, Dh), lambda b, i, j: (b, j, 0)),
                pl.BlockSpec((1, tk, Dh), lambda b, i, j: (b, j, 0))]
    args = [q, k, v]
    if rope:
        in_specs += [pl.BlockSpec((tq, Dh), lambda b, i, j: (i, 0)),
                     pl.BlockSpec((tq, Dh), lambda b, i, j: (i, 0)),
                     pl.BlockSpec((tk, Dh), lambda b, i, j: (j, 0)),
                     pl.BlockSpec((tk, Dh), lambda b, i, j: (j, 0))]
        args += [cos[:Sq], sin[:Sq], cos[:Sk], sin[:Sk]]

    kernel = functools.partial(_flash_kernel, causal=causal, rope=rope)
    return pl.pallas_call(
        kernel,
        out_shape=jax.ShapeDtypeStruct((BH, Sq, Dh), q.dtype),
        grid_spec=pltpu.PrefetchScalarGridSpec(
            num_scalar_prefetch=0,
            grid=grid,
            in_specs=in_specs,
            out_specs=pl.BlockSpec((1, tq, Dh), lambda b, i, j: (b, i, 0)),
            scratch_shapes=[pltpu.VMEM((tq, 1), jnp.float32),
                            pltpu.VMEM((tq, 1), jnp.float32),
                            pltpu.VMEM((tq, Dh), jnp.float32),
                            pltpu.VMEM((tq, Dh), q.dtype)]),
        compiler_params=_cparams("parallel", "parallel", "arbitrary"),
    )(*args)


# ------------------------------ pooled aux heads ------------------------------

def _head_kernel(p_ref, w1_ref, b1_ref, w2_ref, b2_ref, o_ref):
    h = jnp.dot(p_ref[...], w1_ref[...],
                preferred_element_type=jnp.float32) + b1_ref[...]
    h = jnp.maximum(h, 0.0).astype(jnp.bfloat16)                 # ReLU
    o_ref[...] = (jnp.dot(h, w2_ref[...],
                          preferred_element_type=jnp.float32) + b2_ref[...]
                  ).astype(o_ref.dtype)


def pooled_head(pooled, w1, b1, w2, b2):
    S = pooled.shape[0]
    N = w2.shape[1]
    return pl.pallas_call(
        _head_kernel,
        out_shape=jax.ShapeDtypeStruct((S, N), jnp.float32),
        in_specs=[_VMEM] * 5,
        out_specs=_VMEM,
    )(pooled, w1, b1, w2, b2)


# ------------------------------- glue (JAX) -------------------------------

def _split_heads(t, B, S, H, Dh):
    # (B*S, H*Dh) -> (B*H, S, Dh)
    return t.reshape(B, S, H, Dh).transpose(0, 2, 1, 3).reshape(B * H, S, Dh)


def _merge_heads(t, B, S, H, Dh):
    # (B*H, S, Dh) -> (B*S, H*Dh)
    return t.reshape(B, H, S, Dh).transpose(0, 2, 1, 3).reshape(B * S, H * Dh)


def self_attention_block(x, p, n_heads, cos, sin, causal, prefix):
    B, S, D = x.shape
    Dh = D // n_heads
    xf = x.reshape(B * S, D)
    qkv = rms_matmul(xf, p[prefix + 'norm'], p[prefix + 'wqkv'])      # fused norm+QKV
    q, k, v = jnp.split(qkv, 3, axis=-1)
    q = _split_heads(q, B, S, n_heads, Dh)
    k = _split_heads(k, B, S, n_heads, Dh)
    v = _split_heads(v, B, S, n_heads, Dh)
    o = flash_attention(q, k, v, causal=causal, cos=cos, sin=sin)     # RoPE in-kernel
    o = _merge_heads(o, B, S, n_heads, Dh)
    return matmul(o, p[prefix + 'wo'], add=xf).reshape(B, S, D)       # resid folded


def cross_attention_block(y, memory, p, n_heads):
    B, S, D = y.shape
    Sk = memory.shape[1]
    Dh = D // n_heads
    yf = y.reshape(B * S, D)
    mf = memory.reshape(B * Sk, D)
    q = rms_matmul(yf, p['ca_norm'], p['ca_wq'])
    kv = matmul(mf, p['ca_wkv'])
    k, v = jnp.split(kv, 2, axis=-1)
    q = _split_heads(q, B, S, n_heads, Dh)
    k = _split_heads(k, B, Sk, n_heads, Dh)
    v = _split_heads(v, B, Sk, n_heads, Dh)
    o = flash_attention(q, k, v, causal=False)                        # no RoPE
    o = _merge_heads(o, B, S, n_heads, Dh)
    return matmul(o, p['ca_wo'], add=yf).reshape(B, S, D)


def ffn_block(x, p):
    B, S, D = x.shape
    xf = x.reshape(B * S, D)
    h = rms_swiglu(xf, p['ffn_norm'], p['w1'], p['w3'])               # fused norm+up+gate
    return matmul(h, p['w2'], add=xf).reshape(B, S, D)                # resid folded


def bartmt_forward(params, src, tgt, *, n_heads, vocab):
    cos, sin = params['rope_cos'], params['rope_sin']

    # ---- encode: emb(src) -> (B, S_src, D) batch-first ----
    x = jnp.take(params['emb'], src, axis=0)
    for lp in params['enc_layers']:
        x = self_attention_block(x, lp, n_heads, cos, sin, causal=False, prefix='attn_')
        x = ffn_block(x, lp)
    memory = x

    # ---- auxiliary heads on memory.mean over the batch axis (matches memory.mean(dim=1)
    # of the seq-first reference layout) ----
    # TODO(synk): verify whether the reference intended a mean over sequence instead.
    pooled = jnp.mean(memory.astype(jnp.float32), axis=0).astype(jnp.bfloat16)
    atom_counts_pred = pooled_head(pooled, params['atom_w1'], params['atom_b1'],
                                   params['atom_w2'], params['atom_b2'])
    weight_pred = pooled_head(pooled, params['wt_w1'], params['wt_b1'],
                              params['wt_w2'], params['wt_b2'])

    # ---- decode: emb(tgt) -> (B, S_tgt, D) ----
    B, St = tgt.shape
    D = params['emb'].shape[1]
    y = jnp.take(params['emb'], tgt, axis=0)
    for lp in params['dec_layers']:
        y = self_attention_block(y, lp, n_heads, cos, sin, causal=True, prefix='sa_')
        y = cross_attention_block(y, memory, lp, n_heads)
        y = ffn_block(y, lp)

    # ---- token_fc (vocab padded to a 128 multiple at init; slice back) ----
    # TODO(synk): for a fused training loss, emit bf16 logits here instead of f32.
    logits = matmul(y.reshape(B * St, D), params['tok_w'],
                    add=params['tok_b'], add_is_bias=True, out_dtype=jnp.float32)
    logits = logits.reshape(B, St, -1)[:, :, :vocab]                  # (B, S_tgt, vocab)
    return logits, atom_counts_pred, weight_pred


# ------------------------------ parameters ------------------------------

def init_params(key, vocab, d_model, n_heads, n_layers, d_ff, max_seq_len,
                invariant_dim=1, theta=10000.0):
    keys = iter(jax.random.split(key, 4096))

    def w(shape, scale=0.02):
        return (scale * jax.random.normal(next(keys), shape, jnp.float32)
                ).astype(jnp.bfloat16)

    def zeros(shape):
        return jnp.zeros(shape, jnp.float32)

    def ones(shape):
        return jnp.ones(shape, jnp.float32)

    head_dim = d_model // n_heads
    inv_freq = 1.0 / (theta ** (jnp.arange(0, head_dim, 2, dtype=jnp.float32) / head_dim))
    t = jnp.arange(max_seq_len * 2, dtype=jnp.float32)
    freqs = jnp.outer(t, inv_freq)                                   # (2*max, Dh/2)
    # rotate-half convention: repeat the half tables to full head dim.
    cos_full = jnp.concatenate([jnp.cos(freqs), jnp.cos(freqs)], axis=-1)
    sin_full = jnp.concatenate([jnp.sin(freqs), jnp.sin(freqs)], axis=-1)

    enc_layers = []
    for _ in range(n_layers):
        enc_layers.append({
            'attn_norm': ones((1, d_model)),
            'attn_wqkv': w((d_model, 3 * d_model)),
            'attn_wo': w((d_model, d_model)),
            'ffn_norm': ones((1, d_model)),
            'w1': w((d_model, d_ff)), 'w3': w((d_model, d_ff)),
            'w2': w((d_ff, d_model)),
        })

    dec_layers = []
    for _ in range(n_layers):
        dec_layers.append({
            'sa_norm': ones((1, d_model)),
            'sa_wqkv': w((d_model, 3 * d_model)),
            'sa_wo': w((d_model, d_model)),
            'ca_norm': ones((1, d_model)),
            'ca_wq': w((d_model, d_model)),
            'ca_wkv': w((d_model, 2 * d_model)),
            'ca_wo': w((d_model, d_model)),
            'ffn_norm': ones((1, d_model)),
            'w1': w((d_model, d_ff)), 'w3': w((d_model, d_ff)),
            'w2': w((d_ff, d_model)),
        })

    # pad the token_fc weight / bias columns to a 128 multiple (lane-dense stores).
    tok_w = _pad_cols(w((d_model, vocab)), 128)
    tok_b = _pad_cols(zeros((1, vocab)), 128)

    return {
        'emb': w((vocab, d_model)),
        'enc_layers': enc_layers,
        'dec_layers': dec_layers,
        'tok_w': tok_w, 'tok_b': tok_b,
        'atom_w1': w((d_model, d_model)), 'atom_b1': zeros((1, d_model)),
        'atom_w2': w((d_model, len(ATOM_LIST))), 'atom_b2': zeros((1, len(ATOM_LIST))),
        'wt_w1': w((d_model, d_model)), 'wt_b1': zeros((1, d_model)),
        'wt_w2': w((d_model, invariant_dim)), 'wt_b2': zeros((1, invariant_dim)),
        'rope_cos': cos_full, 'rope_sin': sin_full,
    }


# --------------------------------- main ---------------------------------

if __name__ == "__main__":
    VOCAB, D_MODEL, N_HEADS, N_LAYERS, D_FF, MAX_SEQ = 64, 32, 4, 2, 64, 16
    B, S_SRC, S_TGT = 2, 8, 8

    key = jax.random.PRNGKey(0)
    pkey, skey, tkey = jax.random.split(key, 3)
    params = init_params(pkey, VOCAB, D_MODEL, N_HEADS, N_LAYERS, D_FF, MAX_SEQ)

    src = jax.random.randint(skey, (B, S_SRC), 0, VOCAB)
    tgt = jax.random.randint(tkey, (B, S_TGT), 0, VOCAB)

    fwd = jax.jit(functools.partial(bartmt_forward, n_heads=N_HEADS, vocab=VOCAB))
    logits, atom_pred, weight_pred = fwd(params, src, tgt)
    jax.block_until_ready((logits, atom_pred, weight_pred))

    assert logits.shape == (B, S_TGT, VOCAB)
    assert atom_pred.shape == (S_SRC, len(ATOM_LIST))
    assert weight_pred.shape == (S_SRC, 1)
    print("KERNEL_OK")
</pallas_src>

<mosaic_0001>
module attributes {stable_mosaic.version = 11 : i64} {
  func.func @_rms_matmul_kernel(%arg0: i32, %arg1: i32, %arg2: memref<16x32xbf16, #tpu.memory_space<vmem>>, %arg3: memref<1x32xf32, #tpu.memory_space<vmem>>, %arg4: memref<32x96xbf16, #tpu.memory_space<vmem>>, %arg5: memref<16x96xbf16, #tpu.memory_space<vmem>>, %arg6: memref<16x32xbf16, #tpu.memory_space<vmem>>) attributes {dimension_semantics = [#tpu.dimension_semantics<parallel>, #tpu.dimension_semantics<arbitrary>], iteration_bounds = array<i64: 1, 1>, scalar_prefetch = 0 : i64, scratch_operands = 1 : i64, tpu.core_type = #tpu.core_type<tc>, window_params = [{transform_indices = @transform_0, window_bounds = array<i64: 16, 32>}, {pipeline_mode = #tpu.pipeline_mode<synchronous>, transform_indices = @transform_1, window_bounds = array<i64: 1, 32>}, {transform_indices = @transform_2, window_bounds = array<i64: 32, 96>}, {transform_indices = @transform_3, window_bounds = array<i64: 16, 96>}]} {
    %c0_i32 = arith.constant 0 : i32
    %0 = arith.cmpi eq, %arg1, %c0_i32 : i32
    %1 = arith.extui %0 : i1 to i32
    %c0_i32_0 = arith.constant 0 : i32
    %2 = arith.cmpi ne, %1, %c0_i32_0 : i32
    scf.if %2 {
      %c0_6 = arith.constant 0 : index
      %c0_7 = arith.constant 0 : index
      %8 = vector.load %arg2[%c0_6, %c0_7] : memref<16x32xbf16, #tpu.memory_space<vmem>>, vector<16x32xbf16>
      %9 = arith.extf %8 : vector<16x32xbf16> to vector<16x32xf32>
      %10 = arith.mulf %9, %9 : vector<16x32xf32>
      %cst_8 = arith.constant dense<0.000000e+00> : vector<16xf32>
      %11 = vector.multi_reduction <add>, %10, %cst_8 [1] : vector<16x32xf32> to vector<16xf32>
      %12 = vector.shape_cast %11 : vector<16xf32> to vector<16x1xf32>
      %cst_9 = arith.constant 3.200000e+01 : f32
      %13 = vector.broadcast %cst_9 : f32 to vector<16x1xf32>
      %14 = arith.divf %12, %13 : vector<16x1xf32>
      %cst_10 = arith.constant 9.99999997E-7 : f32
      %15 = vector.broadcast %cst_10 : f32 to vector<16x1xf32>
      %16 = arith.addf %14, %15 : vector<16x1xf32>
      %17 = math.rsqrt %16 : vector<16x1xf32>
      %18 = vector.broadcast %17 : vector<16x1xf32> to vector<16x32xf32>
      %19 = arith.mulf %9, %18 : vector<16x32xf32>
      %c0_11 = arith.constant 0 : index
      %c0_12 = arith.constant 0 : index
      %20 = vector.load %arg3[%c0_11, %c0_12] : memref<1x32xf32, #tpu.memory_space<vmem>>, vector<1x32xf32>
      %21 = vector.broadcast %20 : vector<1x32xf32> to vector<16x32xf32>
      %22 = arith.mulf %19, %21 : vector<16x32xf32>
      %23 = arith.truncf %22 : vector<16x32xf32> to vector<16x32xbf16>
      %c0_13 = arith.constant 0 : index
      %c0_14 = arith.constant 0 : index
      %24 = vector.load %arg6[%c0_13, %c0_14] : memref<16x32xbf16, #tpu.memory_space<vmem>>, vector<16x32xbf16>
      tpu.vector_store %arg6[%c0_13, %c0_14], %23 {strides = array<i32>} : memref<16x32xbf16, #tpu.memory_space<vmem>>, vector<16x32xbf16>,
    } else {
    }
    %c0 = arith.constant 0 : index
    %c0_1 = arith.constant 0 : index
    %3 = vector.load %arg6[%c0, %c0_1] : memref<16x32xbf16, #tpu.memory_space<vmem>>, vector<16x32xbf16>
    %c0_2 = arith.constant 0 : index
    %c0_3 = arith.constant 0 : index
    %4 = vector.load %arg4[%c0_2, %c0_3] : memref<32x96xbf16, #tpu.memory_space<vmem>>, vector<32x96xbf16>
    %cst = arith.constant dense<0.000000e+00> : vector<16x96xf32>
    %5 = tpu.matmul %3, %4, %cst {dimension_numbers = #tpu.dot_dimension_numbers<[1], [0], [0], [1], [0, 0, 1, 1], [], []>} : vector<16x32xbf16>, vector<32x96xbf16>, vector<16x96xf32> -> vector<16x96xf32>
    %6 = arith.truncf %5 : vector<16x96xf32> to vector<16x96xbf16>
    %c0_4 = arith.constant 0 : index
    %c0_5 = arith.constant 0 : index
    %7 = vector.load %arg5[%c0_4, %c0_5] : memref<16x96xbf16, #tpu.memory_space<vmem>>, vector<16x96xbf16>
    tpu.vector_store %arg5[%c0_4, %c0_5], %6 {strides = array<i32>} : memref<16x96xbf16, #tpu.memory_space<vmem>>, vector<16x96xbf16>,
    return
  }
  func.func @transform_0(%arg0: i32, %arg1: i32) -> (i32, i32) {
    %c0_i32 = arith.constant 0 : i32
    %c0_i32_0 = arith.constant 0 : i32
    return %arg0, %c0_i32 : i32, i32
  }
  func.func @transform_1(%arg0: i32, %arg1: i32) -> (i32, i32) {
    %c0_i32 = arith.constant 0 : i32
    %c0_i32_0 = arith.constant 0 : i32
    %c0_i32_1 = arith.constant 0 : i32
    return %c0_i32, %c0_i32_0 : i32, i32
  }
  func.func @transform_2(%arg0: i32, %arg1: i32) -> (i32, i32) {
    %c0_i32 = arith.constant 0 : i32
    %c0_i32_0 = arith.constant 0 : i32
    return %c0_i32, %arg1 : i32, i32
  }
  func.func @transform_3(%arg0: i32, %arg1: i32) -> (i32, i32) {
    %c0_i32 = arith.constant 0 : i32
    return %arg0, %arg1 : i32, i32
  }
}

module attributes {stable_mosaic.version = 11 : i64} {
  func.func @_flash_kernel(%arg0: i32, %arg1: i32, %arg2: i32, %arg3: memref<1x8x8xbf16, #tpu.memory_space<vmem>>, %arg4: memref<1x8x8xbf16, #tpu.memory_space<vmem>>, %arg5: memref<1x8x8xbf16, #tpu.memory_space<vmem>>, %arg6: memref<8x8xf32, #tpu.memory_space<vmem>>, %arg7: memref<8x8xf32, #tpu.memory_space<vmem>>, %arg8: memref<8x8xf32, #tpu.memory_space<vmem>>, %arg9: memref<8x8xf32, #tpu.memory_space<vmem>>, %arg10: memref<1x8x8xbf16, #tpu.memory_space<vmem>>, %arg11: memref<8x1xf32, #tpu.memory_space<vmem>>, %arg12: memref<8x1xf32, #tpu.memory_space<vmem>>, %arg13: memref<8x8xf32, #tpu.memory_space<vmem>>, %arg14: memref<8x8xbf16, #tpu.memory_space<vmem>>) attributes {dimension_semantics = [#tpu.dimension_semantics<parallel>, #tpu.dimension_semantics<parallel>, #tpu.dimension_semantics<arbitrary>], iteration_bounds = array<i64: 8, 1, 1>, scalar_prefetch = 0 : i64, scratch_operands = 4 : i64, tpu.core_type = #tpu.core_type<tc>, window_params = [{transform_indices = @transform_0, window_bounds = array<i64: 1, 8, 8>}, {transform_indices = @transform_1, window_bounds = array<i64: 1, 8, 8>}, {transform_indices = @transform_2, window_bounds = array<i64: 1, 8, 8>}, {transform_indices = @transform_3, window_bounds = array<i64: 8, 8>}, {transform_indices = @transform_4, window_bounds = array<i64: 8, 8>}, {transform_indices = @transform_5, window_bounds = array<i64: 8, 8>}, {transform_indices = @transform_6, window_bounds = array<i64: 8, 8>}, {transform_indices = @transform_7, window_bounds = array<i64: 1, 8, 8>}]} {
    %c0_i32 = arith.constant 0 : i32
    %0 = arith.cmpi eq, %arg2, %c0_i32 : i32
    %1 = arith.extui %0 : i1 to i32
    %c0_i32_0 = arith.constant 0 : i32
    %2 = arith.cmpi ne, %1, %c0_i32_0 : i32
    scf.if %2 {
      %cst = arith.constant 0xFF800000 : f32
      %13 = vector.broadcast %cst : f32 to vector<8x1xf32>
      %c0 = arith.constant 0 : index
      %c0_6 = arith.constant 0 : index
      %14 = vector.load %arg11[%c0, %c0_6] : memref<8x1xf32, #tpu.memory_space<vmem>>, vector<8x1xf32>
      tpu.vector_store %arg11[%c0, %c0_6], %13 {strides = array<i32>} : memref<8x1xf32, #tpu.memory_space<vmem>>, vector<8x1xf32>,
      %cst_7 = arith.constant 0.000000e+00 : f32
      %15 = vector.broadcast %cst_7 : f32 to vector<8x1xf32>
      %c0_8 = arith.constant 0 : index
      %c0_9 = arith.constant 0 : index
      %16 = vector.load %arg12[%c0_8, %c0_9] : memref<8x1xf32, #tpu.memory_space<vmem>>, vector<8x1xf32>
      tpu.vector_store %arg12[%c0_8, %c0_9], %15 {strides = array<i32>} : memref<8x1xf32, #tpu.memory_space<vmem>>, vector<8x1xf32>,
      %cst_10 = arith.constant 0.000000e+00 : f32
      %17 = vector.broadcast %cst_10 : f32 to vector<8x8xf32>
      %c0_11 = arith.constant 0 : index
      %c0_12 = arith.constant 0 : index
      %18 = vector.load %arg13[%c0_11, %c0_12] : memref<8x8xf32, #tpu.memory_space<vmem>>, vector<8x8xf32>
      tpu.vector_store %arg13[%c0_11, %c0_12], %17 {strides = array<i32>} : memref<8x8xf32, #tpu.memory_space<vmem>>, vector<8x8xf32>,
      %c0_13 = arith.constant 0 : index
      %c0_14 = arith.constant 0 : index
      %c0_15 = arith.constant 0 : index
      %19 = vector.load %arg3[%c0_13, %c0_14, %c0_15] : memref<1x8x8xbf16, #tpu.memory_space<vmem>>, vector<1x8x8xbf16>
      %20 = vector.shape_cast %19 : vector<1x8x8xbf16> to vector<8x8xbf16>
      %21 = arith.extf %20 : vector<8x8xbf16> to vector<8x8xf32>
      %c0_16 = arith.constant 0 : index
      %c0_17 = arith.constant 0 : index
      %22 = vector.load %arg6[%c0_16, %c0_17] : memref<8x8xf32, #tpu.memory_space<vmem>>, vector<8x8xf32>
      %c0_18 = arith.constant 0 : index
      %c0_19 = arith.constant 0 : index
      %23 = vector.load %arg7[%c0_18, %c0_19] : memref<8x8xf32, #tpu.memory_space<vmem>>, vector<8x8xf32>
      %24 = vector.extract_strided_slice %21 {offsets = [0, 4], sizes = [8, 4], strides = [1, 1]} : vector<8x8xf32> to vector<8x4xf32>
      %cst_20 = arith.constant 0.000000e+00 : f32
      %25 = vector.broadcast %cst_20 : f32 to vector<8x4xf32>
      %26 = arith.subf %25, %24 : vector<8x4xf32>
      %27 = vector.extract_strided_slice %21 {offsets = [0, 0], sizes = [8, 4], strides = [1, 1]} : vector<8x8xf32> to vector<8x4xf32>
      %28 = tpu.concatenate %26, %27 in 1 : vector<8x4xf32>, vector<8x4xf32> -> vector<8x8xf32>
      %29 = arith.mulf %21, %22 : vector<8x8xf32>
      %30 = arith.mulf %28, %23 : vector<8x8xf32>
      %31 = arith.addf %29, %30 : vector<8x8xf32>
      %cst_21 = arith.constant 0.353553385 : f32
      %32 = vector.broadcast %cst_21 : f32 to vector<8x8xf32>
      %33 = arith.mulf %31, %32 : vector<8x8xf32>
      %34 = arith.truncf %33 : vector<8x8xf32> to vector<8x8xbf16>
      %c0_22 = arith.constant 0 : index
      %c0_23 = arith.constant 0 : index
      %35 = vector.load %arg14[%c0_22, %c0_23] : memref<8x8xbf16, #tpu.memory_space<vmem>>, vector<8x8xbf16>
      tpu.vector_store %arg14[%c0_22, %c0_23], %34 {strides = array<i32>} : memref<8x8xbf16, #tpu.memory_space<vmem>>, vector<8x8xbf16>,
    } else {
    }
    %c8_i32 = arith.constant 8 : i32
    %3 = arith.muli %arg2, %c8_i32 : i32
    %c8_i32_1 = arith.constant 8 : i32
    %4 = arith.muli %arg1, %c8_i32_1 : i32
    %c8_i32_2 = arith.constant 8 : i32
    %5 = arith.addi %4, %c8_i32_2 : i32
    %c1_i32 = arith.constant 1 : i32
    %6 = arith.subi %5, %c1_i32 : i32
    %7 = arith.cmpi sle, %3, %6 : i32
    %8 = arith.extui %7 : i1 to i32
    %c0_i32_3 = arith.constant 0 : i32
    %9 = arith.cmpi ne, %8, %c0_i32_3 : i32
    scf.if %9 {
      %c0 = arith.constant 0 : index
      %c0_6 = arith.constant 0 : index
      %c0_7 = arith.constant 0 : index
      %13 = vector.load %arg4[%c0, %c0_6, %c0_7] : memref<1x8x8xbf16, #tpu.memory_space<vmem>>, vector<1x8x8xbf16>
      %14 = vector.shape_cast %13 : vector<1x8x8xbf16> to vector<8x8xbf16>
      %15 = arith.extf %14 : vector<8x8xbf16> to vector<8x8xf32>
      %c0_8 = arith.constant 0 : index
      %c0_9 = arith.constant 0 : index
      %16 = vector.load %arg8[%c0_8, %c0_9] : memref<8x8xf32, #tpu.memory_space<vmem>>, vector<8x8xf32>
      %c0_10 = arith.constant 0 : index
      %c0_11 = arith.constant 0 : index
      %17 = vector.load %arg9[%c0_10, %c0_11] : memref<8x8xf32, #tpu.memory_space<vmem>>, vector<8x8xf32>
      %18 = vector.extract_strided_slice %15 {offsets = [0, 4], sizes = [8, 4], strides = [1, 1]} : vector<8x8xf32> to vector<8x4xf32>
      %cst = arith.constant 0.000000e+00 : f32
      %19 = vector.broadcast %cst : f32 to vector<8x4xf32>
      %20 = arith.subf %19, %18 : vector<8x4xf32>
      %21 = vector.extract_strided_slice %15 {offsets = [0, 0], sizes = [8, 4], strides = [1, 1]} : vector<8x8xf32> to vector<8x4xf32>
      %22 = tpu.concatenate %20, %21 in 1 : vector<8x4xf32>, vector<8x4xf32> -> vector<8x8xf32>
      %23 = arith.mulf %15, %16 : vector<8x8xf32>
      %24 = arith.mulf %22, %17 : vector<8x8xf32>
      %25 = arith.addf %23, %24 : vector<8x8xf32>
      %26 = arith.truncf %25 : vector<8x8xf32> to vector<8x8xbf16>
      %c0_12 = arith.constant 0 : index
      %c0_13 = arith.constant 0 : index
      %c0_14 = arith.constant 0 : index
      %27 = vector.load %arg5[%c0_12, %c0_13, %c0_14] : memref<1x8x8xbf16, #tpu.memory_space<vmem>>, vector<1x8x8xbf16>
      %28 = vector.shape_cast %27 : vector<1x8x8xbf16> to vector<8x8xbf16>
      %c0_15 = arith.constant 0 : index
      %c0_16 = arith.constant 0 : index
      %29 = vector.load %arg14[%c0_15, %c0_16] : memref<8x8xbf16, #tpu.memory_space<vmem>>, vector<8x8xbf16>
      %cst_17 = arith.constant dense<0.000000e+00> : vector<8x8xf32>
      %30 = tpu.matmul %29, %26, %cst_17 {dimension_numbers = #tpu.dot_dimension_numbers<[1], [1], [0], [0], [0, 0, 1, 0], [], []>} : vector<8x8xbf16>, vector<8x8xbf16>, vector<8x8xf32> -> vector<8x8xf32>
      %c8_i32_18 = arith.constant 8 : i32
      %31 = arith.muli %arg1, %c8_i32_18 : i32
      %32 = tpu.iota {dimensions = array<i32: 0>} : vector<8x8xi32>
      %33 = vector.broadcast %31 : i32 to vector<8x8xi32>
      %34 = arith.addi %33, %32 : vector<8x8xi32>
      %c8_i32_19 = arith.constant 8 : i32
      %35 = arith.muli %arg2, %c8_i32_19 : i32
      %36 = tpu.iota {dimensions = array<i32: 1>} : vector<8x8xi32>
      %37 = vector.broadcast %35 : i32 to vector<8x8xi32>
      %38 = arith.addi %37, %36 : vector<8x8xi32>
      %39 = arith.cmpi sle, %38, %34 : vector<8x8xi32>
      %cst_20 = arith.constant -1.000000e+09 : f32
      %40 = vector.broadcast %cst_20 : f32 to vector<8x8xf32>
      %41 = arith.select %39, %30, %40 : vector<8x8xi1>, vector<8x8xf32>
      %c0_21 = arith.constant 0 : index
      %c0_22 = arith.constant 0 : index
      %42 = vector.load %arg11[%c0_21, %c0_22] : memref<8x1xf32, #tpu.memory_space<vmem>>, vector<8x1xf32>
      %cst_23 = arith.constant dense<0xFF800000> : vector<8xf32>
      %43 = vector.multi_reduction <maximumf>, %41, %cst_23 [1] : vector<8x8xf32> to vector<8xf32>
      %44 = vector.shape_cast %43 : vector<8xf32> to vector<8x1xf32>
      %45 = arith.maximumf %42, %44 : vector<8x1xf32>
      %46 = arith.subf %42, %45 : vector<8x1xf32>
      %47 = math.exp %46 : vector<8x1xf32>
      %48 = vector.broadcast %45 : vector<8x1xf32> to vector<8x8xf32>
      %49 = arith.subf %41, %48 : vector<8x8xf32>
      %50 = math.exp %49 : vector<8x8xf32>
      %c0_24 = arith.constant 0 : index
      %c0_25 = arith.constant 0 : index
      %51 = vector.load %arg12[%c0_24, %c0_25] : memref<8x1xf32, #tpu.memory_space<vmem>>, vector<8x1xf32>
      %52 = arith.mulf %47, %51 : vector<8x1xf32>
      %cst_26 = arith.constant dense<0.000000e+00> : vector<8xf32>
      %53 = vector.multi_reduction <add>, %50, %cst_26 [1] : vector<8x8xf32> to vector<8xf32>
      %54 = vector.shape_cast %53 : vector<8xf32> to vector<8x1xf32>
      %55 = arith.addf %52, %54 : vector<8x1xf32>
      %c0_27 = arith.constant 0 : index
      %c0_28 = arith.constant 0 : index
      %56 = vector.load %arg12[%c0_27, %c0_28] : memref<8x1xf32, #tpu.memory_space<vmem>>, vector<8x1xf32>
      tpu.vector_store %arg12[%c0_27, %c0_28], %55 {strides = array<i32>} : memref<8x1xf32, #tpu.memory_space<vmem>>, vector<8x1xf32>,
      %c0_29 = arith.constant 0 : index
      %c0_30 = arith.constant 0 : index
      %57 = vector.load %arg13[%c0_29, %c0_30] : memref<8x8xf32, #tpu.memory_space<vmem>>, vector<8x8xf32>
      %58 = vector.broadcast %47 : vector<8x1xf32> to vector<8x8xf32>
      %59 = arith.mulf %58, %57 : vector<8x8xf32>
      %60 = arith.truncf %50 : vector<8x8xf32> to vector<8x8xbf16>
      %cst_31 = arith.constant dense<0.000000e+00> : vector<8x8xf32>
      %61 = tpu.matmul %60, %28, %cst_31 {dimension_numbers = #tpu.dot_dimension_numbers<[1], [0], [0], [1], [0, 0, 1, 1], [], []>} : vector<8x8xbf16>, vector<8x8xbf16>, vector<8x8xf32> -> vector<8x8xf32>
      %62 = arith.addf %59, %61 : vector<8x8xf32>
      %c0_32 = arith.constant 0 : index
      %c0_33 = arith.constant 0 : index
      %63 = vector.load %arg13[%c0_32, %c0_33] : memref<8x8xf32, #tpu.memory_space<vmem>>, vector<8x8xf32>
      tpu.vector_store %arg13[%c0_32, %c0_33], %62 {strides = array<i32>} : memref<8x8xf32, #tpu.memory_space<vmem>>, vector<8x8xf32>,
      %c0_34 = arith.constant 0 : index
      %c0_35 = arith.constant 0 : index
      %64 = vector.load %arg11[%c0_34, %c0_35] : memref<8x1xf32, #tpu.memory_space<vmem>>, vector<8x1xf32>
      tpu.vector_store %arg11[%c0_34, %c0_35], %45 {strides = array<i32>} : memref<8x1xf32, #tpu.memory_space<vmem>>, vector<8x1xf32>,
    } else {
    }
    %c0_i32_4 = arith.constant 0 : i32
    %10 = arith.cmpi eq, %arg2, %c0_i32_4 : i32
    %11 = arith.extui %10 : i1 to i32
    %c0_i32_5 = arith.constant 0 : i32
    %12 = arith.cmpi ne, %11, %c0_i32_5 : i32
    scf.if %12 {
      %c0 = arith.constant 0 : index
      %c0_6 = arith.constant 0 : index
      %13 = vector.load %arg12[%c0, %c0_6] : memref<8x1xf32, #tpu.memory_space<vmem>>, vector<8x1xf32>
      %14 = tpu.reciprocal %13 {approx = true} : vector<8x1xf32> -> vector<8x1xf32>
      %c0_7 = arith.constant 0 : index
      %c0_8 = arith.constant 0 : index
      %15 = vector.load %arg13[%c0_7, %c0_8] : memref<8x8xf32, #tpu.memory_space<vmem>>, vector<8x8xf32>
      %16 = vector.broadcast %14 : vector<8x1xf32> to vector<8x8xf32>
      %17 = arith.mulf %15, %16 : vector<8x8xf32>
      %18 = arith.truncf %17 : vector<8x8xf32> to vector<8x8xbf16>
      %c0_9 = arith.constant 0 : index
      %c0_10 = arith.constant 0 : index
      %c0_11 = arith.constant 0 : index
      %19 = vector.load %arg10[%c0_9, %c0_10, %c0_11] : memref<1x8x8xbf16, #tpu.memory_space<vmem>>, vector<1x8x8xbf16>
      %20 = vector.shape_cast %19 : vector<1x8x8xbf16> to vector<8x8xbf16>
      %21 = vector.shape_cast %18 : vector<8x8xbf16> to vector<1x8x8xbf16>
      tpu.vector_store %arg10[%c0_9, %c0_10, %c0_11], %21 {strides = array<i32>} : memref<1x8x8xbf16, #tpu.memory_space<vmem>>, vector<1x8x8xbf16>,
    } else {
    }
    return
  }
  func.func @transform_0(%arg0: i32, %arg1: i32, %arg2: i32) -> (i32, i32, i32) {
    %c0_i32 = arith.constant 0 : i32
    %c0_i32_0 = arith.constant 0 : i32
    return %arg0, %arg1, %c0_i32 : i32, i32, i32
  }
  func.func @transform_1(%arg0: i32, %arg1: i32, %arg2: i32) -> (i32, i32, i32) {
    %c0_i32 = arith.constant 0 : i32
    %c0_i32_0 = arith.constant 0 : i32
    return %arg0, %arg2, %c0_i32 : i32, i32, i32
  }
  func.func @transform_2(%arg0: i32, %arg1: i32, %arg2: i32) -> (i32, i32, i32) {
    %c0_i32 = arith.constant 0 : i32
    %c0_i32_0 = arith.constant 0 : i32
    return %arg0, %arg2, %c0_i32 : i32, i32, i32
  }
  func.func @transform_3(%arg0: i32, %arg1: i32, %arg2: i32) -> (i32, i32) {
    %c0_i32 = arith.constant 0 : i32
    %c0_i32_0 = arith.constant 0 : i32
    return %arg1, %c0_i32 : i32, i32
  }
  func.func @transform_4(%arg0: i32, %arg1: i32, %arg2: i32) -> (i32, i32) {
    %c0_i32 = arith.constant 0 : i32
    %c0_i32_0 = arith.constant 0 : i32
    return %arg1, %c0_i32 : i32, i32
  }
  func.func @transform_5(%arg0: i32, %arg1: i32, %arg2: i32) -> (i32, i32) {
    %c0_i32 = arith.constant 0 : i32
    %c0_i32_0 = arith.constant 0 : i32
    return %arg2, %c0_i32 : i32, i32
  }
  func.func @transform_6(%arg0: i32, %arg1: i32, %arg2: i32) -> (i32, i32) {
    %c0_i32 = arith.constant 0 : i32
    %c0_i32_0 = arith.constant 0 : i32
    return %arg2, %c0_i32 : i32, i32
  }
  func.func @transform_7(%arg0: i32, %arg1: i32, %arg2: i32) -> (i32, i32, i32) {
    %c0_i32 = arith.constant 0 : i32
    %c0_i32_0 = arith.constant 0 : i32
    return %arg0, %arg1, %c0_i32 : i32, i32, i32
  }
}

module attributes {stable_mosaic.version = 11 : i64} {
  func.func @_matmul_add_kernel(%arg0: i32, %arg1: i32, %arg2: i32, %arg3: memref<16x32xbf16, #tpu.memory_space<vmem>>, %arg4: memref<32x32xbf16, #tpu.memory_space<vmem>>, %arg5: memref<16x32xbf16, #tpu.memory_space<vmem>>, %arg6: memref<16x32xbf16, #tpu.memory_space<vmem>>, %arg7: memref<16x32xf32, #tpu.memory_space<vmem>>) attributes {dimension_semantics = [#tpu.dimension_semantics<parallel>, #tpu.dimension_semantics<parallel>, #tpu.dimension_semantics<arbitrary>], iteration_bounds = array<i64: 1, 1, 1>, scalar_prefetch = 0 : i64, scratch_operands = 1 : i64, tpu.core_type = #tpu.core_type<tc>, window_params = [{transform_indices = @transform_0, window_bounds = array<i64: 16, 32>}, {transform_indices = @transform_1, window_bounds = array<i64: 32, 32>}, {transform_indices = @transform_2, window_bounds = array<i64: 16, 32>}, {transform_indices = @transform_3, window_bounds = array<i64: 16, 32>}]} {
    %c0_i32 = arith.constant 0 : i32
    %0 = arith.cmpi eq, %arg2, %c0_i32 : i32
    %1 = arith.extui %0 : i1 to i32
    %c0_i32_0 = arith.constant 0 : i32
    %2 = arith.cmpi ne, %1, %c0_i32_0 : i32
    scf.if %2 {
      %cst_10 = arith.constant 0.000000e+00 : f32
      %12 = vector.broadcast %cst_10 : f32 to vector<16x32xf32>
      %c0_11 = arith.constant 0 : index
      %c0_12 = arith.constant 0 : index
      %13 = vector.load %arg7[%c0_11, %c0_12] : memref<16x32xf32, #tpu.memory_space<vmem>>, vector<16x32xf32>
      tpu.vector_store %arg7[%c0_11, %c0_12], %12 {strides = array<i32>} : memref<16x32xf32, #tpu.memory_space<vmem>>, vector<16x32xf32>,
    } else {
    }
    %c0 = arith.constant 0 : index
    %c0_1 = arith.constant 0 : index
    %3 = vector.load %arg7[%c0, %c0_1] : memref<16x32xf32, #tpu.memory_space<vmem>>, vector<16x32xf32>
    %c0_2 = arith.constant 0 : index
    %c0_3 = arith.constant 0 : index
    %4 = vector.load %arg3[%c0_2, %c0_3] : memref<16x32xbf16, #tpu.memory_space<vmem>>, vector<16x32xbf16>
    %c0_4 = arith.constant 0 : index
    %c0_5 = arith.constant 0 : index
    %5 = vector.load %arg4[%c0_4, %c0_5] : memref<32x32xbf16, #tpu.memory_space<vmem>>, vector<32x32xbf16>
    %cst = arith.constant dense<0.000000e+00> : vector<16x32xf32>
    %6 = tpu.matmul %4, %5, %cst {dimension_numbers = #tpu.dot_dimension_numbers<[1], [0], [0], [1], [0, 0, 1, 1], [], []>} : vector<16x32xbf16>, vector<32x32xbf16>, vector<16x32xf32> -> vector<16x32xf32>
    %7 = arith.addf %3, %6 : vector<16x32xf32>
    %c0_6 = arith.constant 0 : index
    %c0_7 = arith.constant 0 : index
    %8 = vector.load %arg7[%c0_6, %c0_7] : memref<16x32xf32, #tpu.memory_space<vmem>>, vector<16x32xf32>
    tpu.vector_store %arg7[%c0_6, %c0_7], %7 {strides = array<i32>} : memref<16x32xf32, #tpu.memory_space<vmem>>, vector<16x32xf32>,
    %c0_i32_8 = arith.constant 0 : i32
    %9 = arith.cmpi eq, %arg2, %c0_i32_8 : i32
    %10 = arith.extui %9 : i1 to i32
    %c0_i32_9 = arith.constant 0 : i32
    %11 = arith.cmpi ne, %10, %c0_i32_9 : i32
    scf.if %11 {
      %c0_10 = arith.constant 0 : index
      %c0_11 = arith.constant 0 : index
      %12 = vector.load %arg7[%c0_10, %c0_11] : memref<16x32xf32, #tpu.memory_space<vmem>>, vector<16x32xf32>
      %c0_12 = arith.constant 0 : index
      %c0_13 = arith.constant 0 : index
      %13 = vector.load %arg5[%c0_12, %c0_13] : memref<16x32xbf16, #tpu.memory_space<vmem>>, vector<16x32xbf16>
      %14 = arith.extf %13 : vector<16x32xbf16> to vector<16x32xf32>
      %15 = arith.addf %12, %14 : vector<16x32xf32>
      %16 = arith.truncf %15 : vector<16x32xf32> to vector<16x32xbf16>
      %c0_14 = arith.constant 0 : index
      %c0_15 = arith.constant 0 : index
      %17 = vector.load %arg6[%c0_14, %c0_15] : memref<16x32xbf16, #tpu.memory_space<vmem>>, vector<16x32xbf16>
      tpu.vector_store %arg6[%c0_14, %c0_15], %16 {strides = array<i32>} : memref<16x32xbf16, #tpu.memory_space<vmem>>, vector<16x32xbf16>,
    } else {
    }
    return
  }
  func.func @transform_0(%arg0: i32, %arg1: i32, %arg2: i32) -> (i32, i32) {
    %c0_i32 = arith.constant 0 : i32
    return %arg0, %arg2 : i32, i32
  }
  func.func @transform_1(%arg0: i32, %arg1: i32, %arg2: i32) -> (i32, i32) {
    %c0_i32 = arith.constant 0 : i32
    return %arg2, %arg1 : i32, i32
  }
  func.func @transform_2(%arg0: i32, %arg1: i32, %arg2: i32) -> (i32, i32) {
    %c0_i32 = arith.constant 0 : i32
    return %arg0, %arg1 : i32, i32
  }
  func.func @transform_3(%arg0: i32, %arg1: i32, %arg2: i32) -> (i32, i32) {
    %c0_i32 = arith.constant 0 : i32
    return %arg0, %arg1 : i32, i32
  }
}

module attributes {stable_mosaic.version = 11 : i64} {
  func.func @_rms_matmul_kernel(%arg0: i32, %arg1: i32, %arg2: memref<16x32xbf16, #tpu.memory_space<vmem>>, %arg3: memref<1x32xf32, #tpu.memory_space<vmem>>, %arg4: memref<32x32xbf16, #tpu.memory_space<vmem>>, %arg5: memref<16x32xbf16, #tpu.memory_space<vmem>>, %arg6: memref<16x32xbf16, #tpu.memory_space<vmem>>) attributes {dimension_semantics = [#tpu.dimension_semantics<parallel>, #tpu.dimension_semantics<arbitrary>], iteration_bounds = array<i64: 1, 1>, scalar_prefetch = 0 : i64, scratch_operands = 1 : i64, tpu.core_type = #tpu.core_type<tc>, window_params = [{transform_indices = @transform_0, window_bounds = array<i64: 16, 32>}, {pipeline_mode = #tpu.pipeline_mode<synchronous>, transform_indices = @transform_1, window_bounds = array<i64: 1, 32>}, {transform_indices = @transform_2, window_bounds = array<i64: 32, 32>}, {transform_indices = @transform_3, window_bounds = array<i64: 16, 32>}]} {
    %c0_i32 = arith.constant 0 : i32
    %0 = arith.cmpi eq, %arg1, %c0_i32 : i32
    %1 = arith.extui %0 : i1 to i32
    %c0_i32_0 = arith.constant 0 : i32
    %2 = arith.cmpi ne, %1, %c0_i32_0 : i32
    scf.if %2 {
      %c0_6 = arith.constant 0 : index
      %c0_7 = arith.constant 0 : index
      %8 = vector.load %arg2[%c0_6, %c0_7] : memref<16x32xbf16, #tpu.memory_space<vmem>>, vector<16x32xbf16>
      %9 = arith.extf %8 : vector<16x32xbf16> to vector<16x32xf32>
      %10 = arith.mulf %9, %9 : vector<16x32xf32>
      %cst_8 = arith.constant dense<0.000000e+00> : vector<16xf32>
      %11 = vector.multi_reduction <add>, %10, %cst_8 [1] : vector<16x32xf32> to vector<16xf32>
      %12 = vector.shape_cast %11 : vector<16xf32> to vector<16x1xf32>
      %cst_9 = arith.constant 3.200000e+01 : f32
      %13 = vector.broadcast %cst_9 : f32 to vector<16x1xf32>
      %14 = arith.divf %12, %13 : vector<16x1xf32>
      %cst_10 = arith.constant 9.99999997E-7 : f32
      %15 = vector.broadcast %cst_10 : f32 to vector<16x1xf32>
      %16 = arith.addf %14, %15 : vector<16x1xf32>
      %17 = math.rsqrt %16 : vector<16x1xf32>
      %18 = vector.broadcast %17 : vector<16x1xf32> to vector<16x32xf32>
      %19 = arith.mulf %9, %18 : vector<16x32xf32>
      %c0_11 = arith.constant 0 : index
      %c0_12 = arith.constant 0 : index
      %20 = vector.load %arg3[%c0_11, %c0_12] : memref<1x32xf32, #tpu.memory_space<vmem>>, vector<1x32xf32>
      %21 = vector.broadcast %20 : vector<1x32xf32> to vector<16x32xf32>
      %22 = arith.mulf %19, %21 : vector<16x32xf32>
      %23 = arith.truncf %22 : vector<16x32xf32> to vector<16x32xbf16>
      %c0_13 = arith.constant 0 : index
      %c0_14 = arith.constant 0 : index
      %24 = vector.load %arg6[%c0_13, %c0_14] : memref<16x32xbf16, #tpu.memory_space<vmem>>, vector<16x32xbf16>
      tpu.vector_store %arg6[%c0_13, %c0_14], %23 {strides = array<i32>} : memref<16x32xbf16, #tpu.memory_space<vmem>>, vector<16x32xbf16>,
    } else {
    }
    %c0 = arith.constant 0 : index
    %c0_1 = arith.constant 0 : index
    %3 = vector.load %arg6[%c0, %c0_1] : memref<16x32xbf16, #tpu.memory_space<vmem>>, vector<16x32xbf16>
    %c0_2 = arith.constant 0 : index
    %c0_3 = arith.constant 0 : index
    %4 = vector.load %arg4[%c0_2, %c0_3] : memref<32x32xbf16, #tpu.memory_space<vmem>>, vector<32x32xbf16>
    %cst = arith.constant dense<0.000000e+00> : vector<16x32xf32>
    %5 = tpu.matmul %3, %4, %cst {dimension_numbers = #tpu.dot_dimension_numbers<[1], [0], [0], [1], [0, 0, 1, 1], [], []>} : vector<16x32xbf16>, vector<32x32xbf16>, vector<16x32xf32> -> vector<16x32xf32>
    %6 = arith.truncf %5 : vector<16x32xf32> to vector<16x32xbf16>
    %c0_4 = arith.constant 0 : index
    %c0_5 = arith.constant 0 : index
    %7 = vector.load %arg5[%c0_4, %c0_5] : memref<16x32xbf16, #tpu.memory_space<vmem>>, vector<16x32xbf16>
    tpu.vector_store %arg5[%c0_4, %c0_5], %6 {strides = array<i32>} : memref<16x32xbf16, #tpu.memory_space<vmem>>, vector<16x32xbf16>,
    return
  }
  func.func @transform_0(%arg0: i32, %arg1: i32) -> (i32, i32) {
    %c0_i32 = arith.constant 0 : i32
    %c0_i32_0 = arith.constant 0 : i32
    return %arg0, %c0_i32 : i32, i32
  }
  func.func @transform_1(%arg0: i32, %arg1: i32) -> (i32, i32) {
    %c0_i32 = arith.constant 0 : i32
    %c0_i32_0 = arith.constant 0 : i32
    %c0_i32_1 = arith.constant 0 : i32
    return %c0_i32, %c0_i32_0 : i32, i32
  }
  func.func @transform_2(%arg0: i32, %arg1: i32) -> (i32, i32) {
    %c0_i32 = arith.constant 0 : i32
    %c0_i32_0 = arith.constant 0 : i32
    return %c0_i32, %arg1 : i32, i32
  }
  func.func @transform_3(%arg0: i32, %arg1: i32) -> (i32, i32) {
    %c0_i32 = arith.constant 0 : i32
    return %arg0, %arg1 : i32, i32
  }
}

module attributes {stable_mosaic.version = 11 : i64} {
  func.func @_matmul_add_kernel(%arg0: i32, %arg1: i32, %arg2: i32, %arg3: memref<16x64xbf16, #tpu.memory_space<vmem>>, %arg4: memref<64x32xbf16, #tpu.memory_space<vmem>>, %arg5: memref<16x32xbf16, #tpu.memory_space<vmem>>, %arg6: memref<16x32xbf16, #tpu.memory_space<vmem>>, %arg7: memref<16x32xf32, #tpu.memory_space<vmem>>) attributes {dimension_semantics = [#tpu.dimension_semantics<parallel>, #tpu.dimension_semantics<parallel>, #tpu.dimension_semantics<arbitrary>], iteration_bounds = array<i64: 1, 1, 1>, scalar_prefetch = 0 : i64, scratch_operands = 1 : i64, tpu.core_type = #tpu.core_type<tc>, window_params = [{transform_indices = @transform_0, window_bounds = array<i64: 16, 64>}, {transform_indices = @transform_1, window_bounds = array<i64: 64, 32>}, {transform_indices = @transform_2, window_bounds = array<i64: 16, 32>}, {transform_indices = @transform_3, window_bounds = array<i64: 16, 32>}]} {
    %c0_i32 = arith.constant 0 : i32
    %0 = arith.cmpi eq, %arg2, %c0_i32 : i32
    %1 = arith.extui %0 : i1 to i32
    %c0_i32_0 = arith.constant 0 : i32
    %2 = arith.cmpi ne, %1, %c0_i32_0 : i32
    scf.if %2 {
      %cst_10 = arith.constant 0.000000e+00 : f32
      %12 = vector.broadcast %cst_10 : f32 to vector<16x32xf32>
      %c0_11 = arith.constant 0 : index
      %c0_12 = arith.constant 0 : index
      %13 = vector.load %arg7[%c0_11, %c0_12] : memref<16x32xf32, #tpu.memory_space<vmem>>, vector<16x32xf32>
      tpu.vector_store %arg7[%c0_11, %c0_12], %12 {strides = array<i32>} : memref<16x32xf32, #tpu.memory_space<vmem>>, vector<16x32xf32>,
    } else {
    }
    %c0 = arith.constant 0 : index
    %c0_1 = arith.constant 0 : index
    %3 = vector.load %arg7[%c0, %c0_1] : memref<16x32xf32, #tpu.memory_space<vmem>>, vector<16x32xf32>
    %c0_2 = arith.constant 0 : index
    %c0_3 = arith.constant 0 : index
    %4 = vector.load %arg3[%c0_2, %c0_3] : memref<16x64xbf16, #tpu.memory_space<vmem>>, vector<16x64xbf16>
    %c0_4 = arith.constant 0 : index
    %c0_5 = arith.constant 0 : index
    %5 = vector.load %arg4[%c0_4, %c0_5] : memref<64x32xbf16, #tpu.memory_space<vmem>>, vector<64x32xbf16>
    %cst = arith.constant dense<0.000000e+00> : vector<16x32xf32>
    %6 = tpu.matmul %4, %5, %cst {dimension_numbers = #tpu.dot_dimension_numbers<[1], [0], [0], [1], [0, 0, 1, 1], [], []>} : vector<16x64xbf16>, vector<64x32xbf16>, vector<16x32xf32> -> vector<16x32xf32>
    %7 = arith.addf %3, %6 : vector<16x32xf32>
    %c0_6 = arith.constant 0 : index
    %c0_7 = arith.constant 0 : index
    %8 = vector.load %arg7[%c0_6, %c0_7] : memref<16x32xf32, #tpu.memory_space<vmem>>, vector<16x32xf32>
    tpu.vector_store %arg7[%c0_6, %c0_7], %7 {strides = array<i32>} : memref<16x32xf32, #tpu.memory_space<vmem>>, vector<16x32xf32>,
    %c0_i32_8 = arith.constant 0 : i32
    %9 = arith.cmpi eq, %arg2, %c0_i32_8 : i32
    %10 = arith.extui %9 : i1 to i32
    %c0_i32_9 = arith.constant 0 : i32
    %11 = arith.cmpi ne, %10, %c0_i32_9 : i32
    scf.if %11 {
      %c0_10 = arith.constant 0 : index
      %c0_11 = arith.constant 0 : index
      %12 = vector.load %arg7[%c0_10, %c0_11] : memref<16x32xf32, #tpu.memory_space<vmem>>, vector<16x32xf32>
      %c0_12 = arith.constant 0 : index
      %c0_13 = arith.constant 0 : index
      %13 = vector.load %arg5[%c0_12, %c0_13] : memref<16x32xbf16, #tpu.memory_space<vmem>>, vector<16x32xbf16>
      %14 = arith.extf %13 : vector<16x32xbf16> to vector<16x32xf32>
      %15 = arith.addf %12, %14 : vector<16x32xf32>
      %16 = arith.truncf %15 : vector<16x32xf32> to vector<16x32xbf16>
      %c0_14 = arith.constant 0 : index
      %c0_15 = arith.constant 0 : index
      %17 = vector.load %arg6[%c0_14, %c0_15] : memref<16x32xbf16, #tpu.memory_space<vmem>>, vector<16x32xbf16>
      tpu.vector_store %arg6[%c0_14, %c0_15], %16 {strides = array<i32>} : memref<16x32xbf16, #tpu.memory_space<vmem>>, vector<16x32xbf16>,
    } else {
    }
    return
  }
  func.func @transform_0(%arg0: i32, %arg1: i32, %arg2: i32) -> (i32, i32) {
    %c0_i32 = arith.constant 0 : i32
    return %arg0, %arg2 : i32, i32
  }
  func.func @transform_1(%arg0: i32, %arg1: i32, %arg2: i32) -> (i32, i32) {
    %c0_i32 = arith.constant 0 : i32
    return %arg2, %arg1 : i32, i32
  }
  func.func @transform_2(%arg0: i32, %arg1: i32, %arg2: i32) -> (i32, i32) {
    %c0_i32 = arith.constant 0 : i32
    return %arg0, %arg1 : i32, i32
  }
  func.func @transform_3(%arg0: i32, %arg1: i32, %arg2: i32) -> (i32, i32) {
    %c0_i32 = arith.constant 0 : i32
    return %arg0, %arg1 : i32, i32
  }
}

module attributes {stable_mosaic.version = 11 : i64} {
  func.func @_flash_kernel(%arg0: i32, %arg1: i32, %arg2: i32, %arg3: memref<1x8x8xbf16, #tpu.memory_space<vmem>>, %arg4: memref<1x8x8xbf16, #tpu.memory_space<vmem>>, %arg5: memref<1x8x8xbf16, #tpu.memory_space<vmem>>, %arg6: memref<8x8xf32, #tpu.memory_space<vmem>>, %arg7: memref<8x8xf32, #tpu.memory_space<vmem>>, %arg8: memref<8x8xf32, #tpu.memory_space<vmem>>, %arg9: memref<8x8xf32, #tpu.memory_space<vmem>>, %arg10: memref<1x8x8xbf16, #tpu.memory_space<vmem>>, %arg11: memref<8x1xf32, #tpu.memory_space<vmem>>, %arg12: memref<8x1xf32, #tpu.memory_space<vmem>>, %arg13: memref<8x8xf32, #tpu.memory_space<vmem>>, %arg14: memref<8x8xbf16, #tpu.memory_space<vmem>>) attributes {dimension_semantics = [#tpu.dimension_semantics<parallel>, #tpu.dimension_semantics<parallel>, #tpu.dimension_semantics<arbitrary>], iteration_bounds = array<i64: 8, 1, 1>, scalar_prefetch = 0 : i64, scratch_operands = 4 : i64, tpu.core_type = #tpu.core_type<tc>, window_params = [{transform_indices = @transform_0, window_bounds = array<i64: 1, 8, 8>}, {transform_indices = @transform_1, window_bounds = array<i64: 1, 8, 8>}, {transform_indices = @transform_2, window_bounds = array<i64: 1, 8, 8>}, {transform_indices = @transform_3, window_bounds = array<i64: 8, 8>}, {transform_indices = @transform_4, window_bounds = array<i64: 8, 8>}, {transform_indices = @transform_5, window_bounds = array<i64: 8, 8>}, {transform_indices = @transform_6, window_bounds = array<i64: 8, 8>}, {transform_indices = @transform_7, window_bounds = array<i64: 1, 8, 8>}]} {
    %c0_i32 = arith.constant 0 : i32
    %0 = arith.cmpi eq, %arg2, %c0_i32 : i32
    %1 = arith.extui %0 : i1 to i32
    %c0_i32_0 = arith.constant 0 : i32
    %2 = arith.cmpi ne, %1, %c0_i32_0 : i32
    scf.if %2 {
      %cst_30 = arith.constant 0xFF800000 : f32
      %47 = vector.broadcast %cst_30 : f32 to vector<8x1xf32>
      %c0_31 = arith.constant 0 : index
      %c0_32 = arith.constant 0 : index
      %48 = vector.load %arg11[%c0_31, %c0_32] : memref<8x1xf32, #tpu.memory_space<vmem>>, vector<8x1xf32>
      tpu.vector_store %arg11[%c0_31, %c0_32], %47 {strides = array<i32>} : memref<8x1xf32, #tpu.memory_space<vmem>>, vector<8x1xf32>,
      %cst_33 = arith.constant 0.000000e+00 : f32
      %49 = vector.broadcast %cst_33 : f32 to vector<8x1xf32>
      %c0_34 = arith.constant 0 : index
      %c0_35 = arith.constant 0 : index
      %50 = vector.load %arg12[%c0_34, %c0_35] : memref<8x1xf32, #tpu.memory_space<vmem>>, vector<8x1xf32>
      tpu.vector_store %arg12[%c0_34, %c0_35], %49 {strides = array<i32>} : memref<8x1xf32, #tpu.memory_space<vmem>>, vector<8x1xf32>,
      %cst_36 = arith.constant 0.000000e+00 : f32
      %51 = vector.broadcast %cst_36 : f32 to vector<8x8xf32>
      %c0_37 = arith.constant 0 : index
      %c0_38 = arith.constant 0 : index
      %52 = vector.load %arg13[%c0_37, %c0_38] : memref<8x8xf32, #tpu.memory_space<vmem>>, vector<8x8xf32>
      tpu.vector_store %arg13[%c0_37, %c0_38], %51 {strides = array<i32>} : memref<8x8xf32, #tpu.memory_space<vmem>>, vector<8x8xf32>,
      %c0_39 = arith.constant 0 : index
      %c0_40 = arith.constant 0 : index
      %c0_41 = arith.constant 0 : index
      %53 = vector.load %arg3[%c0_39, %c0_40, %c0_41] : memref<1x8x8xbf16, #tpu.memory_space<vmem>>, vector<1x8x8xbf16>
      %54 = vector.shape_cast %53 : vector<1x8x8xbf16> to vector<8x8xbf16>
      %55 = arith.extf %54 : vector<8x8xbf16> to vector<8x8xf32>
      %c0_42 = arith.constant 0 : index
      %c0_43 = arith.constant 0 : index
      %56 = vector.load %arg6[%c0_42, %c0_43] : memref<8x8xf32, #tpu.memory_space<vmem>>, vector<8x8xf32>
      %c0_44 = arith.constant 0 : index
      %c0_45 = arith.constant 0 : index
      %57 = vector.load %arg7[%c0_44, %c0_45] : memref<8x8xf32, #tpu.memory_space<vmem>>, vector<8x8xf32>
      %58 = vector.extract_strided_slice %55 {offsets = [0, 4], sizes = [8, 4], strides = [1, 1]} : vector<8x8xf32> to vector<8x4xf32>
      %cst_46 = arith.constant 0.000000e+00 : f32
      %59 = vector.broadcast %cst_46 : f32 to vector<8x4xf32>
      %60 = arith.subf %59, %58 : vector<8x4xf32>
      %61 = vector.extract_strided_slice %55 {offsets = [0, 0], sizes = [8, 4], strides = [1, 1]} : vector<8x8xf32> to vector<8x4xf32>
      %62 = tpu.concatenate %60, %61 in 1 : vector<8x4xf32>, vector<8x4xf32> -> vector<8x8xf32>
      %63 = arith.mulf %55, %56 : vector<8x8xf32>
      %64 = arith.mulf %62, %57 : vector<8x8xf32>
      %65 = arith.addf %63, %64 : vector<8x8xf32>
      %cst_47 = arith.constant 0.353553385 : f32
      %66 = vector.broadcast %cst_47 : f32 to vector<8x8xf32>
      %67 = arith.mulf %65, %66 : vector<8x8xf32>
      %68 = arith.truncf %67 : vector<8x8xf32> to vector<8x8xbf16>
      %c0_48 = arith.constant 0 : index
      %c0_49 = arith.constant 0 : index
      %69 = vector.load %arg14[%c0_48, %c0_49] : memref<8x8xbf16, #tpu.memory_space<vmem>>, vector<8x8xbf16>
      tpu.vector_store %arg14[%c0_48, %c0_49], %68 {strides = array<i32>} : memref<8x8xbf16, #tpu.memory_space<vmem>>, vector<8x8xbf16>,
    } else {
    }
    %c0 = arith.constant 0 : index
    %c0_1 = arith.constant 0 : index
    %c0_2 = arith.constant 0 : index
    %3 = vector.load %arg4[%c0, %c0_1, %c0_2] : memref<1x8x8xbf16, #tpu.memory_space<vmem>>, vector<1x8x8xbf16>
    %4 = vector.shape_cast %3 : vector<1x8x8xbf16> to vector<8x8xbf16>
    %5 = arith.extf %4 : vector<8x8xbf16> to vector<8x8xf32>
    %c0_3 = arith.constant 0 : index
    %c0_4 = arith.constant 0 : index
    %6 = vector.load %arg8[%c0_3, %c0_4] : memref<8x8xf32, #tpu.memory_space<vmem>>, vector<8x8xf32>
    %c0_5 = arith.constant 0 : index
    %c0_6 = arith.constant 0 : index
    %7 = vector.load %arg9[%c0_5, %c0_6] : memref<8x8xf32, #tpu.memory_space<vmem>>, vector<8x8xf32>
    %8 = vector.extract_strided_slice %5 {offsets = [0, 4], sizes = [8, 4], strides = [1, 1]} : vector<8x8xf32> to vector<8x4xf32>
    %cst = arith.constant 0.000000e+00 : f32
    %9 = vector.broadcast %cst : f32 to vector<8x4xf32>
    %10 = arith.subf %9, %8 : vector<8x4xf32>
    %11 = vector.extract_strided_slice %5 {offsets = [0, 0], sizes = [8, 4], strides = [1, 1]} : vector<8x8xf32> to vector<8x4xf32>
    %12 = tpu.concatenate %10, %11 in 1 : vector<8x4xf32>, vector<8x4xf32> -> vector<8x8xf32>
    %13 = arith.mulf %5, %6 : vector<8x8xf32>
    %14 = arith.mulf %12, %7 : vector<8x8xf32>
    %15 = arith.addf %13, %14 : vector<8x8xf32>
    %16 = arith.truncf %15 : vector<8x8xf32> to vector<8x8xbf16>
    %c0_7 = arith.constant 0 : index
    %c0_8 = arith.constant 0 : index
    %c0_9 = arith.constant 0 : index
    %17 = vector.load %arg5[%c0_7, %c0_8, %c0_9] : memref<1x8x8xbf16, #tpu.memory_space<vmem>>, vector<1x8x8xbf16>
    %18 = vector.shape_cast %17 : vector<1x8x8xbf16> to vector<8x8xbf16>
    %c0_10 = arith.constant 0 : index
    %c0_11 = arith.constant 0 : index
    %19 = vector.load %arg14[%c0_10, %c0_11] : memref<8x8xbf16, #tpu.memory_space<vmem>>, vector<8x8xbf16>
    %cst_12 = arith.constant dense<0.000000e+00> : vector<8x8xf32>
    %20 = tpu.matmul %19, %16, %cst_12 {dimension_numbers = #tpu.dot_dimension_numbers<[1], [1], [0], [0], [0, 0, 1, 0], [], []>} : vector<8x8xbf16>, vector<8x8xbf16>, vector<8x8xf32> -> vector<8x8xf32>
    %c0_13 = arith.constant 0 : index
    %c0_14 = arith.constant 0 : index
    %21 = vector.load %arg11[%c0_13, %c0_14] : memref<8x1xf32, #tpu.memory_space<vmem>>, vector<8x1xf32>
    %cst_15 = arith.constant dense<0xFF800000> : vector<8xf32>
    %22 = vector.multi_reduction <maximumf>, %20, %cst_15 [1] : vector<8x8xf32> to vector<8xf32>
    %23 = vector.shape_cast %22 : vector<8xf32> to vector<8x1xf32>
    %24 = arith.maximumf %21, %23 : vector<8x1xf32>
    %25 = arith.subf %21, %24 : vector<8x1xf32>
    %26 = math.exp %25 : vector<8x1xf32>
    %27 = vector.broadcast %24 : vector<8x1xf32> to vector<8x8xf32>
    %28 = arith.subf %20, %27 : vector<8x8xf32>
    %29 = math.exp %28 : vector<8x8xf32>
    %c0_16 = arith.constant 0 : index
    %c0_17 = arith.constant 0 : index
    %30 = vector.load %arg12[%c0_16, %c0_17] : memref<8x1xf32, #tpu.memory_space<vmem>>, vector<8x1xf32>
    %31 = arith.mulf %26, %30 : vector<8x1xf32>
    %cst_18 = arith.constant dense<0.000000e+00> : vector<8xf32>
    %32 = vector.multi_reduction <add>, %29, %cst_18 [1] : vector<8x8xf32> to vector<8xf32>
    %33 = vector.shape_cast %32 : vector<8xf32> to vector<8x1xf32>
    %34 = arith.addf %31, %33 : vector<8x1xf32>
    %c0_19 = arith.constant 0 : index
    %c0_20 = arith.constant 0 : index
    %35 = vector.load %arg12[%c0_19, %c0_20] : memref<8x1xf32, #tpu.memory_space<vmem>>, vector<8x1xf32>
    tpu.vector_store %arg12[%c0_19, %c0_20], %34 {strides = array<i32>} : memref<8x1xf32, #tpu.memory_space<vmem>>, vector<8x1xf32>,
    %c0_21 = arith.constant 0 : index
    %c0_22 = arith.constant 0 : index
    %36 = vector.load %arg13[%c0_21, %c0_22] : memref<8x8xf32, #tpu.memory_space<vmem>>, vector<8x8xf32>
    %37 = vector.broadcast %26 : vector<8x1xf32> to vector<8x8xf32>
    %38 = arith.mulf %37, %36 : vector<8x8xf32>
    %39 = arith.truncf %29 : vector<8x8xf32> to vector<8x8xbf16>
    %cst_23 = arith.constant dense<0.000000e+00> : vector<8x8xf32>
    %40 = tpu.matmul %39, %18, %cst_23 {dimension_numbers = #tpu.dot_dimension_numbers<[1], [0], [0], [1], [0, 0, 1, 1], [], []>} : vector<8x8xbf16>, vector<8x8xbf16>, vector<8x8xf32> -> vector<8x8xf32>
    %41 = arith.addf %38, %40 : vector<8x8xf32>
    %c0_24 = arith.constant 0 : index
    %c0_25 = arith.constant 0 : index
    %42 = vector.load %arg13[%c0_24, %c0_25] : memref<8x8xf32, #tpu.memory_space<vmem>>, vector<8x8xf32>
    tpu.vector_store %arg13[%c0_24, %c0_25], %41 {strides = array<i32>} : memref<8x8xf32, #tpu.memory_space<vmem>>, vector<8x8xf32>,
    %c0_26 = arith.constant 0 : index
    %c0_27 = arith.constant 0 : index
    %43 = vector.load %arg11[%c0_26, %c0_27] : memref<8x1xf32, #tpu.memory_space<vmem>>, vector<8x1xf32>
    tpu.vector_store %arg11[%c0_26, %c0_27], %24 {strides = array<i32>} : memref<8x1xf32, #tpu.memory_space<vmem>>, vector<8x1xf32>,
    %c0_i32_28 = arith.constant 0 : i32
    %44 = arith.cmpi eq, %arg2, %c0_i32_28 : i32
    %45 = arith.extui %44 : i1 to i32
    %c0_i32_29 = arith.constant 0 : i32
    %46 = arith.cmpi ne, %45, %c0_i32_29 : i32
    scf.if %46 {
      %c0_30 = arith.constant 0 : index
      %c0_31 = arith.constant 0 : index
      %47 = vector.load %arg12[%c0_30, %c0_31] : memref<8x1xf32, #tpu.memory_space<vmem>>, vector<8x1xf32>
      %48 = tpu.reciprocal %47 {approx = true} : vector<8x1xf32> -> vector<8x1xf32>
      %c0_32 = arith.constant 0 : index
      %c0_33 = arith.constant 0 : index
      %49 = vector.load %arg13[%c0_32, %c0_33] : memref<8x8xf32, #tpu.memory_space<vmem>>, vector<8x8xf32>
      %50 = vector.broadcast %48 : vector<8x1xf32> to vector<8x8xf32>
      %51 = arith.mulf %49, %50 : vector<8x8xf32>
      %52 = arith.truncf %51 : vector<8x8xf32> to vector<8x8xbf16>
      %c0_34 = arith.constant 0 : index
      %c0_35 = arith.constant 0 : index
      %c0_36 = arith.constant 0 : index
      %53 = vector.load %arg10[%c0_34, %c0_35, %c0_36] : memref<1x8x8xbf16, #tpu.memory_space<vmem>>, vector<1x8x8xbf16>
      %54 = vector.shape_cast %53 : vector<1x8x8xbf16> to vector<8x8xbf16>
      %55 = vector.shape_cast %52 : vector<8x8xbf16> to vector<1x8x8xbf16>
      tpu.vector_store %arg10[%c0_34, %c0_35, %c0_36], %55 {strides = array<i32>} : memref<1x8x8xbf16, #tpu.memory_space<vmem>>, vector<1x8x8xbf16>,
    } else {
    }
    return
  }
  func.func @transform_0(%arg0: i32, %arg1: i32, %arg2: i32) -> (i32, i32, i32) {
    %c0_i32 = arith.constant 0 : i32
    %c0_i32_0 = arith.constant 0 : i32
    return %arg0, %arg1, %c0_i32 : i32, i32, i32
  }
  func.func @transform_1(%arg0: i32, %arg1: i32, %arg2: i32) -> (i32, i32, i32) {
    %c0_i32 = arith.constant 0 : i32
    %c0_i32_0 = arith.constant 0 : i32
    return %arg0, %arg2, %c0_i32 : i32, i32, i32
  }
  func.func @transform_2(%arg0: i32, %arg1: i32, %arg2: i32) -> (i32, i32, i32) {
    %c0_i32 = arith.constant 0 : i32
    %c0_i32_0 = arith.constant 0 : i32
    return %arg0, %arg2, %c0_i32 : i32, i32, i32
  }
  func.func @transform_3(%arg0: i32, %arg1: i32, %arg2: i32) -> (i32, i32) {
    %c0_i32 = arith.constant 0 : i32
    %c0_i32_0 = arith.constant 0 : i32
    return %arg1, %c0_i32 : i32, i32
  }
  func.func @transform_4(%arg0: i32, %arg1: i32, %arg2: i32) -> (i32, i32) {
    %c0_i32 = arith.constant 0 : i32
    %c0_i32_0 = arith.constant 0 : i32
    return %arg1, %c0_i32 : i32, i32
  }
  func.func @transform_5(%arg0: i32, %arg1: i32, %arg2: i32) -> (i32, i32) {
    %c0_i32 = arith.constant 0 : i32
    %c0_i32_0 = arith.constant 0 : i32
    return %arg2, %c0_i32 : i32, i32
  }
  func.func @transform_6(%arg0: i32, %arg1: i32, %arg2: i32) -> (i32, i32) {
    %c0_i32 = arith.constant 0 : i32
    %c0_i32_0 = arith.constant 0 : i32
    return %arg2, %c0_i32 : i32, i32
  }
  func.func @transform_7(%arg0: i32, %arg1: i32, %arg2: i32) -> (i32, i32, i32) {
    %c0_i32 = arith.constant 0 : i32
    %c0_i32_0 = arith.constant 0 : i32
    return %arg0, %arg1, %c0_i32 : i32, i32, i32
  }
}

module attributes {stable_mosaic.version = 11 : i64} {
  func.func @_rms_swiglu_kernel(%arg0: i32, %arg1: i32, %arg2: memref<16x32xbf16, #tpu.memory_space<vmem>>, %arg3: memref<1x32xf32, #tpu.memory_space<vmem>>, %arg4: memref<32x64xbf16, #tpu.memory_space<vmem>>, %arg5: memref<32x64xbf16, #tpu.memory_space<vmem>>, %arg6: memref<16x64xbf16, #tpu.memory_space<vmem>>, %arg7: memref<16x32xbf16, #tpu.memory_space<vmem>>) attributes {dimension_semantics = [#tpu.dimension_semantics<parallel>, #tpu.dimension_semantics<arbitrary>], iteration_bounds = array<i64: 1, 1>, scalar_prefetch = 0 : i64, scratch_operands = 1 : i64, tpu.core_type = #tpu.core_type<tc>, window_params = [{transform_indices = @transform_0, window_bounds = array<i64: 16, 32>}, {pipeline_mode = #tpu.pipeline_mode<synchronous>, transform_indices = @transform_1, window_bounds = array<i64: 1, 32>}, {transform_indices = @transform_2, window_bounds = array<i64: 32, 64>}, {transform_indices = @transform_3, window_bounds = array<i64: 32, 64>}, {transform_indices = @transform_4, window_bounds = array<i64: 16, 64>}]} {
    %c0_i32 = arith.constant 0 : i32
    %0 = arith.cmpi eq, %arg1, %c0_i32 : i32
    %1 = arith.extui %0 : i1 to i32
    %c0_i32_0 = arith.constant 0 : i32
    %2 = arith.cmpi ne, %1, %c0_i32_0 : i32
    scf.if %2 {
      %c0_10 = arith.constant 0 : index
      %c0_11 = arith.constant 0 : index
      %17 = vector.load %arg2[%c0_10, %c0_11] : memref<16x32xbf16, #tpu.memory_space<vmem>>, vector<16x32xbf16>
      %18 = arith.extf %17 : vector<16x32xbf16> to vector<16x32xf32>
      %19 = arith.mulf %18, %18 : vector<16x32xf32>
      %cst_12 = arith.constant dense<0.000000e+00> : vector<16xf32>
      %20 = vector.multi_reduction <add>, %19, %cst_12 [1] : vector<16x32xf32> to vector<16xf32>
      %21 = vector.shape_cast %20 : vector<16xf32> to vector<16x1xf32>
      %cst_13 = arith.constant 3.200000e+01 : f32
      %22 = vector.broadcast %cst_13 : f32 to vector<16x1xf32>
      %23 = arith.divf %21, %22 : vector<16x1xf32>
      %cst_14 = arith.constant 9.99999997E-7 : f32
      %24 = vector.broadcast %cst_14 : f32 to vector<16x1xf32>
      %25 = arith.addf %23, %24 : vector<16x1xf32>
      %26 = math.rsqrt %25 : vector<16x1xf32>
      %27 = vector.broadcast %26 : vector<16x1xf32> to vector<16x32xf32>
      %28 = arith.mulf %18, %27 : vector<16x32xf32>
      %c0_15 = arith.constant 0 : index
      %c0_16 = arith.constant 0 : index
      %29 = vector.load %arg3[%c0_15, %c0_16] : memref<1x32xf32, #tpu.memory_space<vmem>>, vector<1x32xf32>
      %30 = vector.broadcast %29 : vector<1x32xf32> to vector<16x32xf32>
      %31 = arith.mulf %28, %30 : vector<16x32xf32>
      %32 = arith.truncf %31 : vector<16x32xf32> to vector<16x32xbf16>
      %c0_17 = arith.constant 0 : index
      %c0_18 = arith.constant 0 : index
      %33 = vector.load %arg7[%c0_17, %c0_18] : memref<16x32xbf16, #tpu.memory_space<vmem>>, vector<16x32xbf16>
      tpu.vector_store %arg7[%c0_17, %c0_18], %32 {strides = array<i32>} : memref<16x32xbf16, #tpu.memory_space<vmem>>, vector<16x32xbf16>,
    } else {
    }
    %c0 = arith.constant 0 : index
    %c0_1 = arith.constant 0 : index
    %3 = vector.load %arg7[%c0, %c0_1] : memref<16x32xbf16, #tpu.memory_space<vmem>>, vector<16x32xbf16>
    %c0_2 = arith.constant 0 : index
    %c0_3 = arith.constant 0 : index
    %4 = vector.load %arg4[%c0_2, %c0_3] : memref<32x64xbf16, #tpu.memory_space<vmem>>, vector<32x64xbf16>
    %cst = arith.constant dense<0.000000e+00> : vector<16x64xf32>
    %5 = tpu.matmul %3, %4, %cst {dimension_numbers = #tpu.dot_dimension_numbers<[1], [0], [0], [1], [0, 0, 1, 1], [], []>} : vector<16x32xbf16>, vector<32x64xbf16>, vector<16x64xf32> -> vector<16x64xf32>
    %c0_4 = arith.constant 0 : index
    %c0_5 = arith.constant 0 : index
    %6 = vector.load %arg5[%c0_4, %c0_5] : memref<32x64xbf16, #tpu.memory_space<vmem>>, vector<32x64xbf16>
    %cst_6 = arith.constant dense<0.000000e+00> : vector<16x64xf32>
    %7 = tpu.matmul %3, %6, %cst_6 {dimension_numbers = #tpu.dot_dimension_numbers<[1], [0], [0], [1], [0, 0, 1, 1], [], []>} : vector<16x32xbf16>, vector<32x64xbf16>, vector<16x64xf32> -> vector<16x64xf32>
    %8 = arith.negf %5 : vector<16x64xf32>
    %9 = math.exp %8 : vector<16x64xf32>
    %cst_7 = arith.constant 1.000000e+00 : f32
    %10 = vector.broadcast %cst_7 : f32 to vector<16x64xf32>
    %11 = arith.addf %10, %9 : vector<16x64xf32>
    %12 = arith.divf %10, %11 : vector<16x64xf32>
    %13 = arith.mulf %5, %12 : vector<16x64xf32>
    %14 = arith.mulf %13, %7 : vector<16x64xf32>
    %15 = arith.truncf %14 : vector<16x64xf32> to vector<16x64xbf16>
    %c0_8 = arith.constant 0 : index
    %c0_9 = arith.constant 0 : index
    %16 = vector.load %arg6[%c0_8, %c0_9] : memref<16x64xbf16, #tpu.memory_space<vmem>>, vector<16x64xbf16>
    tpu.vector_store %arg6[%c0_8, %c0_9], %15 {strides = array<i32>} : memref<16x64xbf16, #tpu.memory_space<vmem>>, vector<16x64xbf16>,
    return
  }
  func.func @transform_0(%arg0: i32, %arg1: i32) -> (i32, i32) {
    %c0_i32 = arith.constant 0 : i32
    %c0_i32_0 = arith.constant 0 : i32
    return %arg0, %c0_i32 : i32, i32
  }
  func.func @transform_1(%arg0: i32, %arg1: i32) -> (i32, i32) {
    %c0_i32 = arith.constant 0 : i32
    %c0_i32_0 = arith.constant 0 : i32
    %c0_i32_1 = arith.constant 0 : i32
    return %c0_i32, %c0_i32_0 : i32, i32
  }
  func.func @transform_2(%arg0: i32, %arg1: i32) -> (i32, i32) {
    %c0_i32 = arith.constant 0 : i32
    %c0_i32_0 = arith.constant 0 : i32
    return %c0_i32, %arg1 : i32, i32
  }
  func.func @transform_3(%arg0: i32, %arg1: i32) -> (i32, i32) {
    %c0_i32 = arith.constant 0 : i32
    %c0_i32_0 = arith.constant 0 : i32
    return %c0_i32, %arg1 : i32, i32
  }
  func.func @transform_4(%arg0: i32, %arg1: i32) -> (i32, i32) {
    %c0_i32 = arith.constant 0 : i32
    return %arg0, %arg1 : i32, i32
  }
}

module attributes {stable_mosaic.version = 11 : i64} {
  func.func @_matmul_kernel(%arg0: i32, %arg1: i32, %arg2: i32, %arg3: memref<16x32xbf16, #tpu.memory_space<vmem>>, %arg4: memref<32x64xbf16, #tpu.memory_space<vmem>>, %arg5: memref<16x64xbf16, #tpu.memory_space<vmem>>, %arg6: memref<16x64xf32, #tpu.memory_space<vmem>>) attributes {dimension_semantics = [#tpu.dimension_semantics<parallel>, #tpu.dimension_semantics<parallel>, #tpu.dimension_semantics<arbitrary>], iteration_bounds = array<i64: 1, 1, 1>, scalar_prefetch = 0 : i64, scratch_operands = 1 : i64, tpu.core_type = #tpu.core_type<tc>, window_params = [{transform_indices = @transform_0, window_bounds = array<i64: 16, 32>}, {transform_indices = @transform_1, window_bounds = array<i64: 32, 64>}, {transform_indices = @transform_2, window_bounds = array<i64: 16, 64>}]} {
    %c0_i32 = arith.constant 0 : i32
    %0 = arith.cmpi eq, %arg2, %c0_i32 : i32
    %1 = arith.extui %0 : i1 to i32
    %c0_i32_0 = arith.constant 0 : i32
    %2 = arith.cmpi ne, %1, %c0_i32_0 : i32
    scf.if %2 {
      %cst_10 = arith.constant 0.000000e+00 : f32
      %12 = vector.broadcast %cst_10 : f32 to vector<16x64xf32>
      %c0_11 = arith.constant 0 : index
      %c0_12 = arith.constant 0 : index
      %13 = vector.load %arg6[%c0_11, %c0_12] : memref<16x64xf32, #tpu.memory_space<vmem>>, vector<16x64xf32>
      tpu.vector_store %arg6[%c0_11, %c0_12], %12 {strides = array<i32>} : memref<16x64xf32, #tpu.memory_space<vmem>>, vector<16x64xf32>,
    } else {
    }
    %c0 = arith.constant 0 : index
    %c0_1 = arith.constant 0 : index
    %3 = vector.load %arg6[%c0, %c0_1] : memref<16x64xf32, #tpu.memory_space<vmem>>, vector<16x64xf32>
    %c0_2 = arith.constant 0 : index
    %c0_3 = arith.constant 0 : index
    %4 = vector.load %arg3[%c0_2, %c0_3] : memref<16x32xbf16, #tpu.memory_space<vmem>>, vector<16x32xbf16>
    %c0_4 = arith.constant 0 : index
    %c0_5 = arith.constant 0 : index
    %5 = vector.load %arg4[%c0_4, %c0_5] : memref<32x64xbf16, #tpu.memory_space<vmem>>, vector<32x64xbf16>
    %cst = arith.constant dense<0.000000e+00> : vector<16x64xf32>
    %6 = tpu.matmul %4, %5, %cst {dimension_numbers = #tpu.dot_dimension_numbers<[1], [0], [0], [1], [0, 0, 1, 1], [], []>} : vector<16x32xbf16>, vector<32x64xbf16>, vector<16x64xf32> -> vector<16x64xf32>
    %7 = arith.addf %3, %6 : vector<16x64xf32>
    %c0_6 = arith.constant 0 : index
    %c0_7 = arith.constant 0 : index
    %8 = vector.load %arg6[%c0_6, %c0_7] : memref<16x64xf32, #tpu.memory_space<vmem>>, vector<16x64xf32>
    tpu.vector_store %arg6[%c0_6, %c0_7], %7 {strides = array<i32>} : memref<16x64xf32, #tpu.memory_space<vmem>>, vector<16x64xf32>,
    %c0_i32_8 = arith.constant 0 : i32
    %9 = arith.cmpi eq, %arg2, %c0_i32_8 : i32
    %10 = arith.extui %9 : i1 to i32
    %c0_i32_9 = arith.constant 0 : i32
    %11 = arith.cmpi ne, %10, %c0_i32_9 : i32
    scf.if %11 {
      %c0_10 = arith.constant 0 : index
      %c0_11 = arith.constant 0 : index
      %12 = vector.load %arg6[%c0_10, %c0_11] : memref<16x64xf32, #tpu.memory_space<vmem>>, vector<16x64xf32>
      %13 = arith.truncf %12 : vector<16x64xf32> to vector<16x64xbf16>
      %c0_12 = arith.constant 0 : index
      %c0_13 = arith.constant 0 : index
      %14 = vector.load %arg5[%c0_12, %c0_13] : memref<16x64xbf16, #tpu.memory_space<vmem>>, vector<16x64xbf16>
      tpu.vector_store %arg5[%c0_12, %c0_13], %13 {strides = array<i32>} : memref<16x64xbf16, #tpu.memory_space<vmem>>, vector<16x64xbf16>,
    } else {
    }
    return
  }
  func.func @transform_0(%arg0: i32, %arg1: i32, %arg2: i32) -> (i32, i32) {
    %c0_i32 = arith.constant 0 : i32
    return %arg0, %arg2 : i32, i32
  }
  func.func @transform_1(%arg0: i32, %arg1: i32, %arg2: i32) -> (i32, i32) {
    %c0_i32 = arith.constant 0 : i32
    return %arg2, %arg1 : i32, i32
  }
  func.func @transform_2(%arg0: i32, %arg1: i32, %arg2: i32) -> (i32, i32) {
    %c0_i32 = arith.constant 0 : i32
    return %arg0, %arg1 : i32, i32
  }
}

module attributes {stable_mosaic.version = 11 : i64} {
  func.func @_matmul_add_kernel(%arg0: i32, %arg1: i32, %arg2: i32, %arg3: memref<16x32xbf16, #tpu.memory_space<vmem>>, %arg4: memref<32x128xbf16, #tpu.memory_space<vmem>>, %arg5: memref<1x128xf32, #tpu.memory_space<vmem>>, %arg6: memref<16x128xf32, #tpu.memory_space<vmem>>, %arg7: memref<16x128xf32, #tpu.memory_space<vmem>>) attributes {dimension_semantics = [#tpu.dimension_semantics<parallel>, #tpu.dimension_semantics<parallel>, #tpu.dimension_semantics<arbitrary>], iteration_bounds = array<i64: 1, 1, 1>, scalar_prefetch = 0 : i64, scratch_operands = 1 : i64, tpu.core_type = #tpu.core_type<tc>, window_params = [{transform_indices = @transform_0, window_bounds = array<i64: 16, 32>}, {transform_indices = @transform_1, window_bounds = array<i64: 32, 128>}, {transform_indices = @transform_2, window_bounds = array<i64: 1, 128>}, {transform_indices = @transform_3, window_bounds = array<i64: 16, 128>}]} {
    %c0_i32 = arith.constant 0 : i32
    %0 = arith.cmpi eq, %arg2, %c0_i32 : i32
    %1 = arith.extui %0 : i1 to i32
    %c0_i32_0 = arith.constant 0 : i32
    %2 = arith.cmpi ne, %1, %c0_i32_0 : i32
    scf.if %2 {
      %cst_10 = arith.constant 0.000000e+00 : f32
      %12 = vector.broadcast %cst_10 : f32 to vector<16x128xf32>
      %c0_11 = arith.constant 0 : index
      %c0_12 = arith.constant 0 : index
      %13 = vector.load %arg7[%c0_11, %c0_12] : memref<16x128xf32, #tpu.memory_space<vmem>>, vector<16x128xf32>
      tpu.vector_store %arg7[%c0_11, %c0_12], %12 {strides = array<i32>} : memref<16x128xf32, #tpu.memory_space<vmem>>, vector<16x128xf32>,
    } else {
    }
    %c0 = arith.constant 0 : index
    %c0_1 = arith.constant 0 : index
    %3 = vector.load %arg7[%c0, %c0_1] : memref<16x128xf32, #tpu.memory_space<vmem>>, vector<16x128xf32>
    %c0_2 = arith.constant 0 : index
    %c0_3 = arith.constant 0 : index
    %4 = vector.load %arg3[%c0_2, %c0_3] : memref<16x32xbf16, #tpu.memory_space<vmem>>, vector<16x32xbf16>
    %c0_4 = arith.constant 0 : index
    %c0_5 = arith.constant 0 : index
    %5 = vector.load %arg4[%c0_4, %c0_5] : memref<32x128xbf16, #tpu.memory_space<vmem>>, vector<32x128xbf16>
    %cst = arith.constant dense<0.000000e+00> : vector<16x128xf32>
    %6 = tpu.matmul %4, %5, %cst {dimension_numbers = #tpu.dot_dimension_numbers<[1], [0], [0], [1], [0, 0, 1, 1], [], []>} : vector<16x32xbf16>, vector<32x128xbf16>, vector<16x128xf32> -> vector<16x128xf32>
    %7 = arith.addf %3, %6 : vector<16x128xf32>
    %c0_6 = arith.constant 0 : index
    %c0_7 = arith.constant 0 : index
    %8 = vector.load %arg7[%c0_6, %c0_7] : memref<16x128xf32, #tpu.memory_space<vmem>>, vector<16x128xf32>
    tpu.vector_store %arg7[%c0_6, %c0_7], %7 {strides = array<i32>} : memref<16x128xf32, #tpu.memory_space<vmem>>, vector<16x128xf32>,
    %c0_i32_8 = arith.constant 0 : i32
    %9 = arith.cmpi eq, %arg2, %c0_i32_8 : i32
    %10 = arith.extui %9 : i1 to i32
    %c0_i32_9 = arith.constant 0 : i32
    %11 = arith.cmpi ne, %10, %c0_i32_9 : i32
    scf.if %11 {
      %c0_10 = arith.constant 0 : index
      %c0_11 = arith.constant 0 : index
      %12 = vector.load %arg7[%c0_10, %c0_11] : memref<16x128xf32, #tpu.memory_space<vmem>>, vector<16x128xf32>
      %c0_12 = arith.constant 0 : index
      %c0_13 = arith.constant 0 : index
      %13 = vector.load %arg5[%c0_12, %c0_13] : memref<1x128xf32, #tpu.memory_space<vmem>>, vector<1x128xf32>
      %14 = vector.broadcast %13 : vector<1x128xf32> to vector<16x128xf32>
      %15 = arith.addf %12, %14 : vector<16x128xf32>
      %c0_14 = arith.constant 0 : index
      %c0_15 = arith.constant 0 : index
      %16 = vector.load %arg6[%c0_14, %c0_15] : memref<16x128xf32, #tpu.memory_space<vmem>>, vector<16x128xf32>
      tpu.vector_store %arg6[%c0_14, %c0_15], %15 {strides = array<i32>} : memref<16x128xf32, #tpu.memory_space<vmem>>, vector<16x128xf32>,
    } else {
    }
    return
  }
  func.func @transform_0(%arg0: i32, %arg1: i32, %arg2: i32) -> (i32, i32) {
    %c0_i32 = arith.constant 0 : i32
    return %arg0, %arg2 : i32, i32
  }
  func.func @transform_1(%arg0: i32, %arg1: i32, %arg2: i32) -> (i32, i32) {
    %c0_i32 = arith.constant 0 : i32
    return %arg2, %arg1 : i32, i32
  }
  func.func @transform_2(%arg0: i32, %arg1: i32, %arg2: i32) -> (i32, i32) {
    %c0_i32 = arith.constant 0 : i32
    %c0_i32_0 = arith.constant 0 : i32
    return %c0_i32, %arg1 : i32, i32
  }
  func.func @transform_3(%arg0: i32, %arg1: i32, %arg2: i32) -> (i32, i32) {
    %c0_i32 = arith.constant 0 : i32
    return %arg0, %arg1 : i32, i32
  }
}

module attributes {stable_mosaic.version = 11 : i64} {
  func.func @_flash_kernel(%arg0: i32, %arg1: i32, %arg2: i32, %arg3: memref<1x8x8xbf16, #tpu.memory_space<vmem>>, %arg4: memref<1x8x8xbf16, #tpu.memory_space<vmem>>, %arg5: memref<1x8x8xbf16, #tpu.memory_space<vmem>>, %arg6: memref<1x8x8xbf16, #tpu.memory_space<vmem>>, %arg7: memref<8x1xf32, #tpu.memory_space<vmem>>, %arg8: memref<8x1xf32, #tpu.memory_space<vmem>>, %arg9: memref<8x8xf32, #tpu.memory_space<vmem>>, %arg10: memref<8x8xbf16, #tpu.memory_space<vmem>>) attributes {dimension_semantics = [#tpu.dimension_semantics<parallel>, #tpu.dimension_semantics<parallel>, #tpu.dimension_semantics<arbitrary>], iteration_bounds = array<i64: 8, 1, 1>, scalar_prefetch = 0 : i64, scratch_operands = 4 : i64, tpu.core_type = #tpu.core_type<tc>, window_params = [{transform_indices = @transform_0, window_bounds = array<i64: 1, 8, 8>}, {transform_indices = @transform_1, window_bounds = array<i64: 1, 8, 8>}, {transform_indices = @transform_2, window_bounds = array<i64: 1, 8, 8>}, {transform_indices = @transform_3, window_bounds = array<i64: 1, 8, 8>}]} {
    %c0_i32 = arith.constant 0 : i32
    %0 = arith.cmpi eq, %arg2, %c0_i32 : i32
    %1 = arith.extui %0 : i1 to i32
    %c0_i32_0 = arith.constant 0 : i32
    %2 = arith.cmpi ne, %1, %c0_i32_0 : i32
    scf.if %2 {
      %cst_25 = arith.constant 0xFF800000 : f32
      %35 = vector.broadcast %cst_25 : f32 to vector<8x1xf32>
      %c0_26 = arith.constant 0 : index
      %c0_27 = arith.constant 0 : index
      %36 = vector.load %arg7[%c0_26, %c0_27] : memref<8x1xf32, #tpu.memory_space<vmem>>, vector<8x1xf32>
      tpu.vector_store %arg7[%c0_26, %c0_27], %35 {strides = array<i32>} : memref<8x1xf32, #tpu.memory_space<vmem>>, vector<8x1xf32>,
      %cst_28 = arith.constant 0.000000e+00 : f32
      %37 = vector.broadcast %cst_28 : f32 to vector<8x1xf32>
      %c0_29 = arith.constant 0 : index
      %c0_30 = arith.constant 0 : index
      %38 = vector.load %arg8[%c0_29, %c0_30] : memref<8x1xf32, #tpu.memory_space<vmem>>, vector<8x1xf32>
      tpu.vector_store %arg8[%c0_29, %c0_30], %37 {strides = array<i32>} : memref<8x1xf32, #tpu.memory_space<vmem>>, vector<8x1xf32>,
      %cst_31 = arith.constant 0.000000e+00 : f32
      %39 = vector.broadcast %cst_31 : f32 to vector<8x8xf32>
      %c0_32 = arith.constant 0 : index
      %c0_33 = arith.constant 0 : index
      %40 = vector.load %arg9[%c0_32, %c0_33] : memref<8x8xf32, #tpu.memory_space<vmem>>, vector<8x8xf32>
      tpu.vector_store %arg9[%c0_32, %c0_33], %39 {strides = array<i32>} : memref<8x8xf32, #tpu.memory_space<vmem>>, vector<8x8xf32>,
      %c0_34 = arith.constant 0 : index
      %c0_35 = arith.constant 0 : index
      %c0_36 = arith.constant 0 : index
      %41 = vector.load %arg3[%c0_34, %c0_35, %c0_36] : memref<1x8x8xbf16, #tpu.memory_space<vmem>>, vector<1x8x8xbf16>
      %42 = vector.shape_cast %41 : vector<1x8x8xbf16> to vector<8x8xbf16>
      %43 = arith.extf %42 : vector<8x8xbf16> to vector<8x8xf32>
      %cst_37 = arith.constant 0.353553385 : f32
      %44 = vector.broadcast %cst_37 : f32 to vector<8x8xf32>
      %45 = arith.mulf %43, %44 : vector<8x8xf32>
      %46 = arith.truncf %45 : vector<8x8xf32> to vector<8x8xbf16>
      %c0_38 = arith.constant 0 : index
      %c0_39 = arith.constant 0 : index
      %47 = vector.load %arg10[%c0_38, %c0_39] : memref<8x8xbf16, #tpu.memory_space<vmem>>, vector<8x8xbf16>
      tpu.vector_store %arg10[%c0_38, %c0_39], %46 {strides = array<i32>} : memref<8x8xbf16, #tpu.memory_space<vmem>>, vector<8x8xbf16>,
    } else {
    }
    %c0 = arith.constant 0 : index
    %c0_1 = arith.constant 0 : index
    %c0_2 = arith.constant 0 : index
    %3 = vector.load %arg4[%c0, %c0_1, %c0_2] : memref<1x8x8xbf16, #tpu.memory_space<vmem>>, vector<1x8x8xbf16>
    %4 = vector.shape_cast %3 : vector<1x8x8xbf16> to vector<8x8xbf16>
    %c0_3 = arith.constant 0 : index
    %c0_4 = arith.constant 0 : index
    %c0_5 = arith.constant 0 : index
    %5 = vector.load %arg5[%c0_3, %c0_4, %c0_5] : memref<1x8x8xbf16, #tpu.memory_space<vmem>>, vector<1x8x8xbf16>
    %6 = vector.shape_cast %5 : vector<1x8x8xbf16> to vector<8x8xbf16>
    %c0_6 = arith.constant 0 : index
    %c0_7 = arith.constant 0 : index
    %7 = vector.load %arg10[%c0_6, %c0_7] : memref<8x8xbf16, #tpu.memory_space<vmem>>, vector<8x8xbf16>
    %cst = arith.constant dense<0.000000e+00> : vector<8x8xf32>
    %8 = tpu.matmul %7, %4, %cst {dimension_numbers = #tpu.dot_dimension_numbers<[1], [1], [0], [0], [0, 0, 1, 0], [], []>} : vector<8x8xbf16>, vector<8x8xbf16>, vector<8x8xf32> -> vector<8x8xf32>
    %c0_8 = arith.constant 0 : index
    %c0_9 = arith.constant 0 : index
    %9 = vector.load %arg7[%c0_8, %c0_9] : memref<8x1xf32, #tpu.memory_space<vmem>>, vector<8x1xf32>
    %cst_10 = arith.constant dense<0xFF800000> : vector<8xf32>
    %10 = vector.multi_reduction <maximumf>, %8, %cst_10 [1] : vector<8x8xf32> to vector<8xf32>
    %11 = vector.shape_cast %10 : vector<8xf32> to vector<8x1xf32>
    %12 = arith.maximumf %9, %11 : vector<8x1xf32>
    %13 = arith.subf %9, %12 : vector<8x1xf32>
    %14 = math.exp %13 : vector<8x1xf32>
    %15 = vector.broadcast %12 : vector<8x1xf32> to vector<8x8xf32>
    %16 = arith.subf %8, %15 : vector<8x8xf32>
    %17 = math.exp %16 : vector<8x8xf32>
    %c0_11 = arith.constant 0 : index
    %c0_12 = arith.constant 0 : index
    %18 = vector.load %arg8[%c0_11, %c0_12] : memref<8x1xf32, #tpu.memory_space<vmem>>, vector<8x1xf32>
    %19 = arith.mulf %14, %18 : vector<8x1xf32>
    %cst_13 = arith.constant dense<0.000000e+00> : vector<8xf32>
    %20 = vector.multi_reduction <add>, %17, %cst_13 [1] : vector<8x8xf32> to vector<8xf32>
    %21 = vector.shape_cast %20 : vector<8xf32> to vector<8x1xf32>
    %22 = arith.addf %19, %21 : vector<8x1xf32>
    %c0_14 = arith.constant 0 : index
    %c0_15 = arith.constant 0 : index
    %23 = vector.load %arg8[%c0_14, %c0_15] : memref<8x1xf32, #tpu.memory_space<vmem>>, vector<8x1xf32>
    tpu.vector_store %arg8[%c0_14, %c0_15], %22 {strides = array<i32>} : memref<8x1xf32, #tpu.memory_space<vmem>>, vector<8x1xf32>,
    %c0_16 = arith.constant 0 : index
    %c0_17 = arith.constant 0 : index
    %24 = vector.load %arg9[%c0_16, %c0_17] : memref<8x8xf32, #tpu.memory_space<vmem>>, vector<8x8xf32>
    %25 = vector.broadcast %14 : vector<8x1xf32> to vector<8x8xf32>
    %26 = arith.mulf %25, %24 : vector<8x8xf32>
    %27 = arith.truncf %17 : vector<8x8xf32> to vector<8x8xbf16>
    %cst_18 = arith.constant dense<0.000000e+00> : vector<8x8xf32>
    %28 = tpu.matmul %27, %6, %cst_18 {dimension_numbers = #tpu.dot_dimension_numbers<[1], [0], [0], [1], [0, 0, 1, 1], [], []>} : vector<8x8xbf16>, vector<8x8xbf16>, vector<8x8xf32> -> vector<8x8xf32>
    %29 = arith.addf %26, %28 : vector<8x8xf32>
    %c0_19 = arith.constant 0 : index
    %c0_20 = arith.constant 0 : index
    %30 = vector.load %arg9[%c0_19, %c0_20] : memref<8x8xf32, #tpu.memory_space<vmem>>, vector<8x8xf32>
    tpu.vector_store %arg9[%c0_19, %c0_20], %29 {strides = array<i32>} : memref<8x8xf32, #tpu.memory_space<vmem>>, vector<8x8xf32>,
    %c0_21 = arith.constant 0 : index
    %c0_22 = arith.constant 0 : index
    %31 = vector.load %arg7[%c0_21, %c0_22] : memref<8x1xf32, #tpu.memory_space<vmem>>, vector<8x1xf32>
    tpu.vector_store %arg7[%c0_21, %c0_22], %12 {strides = array<i32>} : memref<8x1xf32, #tpu.memory_space<vmem>>, vector<8x1xf32>,
    %c0_i32_23 = arith.constant 0 : i32
    %32 = arith.cmpi eq, %arg2, %c0_i32_23 : i32
    %33 = arith.extui %32 : i1 to i32
    %c0_i32_24 = arith.constant 0 : i32
    %34 = arith.cmpi ne, %33, %c0_i32_24 : i32
    scf.if %34 {
      %c0_25 = arith.constant 0 : index
      %c0_26 = arith.constant 0 : index
      %35 = vector.load %arg8[%c0_25, %c0_26] : memref<8x1xf32, #tpu.memory_space<vmem>>, vector<8x1xf32>
      %36 = tpu.reciprocal %35 {approx = true} : vector<8x1xf32> -> vector<8x1xf32>
      %c0_27 = arith.constant 0 : index
      %c0_28 = arith.constant 0 : index
      %37 = vector.load %arg9[%c0_27, %c0_28] : memref<8x8xf32, #tpu.memory_space<vmem>>, vector<8x8xf32>
      %38 = vector.broadcast %36 : vector<8x1xf32> to vector<8x8xf32>
      %39 = arith.mulf %37, %38 : vector<8x8xf32>
      %40 = arith.truncf %39 : vector<8x8xf32> to vector<8x8xbf16>
      %c0_29 = arith.constant 0 : index
      %c0_30 = arith.constant 0 : index
      %c0_31 = arith.constant 0 : index
      %41 = vector.load %arg6[%c0_29, %c0_30, %c0_31] : memref<1x8x8xbf16, #tpu.memory_space<vmem>>, vector<1x8x8xbf16>
      %42 = vector.shape_cast %41 : vector<1x8x8xbf16> to vector<8x8xbf16>
      %43 = vector.shape_cast %40 : vector<8x8xbf16> to vector<1x8x8xbf16>
      tpu.vector_store %arg6[%c0_29, %c0_30, %c0_31], %43 {strides = array<i32>} : memref<1x8x8xbf16, #tpu.memory_space<vmem>>, vector<1x8x8xbf16>,
    } else {
    }
    return
  }
  func.func @transform_0(%arg0: i32, %arg1: i32, %arg2: i32) -> (i32, i32, i32) {
    %c0_i32 = arith.constant 0 : i32
    %c0_i32_0 = arith.constant 0 : i32
    return %arg0, %arg1, %c0_i32 : i32, i32, i32
  }
  func.func @transform_1(%arg0: i32, %arg1: i32, %arg2: i32) -> (i32, i32, i32) {
    %c0_i32 = arith.constant 0 : i32
    %c0_i32_0 = arith.constant 0 : i32
    return %arg0, %arg2, %c0_i32 : i32, i32, i32
  }
  func.func @transform_2(%arg0: i32, %arg1: i32, %arg2: i32) -> (i32, i32, i32) {
    %c0_i32 = arith.constant 0 : i32
    %c0_i32_0 = arith.constant 0 : i32
    return %arg0, %arg2, %c0_i32 : i32, i32, i32
  }
  func.func @transform_3(%arg0: i32, %arg1: i32, %arg2: i32) -> (i32, i32, i32) {
    %c0_i32 = arith.constant 0 : i32
    %c0_i32_0 = arith.constant 0 : i32
    return %arg0, %arg1, %c0_i32 : i32, i32, i32
  }
}

module attributes {stable_mosaic.version = 11 : i64} {
  func.func @_head_kernel(%arg0: memref<8x32xbf16, #tpu.memory_space<vmem>>, %arg1: memref<32x32xbf16, #tpu.memory_space<vmem>>, %arg2: memref<1x32xf32, #tpu.memory_space<vmem>>, %arg3: memref<32x11xbf16, #tpu.memory_space<vmem>>, %arg4: memref<1x11xf32, #tpu.memory_space<vmem>>, %arg5: memref<8x11xf32, #tpu.memory_space<vmem>>) attributes {dimension_semantics = [], scalar_prefetch = 0 : i64, scratch_operands = 0 : i64, tpu.core_type = #tpu.core_type<tc>} {
    %c0 = arith.constant 0 : index
    %c0_0 = arith.constant 0 : index
    %0 = vector.load %arg0[%c0, %c0_0] : memref<8x32xbf16, #tpu.memory_space<vmem>>, vector<8x32xbf16>
    %c0_1 = arith.constant 0 : index
    %c0_2 = arith.constant 0 : index
    %1 = vector.load %arg1[%c0_1, %c0_2] : memref<32x32xbf16, #tpu.memory_space<vmem>>, vector<32x32xbf16>
    %cst = arith.constant dense<0.000000e+00> : vector<8x32xf32>
    %2 = tpu.matmul %0, %1, %cst {dimension_numbers = #tpu.dot_dimension_numbers<[1], [0], [0], [1], [0, 0, 1, 1], [], []>} : vector<8x32xbf16>, vector<32x32xbf16>, vector<8x32xf32> -> vector<8x32xf32>
    %c0_3 = arith.constant 0 : index
    %c0_4 = arith.constant 0 : index
    %3 = vector.load %arg2[%c0_3, %c0_4] : memref<1x32xf32, #tpu.memory_space<vmem>>, vector<1x32xf32>
    %4 = vector.broadcast %3 : vector<1x32xf32> to vector<8x32xf32>
    %5 = arith.addf %2, %4 : vector<8x32xf32>
    %cst_5 = arith.constant 0.000000e+00 : f32
    %6 = vector.broadcast %cst_5 : f32 to vector<8x32xf32>
    %7 = arith.maximumf %5, %6 : vector<8x32xf32>
    %8 = arith.truncf %7 : vector<8x32xf32> to vector<8x32xbf16>
    %c0_6 = arith.constant 0 : index
    %c0_7 = arith.constant 0 : index
    %9 = vector.load %arg3[%c0_6, %c0_7] : memref<32x11xbf16, #tpu.memory_space<vmem>>, vector<32x11xbf16>
    %cst_8 = arith.constant dense<0.000000e+00> : vector<8x11xf32>
    %10 = tpu.matmul %8, %9, %cst_8 {dimension_numbers = #tpu.dot_dimension_numbers<[1], [0], [0], [1], [0, 0, 1, 1], [], []>} : vector<8x32xbf16>, vector<32x11xbf16>, vector<8x11xf32> -> vector<8x11xf32>
    %c0_9 = arith.constant 0 : index
    %c0_10 = arith.constant 0 : index
    %11 = vector.load %arg4[%c0_9, %c0_10] : memref<1x11xf32, #tpu.memory_space<vmem>>, vector<1x11xf32>
    %12 = vector.broadcast %11 : vector<1x11xf32> to vector<8x11xf32>
    %13 = arith.addf %10, %12 : vector<8x11xf32>
    %c0_11 = arith.constant 0 : index
    %c0_12 = arith.constant 0 : index
    %14 = vector.load %arg5[%c0_11, %c0_12] : memref<8x11xf32, #tpu.memory_space<vmem>>, vector<8x11xf32>
    tpu.vector_store %arg5[%c0_11, %c0_12], %13 {strides = array<i32>} : memref<8x11xf32, #tpu.memory_space<vmem>>, vector<8x11xf32>,
    return
  }
}

module attributes {stable_mosaic.version = 11 : i64} {
  func.func @_head_kernel(%arg0: memref<8x32xbf16, #tpu.memory_space<vmem>>, %arg1: memref<32x32xbf16, #tpu.memory_space<vmem>>, %arg2: memref<1x32xf32, #tpu.memory_space<vmem>>, %arg3: memref<32x1xbf16, #tpu.memory_space<vmem>>, %arg4: memref<1x1xf32, #tpu.memory_space<vmem>>, %arg5: memref<8x1xf32, #tpu.memory_space<vmem>>) attributes {dimension_semantics = [], scalar_prefetch = 0 : i64, scratch_operands = 0 : i64, tpu.core_type = #tpu.core_type<tc>} {
    %c0 = arith.constant 0 : index
    %c0_0 = arith.constant 0 : index
    %0 = vector.load %arg0[%c0, %c0_0] : memref<8x32xbf16, #tpu.memory_space<vmem>>, vector<8x32xbf16>
    %c0_1 = arith.constant 0 : index
    %c0_2 = arith.constant 0 : index
    %1 = vector.load %arg1[%c0_1, %c0_2] : memref<32x32xbf16, #tpu.memory_space<vmem>>, vector<32x32xbf16>
    %cst = arith.constant dense<0.000000e+00> : vector<8x32xf32>
    %2 = tpu.matmul %0, %1, %cst {dimension_numbers = #tpu.dot_dimension_numbers<[1], [0], [0], [1], [0, 0, 1, 1], [], []>} : vector<8x32xbf16>, vector<32x32xbf16>, vector<8x32xf32> -> vector<8x32xf32>
    %c0_3 = arith.constant 0 : index
    %c0_4 = arith.constant 0 : index
    %3 = vector.load %arg2[%c0_3, %c0_4] : memref<1x32xf32, #tpu.memory_space<vmem>>, vector<1x32xf32>
    %4 = vector.broadcast %3 : vector<1x32xf32> to vector<8x32xf32>
    %5 = arith.addf %2, %4 : vector<8x32xf32>
    %cst_5 = arith.constant 0.000000e+00 : f32
    %6 = vector.broadcast %cst_5 : f32 to vector<8x32xf32>
    %7 = arith.maximumf %5, %6 : vector<8x32xf32>
    %8 = arith.truncf %7 : vector<8x32xf32> to vector<8x32xbf16>
    %c0_6 = arith.constant 0 : index
    %c0_7 = arith.constant 0 : index
    %9 = vector.load %arg3[%c0_6, %c0_7] : memref<32x1xbf16, #tpu.memory_space<vmem>>, vector<32x1xbf16>
    %cst_8 = arith.constant dense<0.000000e+00> : vector<8x1xf32>
    %10 = tpu.matmul %8, %9, %cst_8 {dimension_numbers = #tpu.dot_dimension_numbers<[1], [0], [0], [1], [0, 0, 1, 1], [], []>} : vector<8x32xbf16>, vector<32x1xbf16>, vector<8x1xf32> -> vector<8x1xf32>
    %c0_9 = arith.constant 0 : index
    %c0_10 = arith.constant 0 : index
    %11 = vector.load %arg4[%c0_9, %c0_10] : memref<1x1xf32, #tpu.memory_space<vmem>>, vector<1x1xf32>
    %12 = vector.broadcast %11 : vector<1x1xf32> to vector<8x1xf32>
    %13 = arith.addf %10, %12 : vector<8x1xf32>
    %c0_11 = arith.constant 0 : index
    %c0_12 = arith.constant 0 : index
    %14 = vector.load %arg5[%c0_11, %c0_12] : memref<8x1xf32, #tpu.memory_space<vmem>>, vector<8x1xf32>
    tpu.vector_store %arg5[%c0_11, %c0_12], %13 {strides = array<i32>} : memref<8x1xf32, #tpu.memory_space<vmem>>, vector<8x1xf32>,
    return
  }
}

</mosaic_0001>

<llo_original>
// kernel: bartmt_forward.44
$region0: #{bartmt_forward.44}
  #allocation0 [shape = 'u32[]', space=smem, size = 0x4, offset = 0x4, fixed_abs, tag = 'smem constant byte address 0x4 - core index']
  #allocation1 [shape = 'u32[72,128]{1,0:T(1,128)}', space=vmem, size = 0x9000, scoped, tag = 'internal scratch']
  #allocation2 [shape = 'f32[8,1]{1,0:T(8,128)}', space=vmem, size = 0x1000, scoped, tag = 'scratch operand']
  #allocation3 [shape = 'f32[8,1]{1,0:T(8,128)}', space=vmem, size = 0x1000, scoped, tag = 'scratch operand']
  #allocation4 [shape = 'f32[8,8]{1,0:T(8,128)}', space=vmem, size = 0x1000, scoped, tag = 'scratch operand']
  #allocation5 [shape = 'bf16[8,8]{1,0:T(8,128)(2,1)}', space=vmem, size = 0x800, scoped, tag = 'scratch operand']
  %s0 = inlined_call_operand.vmem [shape: bf16[8,8,8], index: 0, kind: input, shape index: {}]
  %s1 = inlined_call_operand.vmem [shape: bf16[8,8,8], index: 1, kind: input, shape index: {}]
  %s2 = inlined_call_operand.vmem [shape: bf16[8,8,8], index: 2, kind: input, shape index: {}]
  %s3 = inlined_call_operand.vmem [shape: f32[8,8], index: 3, kind: input, shape index: {}, may-alias: {3,5}]
  %s4 = inlined_call_operand.vmem [shape: f32[8,8], index: 4, kind: input, shape index: {}, may-alias: {4,6}]
  %s5 = inlined_call_operand.vmem [shape: f32[8,8], index: 5, kind: input, shape index: {}, may-alias: {3,5}]
  %s6 = inlined_call_operand.vmem [shape: f32[8,8], index: 6, kind: input, shape index: {}, may-alias: {4,6}]
  %s7 = inlined_call_operand.vmem [shape: bf16[8,8,8], index: 7, kind: output, shape index: {}]
  %s8 = sld [smem:[#allocation0]]
  $region73: #{bartmt_forward.44} parent=0
    _
  %s10 = ssub.s32 1, %s8
  %s11 = scalar_select 0, %s10, %s8
  loop: start=0, step=1, limit=10
  $region2: #{bartmt_forward.44} parent=0 // loop_pre_header
    _
  $region3: #{bartmt_forward.44} parent=0 // loop_header
    %s13 = sphi 0, %s17
    %p14 = scmp.ge.s32.totalorder %s13, 10
    %s20 = sphi 0, %s39
    %s21 = sphi 0, %s35
    %s22 = sphi 0, %s31
    %s23 = sphi 0, %s20
    %s24 = sphi 0, %s21
    %s25 = sphi 0, %s22
    %s26 = sphi 0, %s23
    %s27 = sphi 0, %s24
    %s28 = sphi 0, %s25
    %s44 = sphi 0, %s46
    %s47 = sphi 0, %s44
    %s48 = sphi 0, %s47
    %s64 = sphi 0, %s48
    %s72 = sphi 0, %s74
    %s75 = sphi 0, %s72
    %s76 = sphi 0, %s75
    %s92 = sphi 0, %s76
    %s100 = sphi 0, %s102
    %s103 = sphi 0, %s100
    %s104 = sphi 0, %s103
    %s120 = sphi 0, %s104
    %s126 = sphi 0, %s128
    %s129 = sphi 0, %s126
    %s130 = sphi 0, %s129
    %s146 = sphi 0, %s130
    %s152 = sphi 0, %s154
    %s155 = sphi 0, %s152
    %s156 = sphi 0, %s155
    %s172 = sphi 0, %s156
    %s178 = sphi 0, %s180
    %s181 = sphi 0, %s178
    %s182 = sphi 0, %s181
    %s198 = sphi 0, %s182
    %s204 = sphi 0, %s206
    %s207 = sphi 0, %s204
    %s208 = sphi 0, %s207
    %s224 = sphi 0, %s208
    %s232 = sphi 0, %s234
    %s235 = sphi 0, %s232
    %s236 = sphi 0, %s235
    %s252 = sphi 0, %s236
  $region4: #{bartmt_forward.44} parent=0 // loop_header_branch
    %16 = sbr.rel (%p14) target = $region8
  $region5: #{bartmt_forward.44} parent=0 // loop_body
    %s18 = ssub.s32 %s13, 1
    %s19 = ssub.s32 %s13, 2
    %s29 = sadd.s32 1, %s22
    %p30 = scmp.ge.s32.totalorder %s29, 1
    %s31 = scalar_select %p30, 0, %s29
    %s32 = sadd.s32 1, %s21
    %s33 = scalar_select %p30, %s32, %s21
    %p34 = scmp.ge.s32.totalorder %s33, 1
    %s35 = scalar_select %p34, 0, %s33
    %s36 = sadd.s32 1, %s20
    %s37 = scalar_select %p34, %s36, %s20
    %p38 = scmp.ge.s32.totalorder %s37, 8
    %s39 = scalar_select %p38, 0, %s37
    %s40 = ssub.s32 %s20, %s39
    %s41 = ssub.s32 %s21, %s35
    %s42 = sor.u32 %s40, %s41
    %p43 = scmp.eq.s32.totalorder %s42, 0
    %s45 = sadd.s32 %s44, 1
    %s46 = scalar_select %p43, %s44, %s45
    %p49 = pneg %p43
    %p50 = scmp.eq.s32.totalorder %s13, 7
    %p51 = por %p49, %p50
    %p52 = scmp.ne.s32.totalorder %s44, %s47
    %p53 = scmp.eq.s32.totalorder %s13, 0
    %p54 = por %p52, %p53
    %p55 = scmp.ne.s32.totalorder %s44, %s47
    %p56 = scmp.eq.s32.totalorder %s18, 7
    %p57 = por %p55, %p56
    %p58 = scmp.ne.s32.totalorder %s47, %s48
    %p59 = scmp.eq.s32.totalorder %s18, 0
    %p60 = por %p58, %p59
    %p61 = scmp.ne.s32.totalorder %s47, %s48
    %p62 = scmp.eq.s32.totalorder %s19, 7
    %p63 = por %p61, %p62
    %p65 = scmp.ne.s32.totalorder %s48, %s64
    %p66 = scmp.eq.s32.totalorder %s19, 0
    %p67 = por %p65, %p66
    %s68 = ssub.s32 %s20, %s39
    %s69 = ssub.s32 %s22, %s31
    %s70 = sor.u32 %s68, %s69
    %p71 = scmp.eq.s32.totalorder %s70, 0
    %s73 = sadd.s32 %s72, 1
    %s74 = scalar_select %p71, %s72, %s73
    %p77 = pneg %p71
    %p78 = scmp.eq.s32.totalorder %s13, 7
    %p79 = por %p77, %p78
    %p80 = scmp.ne.s32.totalorder %s72, %s75
    %p81 = scmp.eq.s32.totalorder %s13, 0
    %p82 = por %p80, %p81
    %p83 = scmp.ne.s32.totalorder %s72, %s75
    %p84 = scmp.eq.s32.totalorder %s18, 7
    %p85 = por %p83, %p84
    %p86 = scmp.ne.s32.totalorder %s75, %s76
    %p87 = scmp.eq.s32.totalorder %s18, 0
    %p88 = por %p86, %p87
    %p89 = scmp.ne.s32.totalorder %s75, %s76
    %p90 = scmp.eq.s32.totalorder %s19, 7
    %p91 = por %p89, %p90
    %p93 = scmp.ne.s32.totalorder %s76, %s92
    %p94 = scmp.eq.s32.totalorder %s19, 0
    %p95 = por %p93, %p94
    %s96 = ssub.s32 %s20, %s39
    %s97 = ssub.s32 %s22, %s31
    %s98 = sor.u32 %s96, %s97
    %p99 = scmp.eq.s32.totalorder %s98, 0
    %s101 = sadd.s32 %s100, 1
    %s102 = scalar_select %p99, %s100, %s101
    %p105 = pneg %p99
    %p106 = scmp.eq.s32.totalorder %s13, 7
    %p107 = por %p105, %p106
    %p108 = scmp.ne.s32.totalorder %s100, %s103
    %p109 = scmp.eq.s32.totalorder %s13, 0
    %p110 = por %p108, %p109
    %p111 = scmp.ne.s32.totalorder %s100, %s103
    %p112 = scmp.eq.s32.totalorder %s18, 7
    %p113 = por %p111, %p112
    %p114 = scmp.ne.s32.totalorder %s103, %s104
    %p115 = scmp.eq.s32.totalorder %s18, 0
    %p116 = por %p114, %p115
    %p117 = scmp.ne.s32.totalorder %s103, %s104
    %p118 = scmp.eq.s32.totalorder %s19, 7
    %p119 = por %p117, %p118
    %p121 = scmp.ne.s32.totalorder %s104, %s120
    %p122 = scmp.eq.s32.totalorder %s19, 0
    %p123 = por %p121, %p122
    %s124 = ssub.s32 %s21, %s35
    %p125 = scmp.eq.s32.totalorder %s124, 0
    %s127 = sadd.s32 %s126, 1
    %s128 = scalar_select %p125, %s126, %s127
    %p131 = pneg %p125
    %p132 = scmp.eq.s32.totalorder %s13, 7
    %p133 = por %p131, %p132
    %p134 = scmp.ne.s32.totalorder %s126, %s129
    %p135 = scmp.eq.s32.totalorder %s13, 0
    %p136 = por %p134, %p135
    %p137 = scmp.ne.s32.totalorder %s126, %s129
    %p138 = scmp.eq.s32.totalorder %s18, 7
    %p139 = por %p137, %p138
    %p140 = scmp.ne.s32.totalorder %s129, %s130
    %p141 = scmp.eq.s32.totalorder %s18, 0
    %p142 = por %p140, %p141
    %p143 = scmp.ne.s32.totalorder %s129, %s130
    %p144 = scmp.eq.s32.totalorder %s19, 7
    %p145 = por %p143, %p144
    %p147 = scmp.ne.s32.totalorder %s130, %s146
    %p148 = scmp.eq.s32.totalorder %s19, 0
    %p149 = por %p147, %p148
    %s150 = ssub.s32 %s21, %s35
    %p151 = scmp.eq.s32.totalorder %s150, 0
    %s153 = sadd.s32 %s152, 1
    %s154 = scalar_select %p151, %s152, %s153
    %p157 = pneg %p151
    %p158 = scmp.eq.s32.totalorder %s13, 7
    %p159 = por %p157, %p158
    %p160 = scmp.ne.s32.totalorder %s152, %s155
    %p161 = scmp.eq.s32.totalorder %s13, 0
    %p162 = por %p160, %p161
    %p163 = scmp.ne.s32.totalorder %s152, %s155
    %p164 = scmp.eq.s32.totalorder %s18, 7
    %p165 = por %p163, %p164
    %p166 = scmp.ne.s32.totalorder %s155, %s156
    %p167 = scmp.eq.s32.totalorder %s18, 0
    %p168 = por %p166, %p167
    %p169 = scmp.ne.s32.totalorder %s155, %s156
    %p170 = scmp.eq.s32.totalorder %s19, 7
    %p171 = por %p169, %p170
    %p173 = scmp.ne.s32.totalorder %s156, %s172
    %p174 = scmp.eq.s32.totalorder %s19, 0
    %p175 = por %p173, %p174
    %s176 = ssub.s32 %s22, %s31
    %p177 = scmp.eq.s32.totalorder %s176, 0
    %s179 = sadd.s32 %s178, 1
    %s180 = scalar_select %p177, %s178, %s179
    %p183 = pneg %p177
    %p184 = scmp.eq.s32.totalorder %s13, 7
    %p185 = por %p183, %p184
    %p186 = scmp.ne.s32.totalorder %s178, %s181
    %p187 = scmp.eq.s32.totalorder %s13, 0
    %p188 = por %p186, %p187
    %p189 = scmp.ne.s32.totalorder %s178, %s181
    %p190 = scmp.eq.s32.totalorder %s18, 7
    %p191 = por %p189, %p190
    %p192 = scmp.ne.s32.totalorder %s181, %s182
    %p193 = scmp.eq.s32.totalorder %s18, 0
    %p194 = por %p192, %p193
    %p195 = scmp.ne.s32.totalorder %s181, %s182
    %p196 = scmp.eq.s32.totalorder %s19, 7
    %p197 = por %p195, %p196
    %p199 = scmp.ne.s32.totalorder %s182, %s198
    %p200 = scmp.eq.s32.totalorder %s19, 0
    %p201 = por %p199, %p200
    %s202 = ssub.s32 %s22, %s31
    %p203 = scmp.eq.s32.totalorder %s202, 0
    %s205 = sadd.s32 %s204, 1
    %s206 = scalar_select %p203, %s204, %s205
    %p209 = pneg %p203
    %p210 = scmp.eq.s32.totalorder %s13, 7
    %p211 = por %p209, %p210
    %p212 = scmp.ne.s32.totalorder %s204, %s207
    %p213 = scmp.eq.s32.totalorder %s13, 0
    %p214 = por %p212, %p213
    %p215 = scmp.ne.s32.totalorder %s204, %s207
    %p216 = scmp.eq.s32.totalorder %s18, 7
    %p217 = por %p215, %p216
    %p218 = scmp.ne.s32.totalorder %s207, %s208
    %p219 = scmp.eq.s32.totalorder %s18, 0
    %p220 = por %p218, %p219
    %p221 = scmp.ne.s32.totalorder %s207, %s208
    %p222 = scmp.eq.s32.totalorder %s19, 7
    %p223 = por %p221, %p222
    %p225 = scmp.ne.s32.totalorder %s208, %s224
    %p226 = scmp.eq.s32.totalorder %s19, 0
    %p227 = por %p225, %p226
    %s228 = ssub.s32 %s20, %s39
    %s229 = ssub.s32 %s21, %s35
    %s230 = sor.u32 %s228, %s229
    %p231 = scmp.eq.s32.totalorder %s230, 0
    %s233 = sadd.s32 %s232, 1
    %s234 = scalar_select %p231, %s232, %s233
    %p237 = pneg %p231
    %p238 = scmp.eq.s32.totalorder %s13, 7
    %p239 = por %p237, %p238
    %p240 = scmp.ne.s32.totalorder %s232, %s235
    %p241 = scmp.eq.s32.totalorder %s13, 0
    %p242 = por %p240, %p241
    %p243 = scmp.ne.s32.totalorder %s232, %s235
    %p244 = scmp.eq.s32.totalorder %s18, 7
    %p245 = por %p243, %p244
    %p246 = scmp.ne.s32.totalorder %s235, %s236
    %p247 = scmp.eq.s32.totalorder %s18, 0
    %p248 = por %p246, %p247
    %p249 = scmp.ne.s32.totalorder %s235, %s236
    %p250 = scmp.eq.s32.totalorder %s19, 7
    %p251 = por %p249, %p250
    %p253 = scmp.ne.s32.totalorder %s236, %s252
    %p254 = scmp.eq.s32.totalorder %s19, 0
    %p255 = por %p253, %p254
    %p256 = scmp.le.s32.totalorder 1, %s13
    %p257 = scmp.lt.s32.totalorder %s13, 9
    %p258 = pnand %p256, %p257
    %p259 = pneg %p258
    // Predicated region
    $region9: #{bartmt_forward.44} parent=5 // pred_check
      _
    $region10: #{bartmt_forward.44} parent=5 // pred_check_branch
      %261 = sbr.rel (%p258) target = $region12
    $region11: #{bartmt_forward.44} parent=5 // pred_region
      %s262 = ssub.s32 %s13, 1
      // Predicated region
      $region13: #{bartmt_forward.44} parent=11 // pred_check
        %p263 = pneg %p142
      $region14: #{bartmt_forward.44} parent=11 // pred_check_branch
        %265 = sbr.rel (%p263) target = $region16
      $region15: #{bartmt_forward.44} parent=11 // pred_region
        %p266 = scmp.lt.s32.totalorder %s24, 0
        %s267 = scalar_select %p266, %s24, 0
        %s268 = smul.addr %s267, 8
        %s269 = scalar_lea.vmem %s3, %s268
      $region16: #{bartmt_forward.44} parent=11 // pred_fallthru
        _
      // Predicated region
      $region17: #{bartmt_forward.44} parent=11 // pred_check
        %p270 = pneg %p168
      $region18: #{bartmt_forward.44} parent=11 // pred_check_branch
        %272 = sbr.rel (%p270) target = $region20
      $region19: #{bartmt_forward.44} parent=11 // pred_region
        %p273 = scmp.lt.s32.totalorder %s24, 0
        %s274 = scalar_select %p273, %s24, 0
        %s275 = smul.addr %s274, 8
        %s276 = scalar_lea.vmem %s4, %s275
      $region20: #{bartmt_forward.44} parent=11 // pred_fallthru
        _
      // Predicated region
      $region21: #{bartmt_forward.44} parent=11 // pred_check
        %p277 = pneg %p194
      $region22: #{bartmt_forward.44} parent=11 // pred_check_branch
        %279 = sbr.rel (%p277) target = $region24
      $region23: #{bartmt_forward.44} parent=11 // pred_region
        %p280 = scmp.lt.s32.totalorder %s25, 0
        %s281 = scalar_select %p280, %s25, 0
        %s282 = smul.addr %s281, 8
        %s283 = scalar_lea.vmem %s5, %s282
      $region24: #{bartmt_forward.44} parent=11 // pred_fallthru
        _
      // Predicated region
      $region25: #{bartmt_forward.44} parent=11 // pred_check
        %p284 = pneg %p220
      $region26: #{bartmt_forward.44} parent=11 // pred_check_branch
        %286 = sbr.rel (%p284) target = $region28
      $region27: #{bartmt_forward.44} parent=11 // pred_region
        %p287 = scmp.lt.s32.totalorder %s25, 0
        %s288 = scalar_select %p287, %s25, 0
        %s289 = smul.addr %s288, 8
        %s290 = scalar_lea.vmem %s6, %s289
      $region28: #{bartmt_forward.44} parent=11 // pred_fallthru
        _
    $region12: #{bartmt_forward.44} parent=5 // pred_fallthru
      _
    %p291 = scmp.lt.s32.totalorder %s13, 8
    // Predicated region
    $region29: #{bartmt_forward.44} parent=5 // pred_check
      %p292 = pneg %p291
    $region30: #{bartmt_forward.44} parent=5 // pred_check_branch
      %294 = sbr.rel (%p292) target = $region32
    $region31: #{bartmt_forward.44} parent=5 // pred_region
      // Predicated region
      $region33: #{bartmt_forward.44} parent=31 // pred_check
        %p295 = pneg %p54
      $region34: #{bartmt_forward.44} parent=31 // pred_check_branch
        %297 = sbr.rel (%p295) target = $region36
      $region35: #{bartmt_forward.44} parent=31 // pred_region
        %p298 = scmp.lt.s32.totalorder %s20, 7
        %s299 = scalar_select %p298, %s20, 7
        %p300 = scmp.lt.s32.totalorder %s21, 0
        %s301 = scalar_select %p300, %s21, 0
        %s302 = sadd.s32 %s301, %s299
        %s303 = smul.addr %s302, 4
        %s304 = scalar_lea.vmem %s0, %s303
      $region36: #{bartmt_forward.44} parent=31 // pred_fallthru
        _
      // Predicated region
      $region37: #{bartmt_forward.44} parent=31 // pred_check
        %p305 = pneg %p82
      $region38: #{bartmt_forward.44} parent=31 // pred_check_branch
        %307 = sbr.rel (%p305) target = $region40
      $region39: #{bartmt_forward.44} parent=31 // pred_region
        %p308 = scmp.lt.s32.totalorder %s20, 7
        %s309 = scalar_select %p308, %s20, 7
        %p310 = scmp.lt.s32.totalorder %s22, 0
        %s311 = scalar_select %p310, %s22, 0
        %s312 = sadd.s32 %s311, %s309
        %s313 = smul.addr %s312, 4
        %s314 = scalar_lea.vmem %s1, %s313
      $region40: #{bartmt_forward.44} parent=31 // pred_fallthru
        _
      // Predicated region
      $region41: #{bartmt_forward.44} parent=31 // pred_check
        %p315 = pneg %p110
      $region42: #{bartmt_forward.44} parent=31 // pred_check_branch
        %317 = sbr.rel (%p315) target = $region44
      $region43: #{bartmt_forward.44} parent=31 // pred_region
        %p318 = scmp.lt.s32.totalorder %s20, 7
        %s319 = scalar_select %p318, %s20, 7
        %p320 = scmp.lt.s32.totalorder %s22, 0
        %s321 = scalar_select %p320, %s22, 0
        %s322 = sadd.s32 %s321, %s319
        %s323 = smul.addr %s322, 4
        %s324 = scalar_lea.vmem %s2, %s323
      $region44: #{bartmt_forward.44} parent=31 // pred_fallthru
        _
    $region32: #{bartmt_forward.44} parent=5 // pred_fallthru
      _
    %p325 = scmp.le.s32.totalorder 1, %s13
    %p326 = scmp.lt.s32.totalorder %s13, 9
    %p327 = pnand %p325, %p326
    %p328 = pneg %p327
    // Predicated region
    $region45: #{bartmt_forward.44} parent=5 // pred_check
      _
    $region46: #{bartmt_forward.44} parent=5 // pred_check_branch
      %330 = sbr.rel (%p327) target = $region48
    $region47: #{bartmt_forward.44} parent=5 // pred_region
      %s331 = ssub.s32 %s13, 1
      %p332 = scmp.lt.s32.totalorder %s23, 7
      %s333 = scalar_select %p332, %s23, 7
      %p334 = scmp.lt.s32.totalorder %s24, 0
      %s335 = scalar_select %p334, %s24, 0
      %s336 = sadd.s32 %s335, %s333
      %s337 = smul.addr %s336, 4
      %s338 = scalar_lea.vmem %s0, %s337
      %p339 = pneg %p60
      %p340 = pneg %p57
      %p341 = scmp.lt.s32.totalorder %s23, 7
      %s342 = scalar_select %p341, %s23, 7
      %p343 = scmp.lt.s32.totalorder %s25, 0
      %s344 = scalar_select %p343, %s25, 0
      %s345 = sadd.s32 %s344, %s342
      %s346 = smul.addr %s345, 4
      %s347 = scalar_lea.vmem %s1, %s346
      %p348 = pneg %p88
      %p349 = pneg %p85
      %p350 = scmp.lt.s32.totalorder %s23, 7
      %s351 = scalar_select %p350, %s23, 7
      %p352 = scmp.lt.s32.totalorder %s25, 0
      %s353 = scalar_select %p352, %s25, 0
      %s354 = sadd.s32 %s353, %s351
      %s355 = smul.addr %s354, 4
      %s356 = scalar_lea.vmem %s2, %s355
      %p357 = pneg %p116
      %p358 = pneg %p113
      %p359 = scmp.lt.s32.totalorder %s24, 0
      %s360 = scalar_select %p359, %s24, 0
      %s361 = smul.addr %s360, 8
      %s362 = scalar_lea.vmem %s3, %s361
      %p363 = pneg %p142
      %p364 = pneg %p139
      %p365 = scmp.lt.s32.totalorder %s24, 0
      %s366 = scalar_select %p365, %s24, 0
      %s367 = smul.addr %s366, 8
      %s368 = scalar_lea.vmem %s4, %s367
      %p369 = pneg %p168
      %p370 = pneg %p165
      %p371 = scmp.lt.s32.totalorder %s25, 0
      %s372 = scalar_select %p371, %s25, 0
      %s373 = smul.addr %s372, 8
      %s374 = scalar_lea.vmem %s5, %s373
      %p375 = pneg %p194
      %p376 = pneg %p191
      %p377 = scmp.lt.s32.totalorder %s25, 0
      %s378 = scalar_select %p377, %s25, 0
      %s379 = smul.addr %s378, 8
      %s380 = scalar_lea.vmem %s6, %s379
      %p381 = pneg %p220
      %p382 = pneg %p217
      %p383 = pneg %p248
      %p384 = pneg %p245
      %p385 = scmp.lt.s32.totalorder %s23, 7
      %s386 = scalar_select %p385, %s23, 7
      %p387 = scmp.lt.s32.totalorder %s24, 0
      %s388 = scalar_select %p387, %s24, 0
      %s389 = sadd.s32 %s388, %s386
      %s390 = smul.addr %s389, 4
      %s391 = scalar_lea.vmem %s7, %s390
      %p392 = scmp.lt.s32.totalorder %s23, 7
      %s393 = scalar_select %p392, %s23, 7
      %p394 = scmp.lt.s32.totalorder %s24, 0
      %s395 = scalar_select %p394, %s24, 0
      %s396 = sadd.s32 %s395, %s393
      %s397 = smul.addr %s396, 4
      %s398 = scalar_lea.vmem %s0, %s397
      %p399 = scmp.lt.s32.totalorder %s23, 7
      %s400 = scalar_select %p399, %s23, 7
      %p401 = scmp.lt.s32.totalorder %s25, 0
      %s402 = scalar_select %p401, %s25, 0
      %s403 = sadd.s32 %s402, %s400
      %s404 = smul.addr %s403, 4
      %s405 = scalar_lea.vmem %s1, %s404
      %p406 = scmp.lt.s32.totalorder %s23, 7
      %s407 = scalar_select %p406, %s23, 7
      %p408 = scmp.lt.s32.totalorder %s25, 0
      %s409 = scalar_select %p408, %s25, 0
      %s410 = sadd.s32 %s409, %s407
      %s411 = smul.addr %s410, 4
      %s412 = scalar_lea.vmem %s2, %s411
      %p413 = scmp.lt.s32.totalorder %s24, 0
      %s414 = scalar_select %p413, %s24, 0
      %s415 = smul.addr %s414, 8
      %s416 = scalar_lea.vmem %s3, %s415
      %p417 = scmp.lt.s32.totalorder %s24, 0
      %s418 = scalar_select %p417, %s24, 0
      %s419 = smul.addr %s418, 8
      %s420 = scalar_lea.vmem %s4, %s419
      %p421 = scmp.lt.s32.totalorder %s25, 0
      %s422 = scalar_select %p421, %s25, 0
      %s423 = smul.addr %s422, 8
      %s424 = scalar_lea.vmem %s5, %s423
      %p425 = scmp.lt.s32.totalorder %s25, 0
      %s426 = scalar_select %p425, %s25, 0
      %s427 = smul.addr %s426, 8
      %s428 = scalar_lea.vmem %s6, %s427
      %p429 = scmp.lt.s32.totalorder %s23, 7
      %s430 = scalar_select %p429, %s23, 7
      %p431 = scmp.lt.s32.totalorder %s24, 0
      %s432 = scalar_select %p431, %s24, 0
      %s433 = sadd.s32 %s432, %s430
      %s434 = smul.addr %s433, 4
      %s435 = scalar_lea.vmem %s7, %s434
      %p437 = scmp.eq.s32.totalorder %s25, 0
      // Predicated region
      $region49: #{bartmt_forward.44} parent=47 // pred_check
        %p438 = pneg %p437
      $region50: #{bartmt_forward.44} parent=47 // pred_check_branch
        %440 = sbr.rel (%p438) target = $region52
      $region51: #{bartmt_forward.44} parent=47 // pred_region
        %vm441 = vcmask 7168
        %442 = vst.msk [vmem:[#allocation2] sm:$0xff] %vm441, -inf
        %443 = vst.msk [vmem:[#allocation3] sm:$0xff] %vm441, 0.0
        %vm444 = vcmask 64512
        %445 = vst.msk [vmem:[#allocation4] sm:$0xff] %vm444, 0.0
        %v446 = vld [vmem:[%s398] sm:$0xf]
        %v447 = vunpack.c.l.bf16 %v446
        %v448 = vld [vmem:[%s416] sm:$0xff]
        %v449 = vld [vmem:[%s420] sm:$0xff]
        %v450 = vsub.f32 0.0, %v447
        %452 = vrot.lane.b32.xlu0 %v450, 124
        %v453 = vpop.permute.xlu0 %452
        %456 = vrot.lane.b32.xlu0 %v447, 4
        %v457 = vpop.permute.xlu0 %456
        %vm459 = vcmask 31744
        %v460 = vsel %vm459, %v453, %v457
        %v461 = vmul.f32 %v447, %v448
        %v462 = vmul.f32 %v460, %v449
        %v463 = vadd.f32 %v461, %v462
        %v464 = vmul.f32 %v463, 0.35355338
        %v465 = vpack.c.bf16 %v464, %v464
        %vm466 = vcmask 60416
        %467 = vst.msk [vmem:[#allocation5] sm:$0xf] %vm466, %v465
      $region52: #{bartmt_forward.44} parent=47 // pred_fallthru
        _
      %s468 = smul.u32 %s25, 8
      %s469 = smul.u32 %s24, 8
      %s470 = sadd.s32 %s469, 7
      %p471 = scmp.le.s32.totalorder %s468, %s470
      // Predicated region
      $region53: #{bartmt_forward.44} parent=47 // pred_check
        %p472 = pneg %p471
      $region54: #{bartmt_forward.44} parent=47 // pred_check_branch
        %474 = sbr.rel (%p472) target = $region56
      $region55: #{bartmt_forward.44} parent=47 // pred_region
        %v475 = vld [vmem:[%s405] sm:$0xf]
        %v476 = vunpack.c.l.bf16 %v475
        %v477 = vld [vmem:[%s424] sm:$0xff]
        %v478 = vld [vmem:[%s428] sm:$0xff]
        %v479 = vsub.f32 0.0, %v476
        %481 = vrot.lane.b32.xlu0 %v479, 124
        %v482 = vpop.permute.xlu0 %481
        %485 = vrot.lane.b32.xlu0 %v476, 4
        %v486 = vpop.permute.xlu0 %485
        %vm488 = vcmask 31744
        %v489 = vsel %vm488, %v482, %v486
        %v490 = vmul.f32 %v476, %v477
        %v491 = vmul.f32 %v489, %v478
        %v492 = vadd.f32 %v490, %v491
        %v493 = vpack.c.bf16 %v492, %v492
        %v494 = vld [vmem:[%s412] sm:$0xf]
        %v495 = vld [vmem:[#allocation5] sm:$0xf]
        %vm496 = vcmask 64512
        %v498 = vsel %vm496, %v495, 0
        %v501 = vsel %vm496, %v493, 0
        %503 = vmatpush.bf16.xpose.msra.mxu0 0
        %504 = vmatpush.bf16.xpose.msra.mxu0 0
        %505 = vmatpush.bf16.xpose.msra.mxu0 0
        %506 = vmatpush.bf16.xpose.msra.mxu0 0
        %507 = vmatpush.bf16.xpose.msra.mxu0 0
        %508 = vmatpush.bf16.xpose.msra.mxu0 0
        %509 = vmatpush.bf16.xpose.msra.mxu0 0
        %510 = vmatpush.bf16.xpose.msra.mxu0 %v501
        %511 = vmatmul.bf16.gmra.mxu0 %v498
        %v512 = vpop.f32.mrf.mxu0
        %v513 = vadd.f32 0.0, %v512
        %v514 = vpop.f32.mrf.mxu0
        %515 = vdwg.mxu0
        %v516 = vlaneseq
        %v517 = vshrl.u32 %v516, 7
        %v518 = vstv %s469
        %v519 = vadd.s32 %v518, %v517
        %v520 = vlaneseq
        %v521 = vand.u32 %v520, 127
        %v522 = vstv %s468
        %v523 = vadd.s32 %v522, %v521
        %vm524 = vcmp.le.s32.totalorder %v523, %v519
        %v525 = vsel %vm524, %v513, -1e+09
        %v526 = vld [vmem:[#allocation2] sm:$0xff]
        %v527 = vsel %vm496, %v525, -inf
        %528 = vmax.xlane.f32.xlu0 %v527
        %v529 = vpop.xlane.xlu0 %528
        %v530 = vmax.f32 %v526, %v529
        %v531 = vsub.f32 %v526, %v530
        %v532 = vmul.f32 %v531, 1.442695
        %v533 = vpow.pop %v532
        %535 = vset.pattern.permute.xlu0 0
        %536 = vperm.xlu0 %535, %v530
        %v537 = vpop.permute.xlu0 %536
        %v539 = vsub.f32 %v525, %v537
        %v540 = vmul.f32 %v539, 1.442695
        %v541 = vpow.pop %v540
        %v542 = vld [vmem:[#allocation3] sm:$0xff]
        %v543 = vmul.f32 %v533, %v542
        %v544 = vsel %vm496, %v541, 0.0
        %545 = vadd.xlane.f32.xlu0 %v544
        %v546 = vpop.xlane.xlu0 %545
        %v547 = vadd.f32 %v543, %v546
        %vm548 = vcmask 7168
        %549 = vst.msk [vmem:[#allocation3] sm:$0xff] %vm548, %v547
        %v550 = vld [vmem:[#allocation4] sm:$0xff]
        %552 = vset.pattern.permute.xlu0 0
        %553 = vperm.xlu0 %552, %v533
        %v554 = vpop.permute.xlu0 %553
        %v556 = vmul.f32 %v554, %v550
        %v557 = vpack.c.bf16 %v541, %v541
        %v559 = vsel %vm496, %v557, 0
        %vm561 = vcmask 1043456
        %v563 = vsel %vm561, %v494, 0
        %565 = vmatpush.bf16.msra.mxu0 0
        %566 = vmatpush.bf16.msra.mxu0 0
        %567 = vmatpush.bf16.msra.mxu0 0
        %568 = vmatpush.bf16.msra.mxu0 0
        %569 = vmatpush.bf16.msra.mxu0 0
        %570 = vmatpush.bf16.msra.mxu0 0
        %571 = vmatpush.bf16.msra.mxu0 0
        %572 = vmatpush.bf16.msra.mxu0 %v563
        %573 = vmatmul.bf16.gmra.mxu0 %v559
        %v574 = vpop.f32.mrf.mxu0
        %v575 = vadd.f32 0.0, %v574
        %v576 = vpop.f32.mrf.mxu0
        %577 = vdwg.mxu0
        %v578 = vadd.f32 %v556, %v575
        %579 = vst.msk [vmem:[#allocation4] sm:$0xff] %vm496, %v578
        %580 = vst.msk [vmem:[#allocation2] sm:$0xff] %vm548, %v530
      $region56: #{bartmt_forward.44} parent=47 // pred_fallthru
        _
      // Predicated region
      $region57: #{bartmt_forward.44} parent=47 // pred_check
        %p581 = pneg %p437
      $region58: #{bartmt_forward.44} parent=47 // pred_check_branch
        %583 = sbr.rel (%p581) target = $region60
      $region59: #{bartmt_forward.44} parent=47 // pred_region
        %v584 = vld [vmem:[#allocation3] sm:$0xff]
        %v585 = vrcp.pop %v584
        %v586 = vld [vmem:[#allocation4] sm:$0xff]
        %588 = vset.pattern.permute.xlu0 0
        %589 = vperm.xlu0 %588, %v585
        %v590 = vpop.permute.xlu0 %589
        %v592 = vmul.f32 %v586, %v590
        %v593 = vpack.c.bf16 %v592, %v592
        %vm594 = vcmask 60416
        %595 = vst.msk [vmem:[%s435] sm:$0xf] %vm594, %v593
      $region60: #{bartmt_forward.44} parent=47 // pred_fallthru
        _
      %p596 = scmp.lt.s32.totalorder %s23, 7
      %s597 = scalar_select %p596, %s23, 7
      %p598 = scmp.lt.s32.totalorder %s24, 0
      %s599 = scalar_select %p598, %s24, 0
      %s600 = sadd.s32 %s599, %s597
      %s601 = smul.addr %s600, 4
      %s602 = scalar_lea.vmem %s7, %s601
      // Predicated region
      $region61: #{bartmt_forward.44} parent=47 // pred_check
        %p603 = pneg %p245
      $region62: #{bartmt_forward.44} parent=47 // pred_check_branch
        %605 = sbr.rel (%p603) target = $region64
      $region63: #{bartmt_forward.44} parent=47 // pred_region
        _
      $region64: #{bartmt_forward.44} parent=47 // pred_fallthru
        _
    $region48: #{bartmt_forward.44} parent=5 // pred_fallthru
      _
    %p606 = scmp.le.s32.totalorder 2, %s13
    // Predicated region
    $region65: #{bartmt_forward.44} parent=5 // pred_check
      %p607 = pneg %p606
    $region66: #{bartmt_forward.44} parent=5 // pred_check_branch
      %609 = sbr.rel (%p607) target = $region68
    $region67: #{bartmt_forward.44} parent=5 // pred_region
      %s610 = ssub.s32 %s13, 2
      // Predicated region
      $region69: #{bartmt_forward.44} parent=67 // pred_check
        %p611 = pneg %p251
      $region70: #{bartmt_forward.44} parent=67 // pred_check_branch
        %613 = sbr.rel (%p611) target = $region72
      $region71: #{bartmt_forward.44} parent=67 // pred_region
        %p614 = scmp.lt.s32.totalorder %s26, 7
        %s615 = scalar_select %p614, %s26, 7
        %p616 = scmp.lt.s32.totalorder %s27, 0
        %s617 = scalar_select %p616, %s27, 0
        %s618 = sadd.s32 %s617, %s615
        %s619 = smul.addr %s618, 4
        %s620 = scalar_lea.vmem %s7, %s619
      $region72: #{bartmt_forward.44} parent=67 // pred_fallthru
        _
    $region68: #{bartmt_forward.44} parent=5 // pred_fallthru
      _
  $region6: #{bartmt_forward.44} parent=0 // loop_footer
    %s17 = sadd.s32 1, %s13
  $region7: #{bartmt_forward.44} parent=0 // loop_footer_branch
    %12 = sbr.rel target = $region3
  $region8: #{bartmt_forward.44} parent=0 // loop_exit
    _

// kernel: bartmt_forward.43
$region0: #{bartmt_forward.43}
  #allocation0 [shape = 'u32[]', space=smem, size = 0x4, offset = 0x4, fixed_abs, tag = 'smem constant byte address 0x4 - core index']
  #allocation1 [shape = 'u32[72,128]{1,0:T(1,128)}', space=vmem, size = 0x9000, scoped, tag = 'internal scratch']
  #allocation2 [shape = 'bf16[16,32]{1,0:T(8,128)(2,1)}', space=vmem, size = 0x1000, scoped, tag = 'scratch operand']
  %s0 = inlined_call_operand.vmem [shape: bf16[16,32], index: 0, kind: input, shape index: {}]
  %s1 = inlined_call_operand.vmem [shape: f32[1,32], index: 1, kind: input, shape index: {}]
  %s2 = inlined_call_operand.vmem [shape: bf16[32,96], index: 2, kind: input, shape index: {}]
  %s3 = inlined_call_operand.vmem [shape: bf16[16,96], index: 3, kind: output, shape index: {}]
  %s4 = sld [smem:[#allocation0]]
  $region26: #{bartmt_forward.43} parent=0
    _
  %s6 = ssub.s32 1, %s4
  %s7 = scalar_select 0, %s6, %s4
  // Predicated region
  $region2: #{bartmt_forward.43} parent=0 // pred_check
    _
  $region3: #{bartmt_forward.43} parent=0 // pred_check_branch
    %9 = sbr.rel (0) target = $region5
  $region4: #{bartmt_forward.43} parent=0 // pred_region
    _
  $region5: #{bartmt_forward.43} parent=0 // pred_fallthru
    _
  // Predicated region
  $region6: #{bartmt_forward.43} parent=0 // pred_check
    _
  $region7: #{bartmt_forward.43} parent=0 // pred_check_branch
    %11 = sbr.rel (0) target = $region9
  $region8: #{bartmt_forward.43} parent=0 // pred_region
    _
  $region9: #{bartmt_forward.43} parent=0 // pred_fallthru
    _
  // Predicated region
  $region10: #{bartmt_forward.43} parent=0 // pred_check
    _
  $region11: #{bartmt_forward.43} parent=0 // pred_check_branch
    %13 = sbr.rel (0) target = $region13
  $region12: #{bartmt_forward.43} parent=0 // pred_region
    _
  $region13: #{bartmt_forward.43} parent=0 // pred_fallthru
    _
  %p15 = scmp.eq.s32.totalorder 0, 0
  // Predicated region
  $region14: #{bartmt_forward.43} parent=0 // pred_check
    %p16 = pneg %p15
  $region15: #{bartmt_forward.43} parent=0 // pred_check_branch
    %18 = sbr.rel (%p16) target = $region17
  $region16: #{bartmt_forward.43} parent=0 // pred_region
    %v19 = vld [vmem:[%s0] sm:$0xf]
    %v20 = vld [vmem:[%s0 + $0x4] sm:$0xf]
    %v21 = vunpack.c.l.bf16 %v19
    %v22 = vunpack.c.l.bf16 %v20
    %v23 = vmul.f32 %v21, %v21
    %v24 = vmul.f32 %v22, %v22
    %vm25 = vcmask 261120
    %v26 = vsel %vm25, %v23, 0.0
    %27 = vadd.xlane.f32.xlu0 %v26
    %v28 = vpop.xlane.xlu0 %27
    %v29 = vsel %vm25, %v24, 0.0
    %30 = vadd.xlane.f32.xlu0 %v29
    %v31 = vpop.xlane.xlu0 %30
    %v32 = vrcp.pop 32.0
    %v33 = vmul.f32 32.0, %v32
    %v34 = vsub.f32 1.0, %v33
    %v35 = vmul.f32 %v32, %v34
    %v36 = vadd.f32 %v32, %v35
    %vm37 = vweird.f32 %v32
    %v38 = vsel %vm37, %v32, %v36
    %v39 = vmul.f32 %v28, %v38
    %v40 = vmul.f32 %v31, %v38
    %v41 = vadd.f32 %v39, 1e-06
    %v42 = vadd.f32 %v40, 1e-06
    %v43 = vrsqrt.pop %v41
    %v44 = vmul.f32 %v43, %v41
    %v45 = vmul.f32 %v44, %v43
    %v46 = vmul.f32 0.5, %v45
    %v47 = vsub.f32 1.5, %v46
    %v48 = vmul.f32 %v43, %v47
    %vm49 = vweird.f32 %v41
    %vm50 = vweird.f32 %v43
    %vm51 = vmor %vm49, %vm50
    %v52 = vsel %vm51, %v43, %v48
    %v53 = vrsqrt.pop %v42
    %v54 = vmul.f32 %v53, %v42
    %v55 = vmul.f32 %v54, %v53
    %v56 = vmul.f32 0.5, %v55
    %v57 = vsub.f32 1.5, %v56
    %v58 = vmul.f32 %v53, %v57
    %vm59 = vweird.f32 %v42
    %vm60 = vweird.f32 %v53
    %vm61 = vmor %vm59, %vm60
    %v62 = vsel %vm61, %v53, %v58
    %v63 = vmul.f32 %v21, %v52
    %v64 = vmul.f32 %v22, %v62
    %v65 = vld [vmem:[%s1] sm:$0x1]
    %v67 = vperm.slane %v65, 0
    %v69 = vmul.f32 %v63, %v67
    %v70 = vmul.f32 %v64, %v67
    %v71 = vpack.c.bf16 %v69, %v69
    %v72 = vpack.c.bf16 %v70, %v70
    %vm73 = vcmask 257024
    %74 = vst.msk [vmem:[#allocation2] sm:$0xf] %vm73, %v71
    %75 = vst.msk [vmem:[#allocation2 + $0x4] sm:$0xf] %vm73, %v72
  $region17: #{bartmt_forward.43} parent=0 // pred_fallthru
    _
  %v76 = vld [vmem:[#allocation2] sm:$0xf]
  %v77 = vld [vmem:[#allocation2 + $0x4] sm:$0xf]
  %v78 = vld [vmem:[%s2] sm:$0xf]
  %v79 = vld [vmem:[%s2 + $0x4] sm:$0xf]
  %v80 = vld [vmem:[%s2 + $0x8] sm:$0xf]
  %v81 = vld [vmem:[%s2 + $0xc] sm:$0xf]
  %v84 = vunpack.c.l.b16 %v76
  %v85 = vunpack.c.l.b16 %v77
  %v86 = vpack.c.b16 %v85, %v84
  %v91 = vunpack.c.l.b16 %v78
  %v92 = vunpack.c.l.b16 %v79
  %v93 = vunpack.c.l.b16 %v80
  %v94 = vunpack.c.l.b16 %v81
  %v95 = vpack.c.b16 %v92, %v91
  %v96 = vpack.c.b16 %v94, %v93
  %vm99 = vcmask 261120
  %v101 = vsel %vm99, %v86, 0
  %103 = vmatpush.bf16.msra.mxu0 0
  %104 = vmatpush.bf16.msra.mxu0 0
  %105 = vmatpush.bf16.msra.mxu0 0
  %106 = vmatpush.bf16.msra.mxu0 0
  %107 = vmatpush.bf16.msra.mxu0 0
  %108 = vmatpush.bf16.msra.mxu0 0
  %109 = vmatpush.bf16.msra.mxu0 %v96
  %110 = vmatpush.bf16.msra.mxu0 %v95
  %111 = vmatmul.bf16.gmra.mxu0 %v101
  %v112 = vpop.f32.mrf.mxu0
  %v113 = vadd.f32 0.0, %v112
  %v114 = vpop.f32.mrf.mxu0
  %v115 = vadd.f32 0.0, %v114
  %116 = vdwg.mxu0
  %v117 = vpack.c.bf16 %v113, %v113
  %v118 = vpack.c.bf16 %v115, %v115
  %vm119 = vcmask 781312
  %120 = vst.msk [vmem:[%s3] sm:$0xf] %vm119, %v117
  %121 = vst.msk [vmem:[%s3 + $0x4] sm:$0xf] %vm119, %v118
  // Predicated region
  $region18: #{bartmt_forward.43} parent=0 // pred_check
    _
  $region19: #{bartmt_forward.43} parent=0 // pred_check_branch
    %123 = sbr.rel (0) target = $region21
  $region20: #{bartmt_forward.43} parent=0 // pred_region
    _
  $region21: #{bartmt_forward.43} parent=0 // pred_fallthru
    _
  // Predicated region
  $region22: #{bartmt_forward.43} parent=0 // pred_check
    _
  $region23: #{bartmt_forward.43} parent=0 // pred_check_branch
    %125 = sbr.rel (0) target = $region25
  $region24: #{bartmt_forward.43} parent=0 // pred_region
    _
  $region25: #{bartmt_forward.43} parent=0 // pred_fallthru
    _

// kernel: bartmt_forward.45
$region0: #{bartmt_forward.45}
  #allocation0 [shape = 'u32[]', space=smem, size = 0x4, offset = 0x4, fixed_abs, tag = 'smem constant byte address 0x4 - core index']
  #allocation1 [shape = 'u32[72,128]{1,0:T(1,128)}', space=vmem, size = 0x9000, scoped, tag = 'internal scratch']
  #allocation2 [shape = 'f32[16,32]{1,0:T(8,128)}', space=vmem, size = 0x2000, scoped, tag = 'scratch operand']
  %s0 = inlined_call_operand.vmem [shape: bf16[16,32], index: 0, kind: input, shape index: {}]
  %s1 = inlined_call_operand.vmem [shape: bf16[32,32], index: 1, kind: input, shape index: {}]
  %s2 = inlined_call_operand.vmem [shape: bf16[16,32], index: 2, kind: input, shape index: {}]
  %s3 = inlined_call_operand.vmem [shape: bf16[16,32], index: 3, kind: output, shape index: {}]
  %s4 = sld [smem:[#allocation0]]
  $region30: #{bartmt_forward.45} parent=0
    _
  %s6 = ssub.s32 1, %s4
  %s7 = scalar_select 0, %s6, %s4
  // Predicated region
  $region2: #{bartmt_forward.45} parent=0 // pred_check
    _
  $region3: #{bartmt_forward.45} parent=0 // pred_check_branch
    %9 = sbr.rel (0) target = $region5
  $region4: #{bartmt_forward.45} parent=0 // pred_region
    _
  $region5: #{bartmt_forward.45} parent=0 // pred_fallthru
    _
  // Predicated region
  $region6: #{bartmt_forward.45} parent=0 // pred_check
    _
  $region7: #{bartmt_forward.45} parent=0 // pred_check_branch
    %11 = sbr.rel (0) target = $region9
  $region8: #{bartmt_forward.45} parent=0 // pred_region
    _
  $region9: #{bartmt_forward.45} parent=0 // pred_fallthru
    _
  // Predicated region
  $region10: #{bartmt_forward.45} parent=0 // pred_check
    _
  $region11: #{bartmt_forward.45} parent=0 // pred_check_branch
    %13 = sbr.rel (0) target = $region13
  $region12: #{bartmt_forward.45} parent=0 // pred_region
    _
  $region13: #{bartmt_forward.45} parent=0 // pred_fallthru
    _
  %p15 = scmp.eq.s32.totalorder 0, 0
  // Predicated region
  $region14: #{bartmt_forward.45} parent=0 // pred_check
    %p16 = pneg %p15
  $region15: #{bartmt_forward.45} parent=0 // pred_check_branch
    %18 = sbr.rel (%p16) target = $region17
  $region16: #{bartmt_forward.45} parent=0 // pred_region
    %vm19 = vcmask 261120
    %20 = vst.msk [vmem:[#allocation2] sm:$0xff] %vm19, 0.0
    %21 = vst.msk [vmem:[#allocation2 + $0x8] sm:$0xff] %vm19, 0.0
  $region17: #{bartmt_forward.45} parent=0 // pred_fallthru
    _
  %v22 = vld [vmem:[#allocation2] sm:$0xff]
  %v23 = vld [vmem:[#allocation2 + $0x8] sm:$0xff]
  %v24 = vld [vmem:[%s0] sm:$0xf]
  %v25 = vld [vmem:[%s0 + $0x4] sm:$0xf]
  %v26 = vld [vmem:[%s1] sm:$0xf]
  %v27 = vld [vmem:[%s1 + $0x4] sm:$0xf]
  %v28 = vld [vmem:[%s1 + $0x8] sm:$0xf]
  %v29 = vld [vmem:[%s1 + $0xc] sm:$0xf]
  %v32 = vunpack.c.l.b16 %v24
  %v33 = vunpack.c.l.b16 %v25
  %v34 = vpack.c.b16 %v33, %v32
  %v39 = vunpack.c.l.b16 %v26
  %v40 = vunpack.c.l.b16 %v27
  %v41 = vunpack.c.l.b16 %v28
  %v42 = vunpack.c.l.b16 %v29
  %v43 = vpack.c.b16 %v40, %v39
  %v44 = vpack.c.b16 %v42, %v41
  %vm47 = vcmask 261120
  %v49 = vsel %vm47, %v34, 0
  %51 = vmatpush.bf16.msra.mxu0 0
  %52 = vmatpush.bf16.msra.mxu0 0
  %53 = vmatpush.bf16.msra.mxu0 0
  %54 = vmatpush.bf16.msra.mxu0 0
  %55 = vmatpush.bf16.msra.mxu0 0
  %56 = vmatpush.bf16.msra.mxu0 0
  %57 = vmatpush.bf16.msra.mxu0 %v44
  %58 = vmatpush.bf16.msra.mxu0 %v43
  %59 = vmatmul.bf16.gmra.mxu0 %v49
  %v60 = vpop.f32.mrf.mxu0
  %v61 = vadd.f32 0.0, %v60
  %v62 = vpop.f32.mrf.mxu0
  %v63 = vadd.f32 0.0, %v62
  %64 = vdwg.mxu0
  %v65 = vadd.f32 %v22, %v61
  %v66 = vadd.f32 %v23, %v63
  %67 = vst.msk [vmem:[#allocation2] sm:$0xff] %vm47, %v65
  %68 = vst.msk [vmem:[#allocation2 + $0x8] sm:$0xff] %vm47, %v66
  // Predicated region
  $region18: #{bartmt_forward.45} parent=0 // pred_check
    %p69 = pneg %p15
  $region19: #{bartmt_forward.45} parent=0 // pred_check_branch
    %71 = sbr.rel (%p69) target = $region21
  $region20: #{bartmt_forward.45} parent=0 // pred_region
    %v72 = vld [vmem:[#allocation2] sm:$0xff]
    %v73 = vld [vmem:[#allocation2 + $0x8] sm:$0xff]
    %v74 = vld [vmem:[%s2] sm:$0xf]
    %v75 = vld [vmem:[%s2 + $0x4] sm:$0xf]
    %v76 = vunpack.c.l.bf16 %v74
    %v77 = vunpack.c.l.bf16 %v75
    %v78 = vadd.f32 %v72, %v76
    %v79 = vadd.f32 %v73, %v77
    %v80 = vpack.c.bf16 %v78, %v78
    %v81 = vpack.c.bf16 %v79, %v79
    %vm82 = vcmask 257024
    %83 = vst.msk [vmem:[%s3] sm:$0xf] %vm82, %v80
    %84 = vst.msk [vmem:[%s3 + $0x4] sm:$0xf] %vm82, %v81
  $region21: #{bartmt_forward.45} parent=0 // pred_fallthru
    _
  // Predicated region
  $region22: #{bartmt_forward.45} parent=0 // pred_check
    _
  $region23: #{bartmt_forward.45} parent=0 // pred_check_branch
    %86 = sbr.rel (0) target = $region25
  $region24: #{bartmt_forward.45} parent=0 // pred_region
    _
  $region25: #{bartmt_forward.45} parent=0 // pred_fallthru
    _
  // Predicated region
  $region26: #{bartmt_forward.45} parent=0 // pred_check
    _
  $region27: #{bartmt_forward.45} parent=0 // pred_check_branch
    %88 = sbr.rel (0) target = $region29
  $region28: #{bartmt_forward.45} parent=0 // pred_region
    _
  $region29: #{bartmt_forward.45} parent=0 // pred_fallthru
    _

// kernel: bartmt_forward.46
$region0: #{bartmt_forward.46}
  #allocation0 [shape = 'u32[]', space=smem, size = 0x4, offset = 0x4, fixed_abs, tag = 'smem constant byte address 0x4 - core index']
  #allocation1 [shape = 'u32[72,128]{1,0:T(1,128)}', space=vmem, size = 0x9000, scoped, tag = 'internal scratch']
  #allocation2 [shape = 'bf16[16,32]{1,0:T(8,128)(2,1)}', space=vmem, size = 0x1000, scoped, tag = 'scratch operand']
  %s0 = inlined_call_operand.vmem [shape: bf16[16,32], index: 0, kind: input, shape index: {}]
  %s1 = inlined_call_operand.vmem [shape: f32[1,32], index: 1, kind: input, shape index: {}]
  %s2 = inlined_call_operand.vmem [shape: bf16[32,32], index: 2, kind: input, shape index: {}]
  %s3 = inlined_call_operand.vmem [shape: bf16[16,32], index: 3, kind: output, shape index: {}]
  %s4 = sld [smem:[#allocation0]]
  $region26: #{bartmt_forward.46} parent=0
    _
  %s6 = ssub.s32 1, %s4
  %s7 = scalar_select 0, %s6, %s4
  // Predicated region
  $region2: #{bartmt_forward.46} parent=0 // pred_check
    _
  $region3: #{bartmt_forward.46} parent=0 // pred_check_branch
    %9 = sbr.rel (0) target = $region5
  $region4: #{bartmt_forward.46} parent=0 // pred_region
    _
  $region5: #{bartmt_forward.46} parent=0 // pred_fallthru
    _
  // Predicated region
  $region6: #{bartmt_forward.46} parent=0 // pred_check
    _
  $region7: #{bartmt_forward.46} parent=0 // pred_check_branch
    %11 = sbr.rel (0) target = $region9
  $region8: #{bartmt_forward.46} parent=0 // pred_region
    _
  $region9: #{bartmt_forward.46} parent=0 // pred_fallthru
    _
  // Predicated region
  $region10: #{bartmt_forward.46} parent=0 // pred_check
    _
  $region11: #{bartmt_forward.46} parent=0 // pred_check_branch
    %13 = sbr.rel (0) target = $region13
  $region12: #{bartmt_forward.46} parent=0 // pred_region
    _
  $region13: #{bartmt_forward.46} parent=0 // pred_fallthru
    _
  %p15 = scmp.eq.s32.totalorder 0, 0
  // Predicated region
  $region14: #{bartmt_forward.46} parent=0 // pred_check
    %p16 = pneg %p15
  $region15: #{bartmt_forward.46} parent=0 // pred_check_branch
    %18 = sbr.rel (%p16) target = $region17
  $region16: #{bartmt_forward.46} parent=0 // pred_region
    %v19 = vld [vmem:[%s0] sm:$0xf]
    %v20 = vld [vmem:[%s0 + $0x4] sm:$0xf]
    %v21 = vunpack.c.l.bf16 %v19
    %v22 = vunpack.c.l.bf16 %v20
    %v23 = vmul.f32 %v21, %v21
    %v24 = vmul.f32 %v22, %v22
    %vm25 = vcmask 261120
    %v26 = vsel %vm25, %v23, 0.0
    %27 = vadd.xlane.f32.xlu0 %v26
    %v28 = vpop.xlane.xlu0 %27
    %v29 = vsel %vm25, %v24, 0.0
    %30 = vadd.xlane.f32.xlu0 %v29
    %v31 = vpop.xlane.xlu0 %30
    %v32 = vrcp.pop 32.0
    %v33 = vmul.f32 32.0, %v32
    %v34 = vsub.f32 1.0, %v33
    %v35 = vmul.f32 %v32, %v34
    %v36 = vadd.f32 %v32, %v35
    %vm37 = vweird.f32 %v32
    %v38 = vsel %vm37, %v32, %v36
    %v39 = vmul.f32 %v28, %v38
    %v40 = vmul.f32 %v31, %v38
    %v41 = vadd.f32 %v39, 1e-06
    %v42 = vadd.f32 %v40, 1e-06
    %v43 = vrsqrt.pop %v41
    %v44 = vmul.f32 %v43, %v41
    %v45 = vmul.f32 %v44, %v43
    %v46 = vmul.f32 0.5, %v45
    %v47 = vsub.f32 1.5, %v46
    %v48 = vmul.f32 %v43, %v47
    %vm49 = vweird.f32 %v41
    %vm50 = vweird.f32 %v43
    %vm51 = vmor %vm49, %vm50
    %v52 = vsel %vm51, %v43, %v48
    %v53 = vrsqrt.pop %v42
    %v54 = vmul.f32 %v53, %v42
    %v55 = vmul.f32 %v54, %v53
    %v56 = vmul.f32 0.5, %v55
    %v57 = vsub.f32 1.5, %v56
    %v58 = vmul.f32 %v53, %v57
    %vm59 = vweird.f32 %v42
    %vm60 = vweird.f32 %v53
    %vm61 = vmor %vm59, %vm60
    %v62 = vsel %vm61, %v53, %v58
    %v63 = vmul.f32 %v21, %v52
    %v64 = vmul.f32 %v22, %v62
    %v65 = vld [vmem:[%s1] sm:$0x1]
    %v67 = vperm.slane %v65, 0
    %v69 = vmul.f32 %v63, %v67
    %v70 = vmul.f32 %v64, %v67
    %v71 = vpack.c.bf16 %v69, %v69
    %v72 = vpack.c.bf16 %v70, %v70
    %vm73 = vcmask 257024
    %74 = vst.msk [vmem:[#allocation2] sm:$0xf] %vm73, %v71
    %75 = vst.msk [vmem:[#allocation2 + $0x4] sm:$0xf] %vm73, %v72
  $region17: #{bartmt_forward.46} parent=0 // pred_fallthru
    _
  %v76 = vld [vmem:[#allocation2] sm:$0xf]
  %v77 = vld [vmem:[#allocation2 + $0x4] sm:$0xf]
  %v78 = vld [vmem:[%s2] sm:$0xf]
  %v79 = vld [vmem:[%s2 + $0x4] sm:$0xf]
  %v80 = vld [vmem:[%s2 + $0x8] sm:$0xf]
  %v81 = vld [vmem:[%s2 + $0xc] sm:$0xf]
  %v84 = vunpack.c.l.b16 %v76
  %v85 = vunpack.c.l.b16 %v77
  %v86 = vpack.c.b16 %v85, %v84
  %v91 = vunpack.c.l.b16 %v78
  %v92 = vunpack.c.l.b16 %v79
  %v93 = vunpack.c.l.b16 %v80
  %v94 = vunpack.c.l.b16 %v81
  %v95 = vpack.c.b16 %v92, %v91
  %v96 = vpack.c.b16 %v94, %v93
  %vm99 = vcmask 261120
  %v101 = vsel %vm99, %v86, 0
  %103 = vmatpush.bf16.msra.mxu0 0
  %104 = vmatpush.bf16.msra.mxu0 0
  %105 = vmatpush.bf16.msra.mxu0 0
  %106 = vmatpush.bf16.msra.mxu0 0
  %107 = vmatpush.bf16.msra.mxu0 0
  %108 = vmatpush.bf16.msra.mxu0 0
  %109 = vmatpush.bf16.msra.mxu0 %v96
  %110 = vmatpush.bf16.msra.mxu0 %v95
  %111 = vmatmul.bf16.gmra.mxu0 %v101
  %v112 = vpop.f32.mrf.mxu0
  %v113 = vadd.f32 0.0, %v112
  %v114 = vpop.f32.mrf.mxu0
  %v115 = vadd.f32 0.0, %v114
  %116 = vdwg.mxu0
  %v117 = vpack.c.bf16 %v113, %v113
  %v118 = vpack.c.bf16 %v115, %v115
  %vm119 = vcmask 257024
  %120 = vst.msk [vmem:[%s3] sm:$0xf] %vm119, %v117
  %121 = vst.msk [vmem:[%s3 + $0x4] sm:$0xf] %vm119, %v118
  // Predicated region
  $region18: #{bartmt_forward.46} parent=0 // pred_check
    _
  $region19: #{bartmt_forward.46} parent=0 // pred_check_branch
    %123 = sbr.rel (0) target = $region21
  $region20: #{bartmt_forward.46} parent=0 // pred_region
    _
  $region21: #{bartmt_forward.46} parent=0 // pred_fallthru
    _
  // Predicated region
  $region22: #{bartmt_forward.46} parent=0 // pred_check
    _
  $region23: #{bartmt_forward.46} parent=0 // pred_check_branch
    %125 = sbr.rel (0) target = $region25
  $region24: #{bartmt_forward.46} parent=0 // pred_region
    _
  $region25: #{bartmt_forward.46} parent=0 // pred_fallthru
    _

// kernel: bartmt_forward.35
$region0: #{bartmt_forward.35}
  #allocation0 [shape = 'u32[]', space=smem, size = 0x4, offset = 0x4, fixed_abs, tag = 'smem constant byte address 0x4 - core index']
  #allocation1 [shape = 'u32[72,128]{1,0:T(1,128)}', space=vmem, size = 0x9000, scoped, tag = 'internal scratch']
  #allocation2 [shape = 'f32[16,32]{1,0:T(8,128)}', space=vmem, size = 0x2000, scoped, tag = 'scratch operand']
  %s0 = inlined_call_operand.vmem [shape: bf16[16,64], index: 0, kind: input, shape index: {}]
  %s1 = inlined_call_operand.vmem [shape: bf16[64,32], index: 1, kind: input, shape index: {}]
  %s2 = inlined_call_operand.vmem [shape: bf16[16,32], index: 2, kind: input, shape index: {}]
  %s3 = inlined_call_operand.vmem [shape: bf16[16,32], index: 3, kind: output, shape index: {}]
  %s4 = sld [smem:[#allocation0]]
  $region30: #{bartmt_forward.35} parent=0
    _
  %s6 = ssub.s32 1, %s4
  %s7 = scalar_select 0, %s6, %s4
  // Predicated region
  $region2: #{bartmt_forward.35} parent=0 // pred_check
    _
  $region3: #{bartmt_forward.35} parent=0 // pred_check_branch
    %9 = sbr.rel (0) target = $region5
  $region4: #{bartmt_forward.35} parent=0 // pred_region
    _
  $region5: #{bartmt_forward.35} parent=0 // pred_fallthru
    _
  // Predicated region
  $region6: #{bartmt_forward.35} parent=0 // pred_check
    _
  $region7: #{bartmt_forward.35} parent=0 // pred_check_branch
    %11 = sbr.rel (0) target = $region9
  $region8: #{bartmt_forward.35} parent=0 // pred_region
    _
  $region9: #{bartmt_forward.35} parent=0 // pred_fallthru
    _
  // Predicated region
  $region10: #{bartmt_forward.35} parent=0 // pred_check
    _
  $region11: #{bartmt_forward.35} parent=0 // pred_check_branch
    %13 = sbr.rel (0) target = $region13
  $region12: #{bartmt_forward.35} parent=0 // pred_region
    _
  $region13: #{bartmt_forward.35} parent=0 // pred_fallthru
    _
  %p15 = scmp.eq.s32.totalorder 0, 0
  // Predicated region
  $region14: #{bartmt_forward.35} parent=0 // pred_check
    %p16 = pneg %p15
  $region15: #{bartmt_forward.35} parent=0 // pred_check_branch
    %18 = sbr.rel (%p16) target = $region17
  $region16: #{bartmt_forward.35} parent=0 // pred_region
    %vm19 = vcmask 261120
    %20 = vst.msk [vmem:[#allocation2] sm:$0xff] %vm19, 0.0
    %21 = vst.msk [vmem:[#allocation2 + $0x8] sm:$0xff] %vm19, 0.0
  $region17: #{bartmt_forward.35} parent=0 // pred_fallthru
    _
  %v22 = vld [vmem:[#allocation2] sm:$0xff]
  %v23 = vld [vmem:[#allocation2 + $0x8] sm:$0xff]
  %v24 = vld [vmem:[%s0] sm:$0xf]
  %v25 = vld [vmem:[%s0 + $0x4] sm:$0xf]
  %v26 = vld [vmem:[%s1] sm:$0xf]
  %v27 = vld [vmem:[%s1 + $0x4] sm:$0xf]
  %v28 = vld [vmem:[%s1 + $0x8] sm:$0xf]
  %v29 = vld [vmem:[%s1 + $0xc] sm:$0xf]
  %v30 = vld [vmem:[%s1 + $0x10] sm:$0xf]
  %v31 = vld [vmem:[%s1 + $0x14] sm:$0xf]
  %v32 = vld [vmem:[%s1 + $0x18] sm:$0xf]
  %v33 = vld [vmem:[%s1 + $0x1c] sm:$0xf]
  %v36 = vunpack.c.l.b16 %v24
  %v37 = vunpack.c.l.b16 %v25
  %v38 = vpack.c.b16 %v37, %v36
  %v47 = vunpack.c.l.b16 %v26
  %v48 = vunpack.c.l.b16 %v27
  %v49 = vunpack.c.l.b16 %v28
  %v50 = vunpack.c.l.b16 %v29
  %v51 = vunpack.c.l.b16 %v30
  %v52 = vunpack.c.l.b16 %v31
  %v53 = vunpack.c.l.b16 %v32
  %v54 = vunpack.c.l.b16 %v33
  %v55 = vpack.c.b16 %v48, %v47
  %v56 = vpack.c.b16 %v50, %v49
  %v57 = vpack.c.b16 %v52, %v51
  %v58 = vpack.c.b16 %v54, %v53
  %vm63 = vcmask 523264
  %v65 = vsel %vm63, %v38, 0
  %67 = vmatpush.bf16.msra.mxu0 0
  %68 = vmatpush.bf16.msra.mxu0 0
  %69 = vmatpush.bf16.msra.mxu0 0
  %70 = vmatpush.bf16.msra.mxu0 0
  %71 = vmatpush.bf16.msra.mxu0 %v58
  %72 = vmatpush.bf16.msra.mxu0 %v57
  %73 = vmatpush.bf16.msra.mxu0 %v56
  %74 = vmatpush.bf16.msra.mxu0 %v55
  %75 = vmatmul.bf16.gmra.mxu0 %v65
  %v76 = vpop.f32.mrf.mxu0
  %v77 = vadd.f32 0.0, %v76
  %v78 = vpop.f32.mrf.mxu0
  %v79 = vadd.f32 0.0, %v78
  %80 = vdwg.mxu0
  %v81 = vadd.f32 %v22, %v77
  %v82 = vadd.f32 %v23, %v79
  %vm83 = vcmask 261120
  %84 = vst.msk [vmem:[#allocation2] sm:$0xff] %vm83, %v81
  %85 = vst.msk [vmem:[#allocation2 + $0x8] sm:$0xff] %vm83, %v82
  // Predicated region
  $region18: #{bartmt_forward.35} parent=0 // pred_check
    %p86 = pneg %p15
  $region19: #{bartmt_forward.35} parent=0 // pred_check_branch
    %88 = sbr.rel (%p86) target = $region21
  $region20: #{bartmt_forward.35} parent=0 // pred_region
    %v89 = vld [vmem:[#allocation2] sm:$0xff]
    %v90 = vld [vmem:[#allocation2 + $0x8] sm:$0xff]
    %v91 = vld [vmem:[%s2] sm:$0xf]
    %v92 = vld [vmem:[%s2 + $0x4] sm:$0xf]
    %v93 = vunpack.c.l.bf16 %v91
    %v94 = vunpack.c.l.bf16 %v92
    %v95 = vadd.f32 %v89, %v93
    %v96 = vadd.f32 %v90, %v94
    %v97 = vpack.c.bf16 %v95, %v95
    %v98 = vpack.c.bf16 %v96, %v96
    %vm99 = vcmask 257024
    %100 = vst.msk [vmem:[%s3] sm:$0xf] %vm99, %v97
    %101 = vst.msk [vmem:[%s3 + $0x4] sm:$0xf] %vm99, %v98
  $region21: #{bartmt_forward.35} parent=0 // pred_fallthru
    _
  // Predicated region
  $region22: #{bartmt_forward.35} parent=0 // pred_check
    _
  $region23: #{bartmt_forward.35} parent=0 // pred_check_branch
    %103 = sbr.rel (0) target = $region25
  $region24: #{bartmt_forward.35} parent=0 // pred_region
    _
  $region25: #{bartmt_forward.35} parent=0 // pred_fallthru
    _
  // Predicated region
  $region26: #{bartmt_forward.35} parent=0 // pred_check
    _
  $region27: #{bartmt_forward.35} parent=0 // pred_check_branch
    %105 = sbr.rel (0) target = $region29
  $region28: #{bartmt_forward.35} parent=0 // pred_region
    _
  $region29: #{bartmt_forward.35} parent=0 // pred_fallthru
    _

// kernel: bartmt_forward.34
$region0: #{bartmt_forward.34}
  #allocation0 [shape = 'u32[]', space=smem, size = 0x4, offset = 0x4, fixed_abs, tag = 'smem constant byte address 0x4 - core index']
  #allocation1 [shape = 'u32[72,128]{1,0:T(1,128)}', space=vmem, size = 0x9000, scoped, tag = 'internal scratch']
  #allocation2 [shape = 'bf16[16,32]{1,0:T(8,128)(2,1)}', space=vmem, size = 0x1000, scoped, tag = 'scratch operand']
  %s0 = inlined_call_operand.vmem [shape: bf16[16,32], index: 0, kind: input, shape index: {}]
  %s1 = inlined_call_operand.vmem [shape: f32[1,32], index: 1, kind: input, shape index: {}]
  %s2 = inlined_call_operand.vmem [shape: bf16[32,64], index: 2, kind: input, shape index: {}]
  %s3 = inlined_call_operand.vmem [shape: bf16[32,64], index: 3, kind: input, shape index: {}]
  %s4 = inlined_call_operand.vmem [shape: bf16[16,64], index: 4, kind: output, shape index: {}]
  %s5 = sld [smem:[#allocation0]]
  $region30: #{bartmt_forward.34} parent=0
    _
  %s7 = ssub.s32 1, %s5
  %s8 = scalar_select 0, %s7, %s5
  // Predicated region
  $region2: #{bartmt_forward.34} parent=0 // pred_check
    _
  $region3: #{bartmt_forward.34} parent=0 // pred_check_branch
    %10 = sbr.rel (0) target = $region5
  $region4: #{bartmt_forward.34} parent=0 // pred_region
    _
  $region5: #{bartmt_forward.34} parent=0 // pred_fallthru
    _
  // Predicated region
  $region6: #{bartmt_forward.34} parent=0 // pred_check
    _
  $region7: #{bartmt_forward.34} parent=0 // pred_check_branch
    %12 = sbr.rel (0) target = $region9
  $region8: #{bartmt_forward.34} parent=0 // pred_region
    _
  $region9: #{bartmt_forward.34} parent=0 // pred_fallthru
    _
  // Predicated region
  $region10: #{bartmt_forward.34} parent=0 // pred_check
    _
  $region11: #{bartmt_forward.34} parent=0 // pred_check_branch
    %14 = sbr.rel (0) target = $region13
  $region12: #{bartmt_forward.34} parent=0 // pred_region
    _
  $region13: #{bartmt_forward.34} parent=0 // pred_fallthru
    _
  // Predicated region
  $region14: #{bartmt_forward.34} parent=0 // pred_check
    _
  $region15: #{bartmt_forward.34} parent=0 // pred_check_branch
    %16 = sbr.rel (0) target = $region17
  $region16: #{bartmt_forward.34} parent=0 // pred_region
    _
  $region17: #{bartmt_forward.34} parent=0 // pred_fallthru
    _
  %p18 = scmp.eq.s32.totalorder 0, 0
  // Predicated region
  $region18: #{bartmt_forward.34} parent=0 // pred_check
    %p19 = pneg %p18
  $region19: #{bartmt_forward.34} parent=0 // pred_check_branch
    %21 = sbr.rel (%p19) target = $region21
  $region20: #{bartmt_forward.34} parent=0 // pred_region
    %v22 = vld [vmem:[%s0] sm:$0xf]
    %v23 = vld [vmem:[%s0 + $0x4] sm:$0xf]
    %v24 = vunpack.c.l.bf16 %v22
    %v25 = vunpack.c.l.bf16 %v23
    %v26 = vmul.f32 %v24, %v24
    %v27 = vmul.f32 %v25, %v25
    %vm28 = vcmask 261120
    %v29 = vsel %vm28, %v26, 0.0
    %30 = vadd.xlane.f32.xlu0 %v29
    %v31 = vpop.xlane.xlu0 %30
    %v32 = vsel %vm28, %v27, 0.0
    %33 = vadd.xlane.f32.xlu0 %v32
    %v34 = vpop.xlane.xlu0 %33
    %v35 = vrcp.pop 32.0
    %v36 = vmul.f32 32.0, %v35
    %v37 = vsub.f32 1.0, %v36
    %v38 = vmul.f32 %v35, %v37
    %v39 = vadd.f32 %v35, %v38
    %vm40 = vweird.f32 %v35
    %v41 = vsel %vm40, %v35, %v39
    %v42 = vmul.f32 %v31, %v41
    %v43 = vmul.f32 %v34, %v41
    %v44 = vadd.f32 %v42, 1e-06
    %v45 = vadd.f32 %v43, 1e-06
    %v46 = vrsqrt.pop %v44
    %v47 = vmul.f32 %v46, %v44
    %v48 = vmul.f32 %v47, %v46
    %v49 = vmul.f32 0.5, %v48
    %v50 = vsub.f32 1.5, %v49
    %v51 = vmul.f32 %v46, %v50
    %vm52 = vweird.f32 %v44
    %vm53 = vweird.f32 %v46
    %vm54 = vmor %vm52, %vm53
    %v55 = vsel %vm54, %v46, %v51
    %v56 = vrsqrt.pop %v45
    %v57 = vmul.f32 %v56, %v45
    %v58 = vmul.f32 %v57, %v56
    %v59 = vmul.f32 0.5, %v58
    %v60 = vsub.f32 1.5, %v59
    %v61 = vmul.f32 %v56, %v60
    %vm62 = vweird.f32 %v45
    %vm63 = vweird.f32 %v56
    %vm64 = vmor %vm62, %vm63
    %v65 = vsel %vm64, %v56, %v61
    %v66 = vmul.f32 %v24, %v55
    %v67 = vmul.f32 %v25, %v65
    %v68 = vld [vmem:[%s1] sm:$0x1]
    %v70 = vperm.slane %v68, 0
    %v72 = vmul.f32 %v66, %v70
    %v73 = vmul.f32 %v67, %v70
    %v74 = vpack.c.bf16 %v72, %v72
    %v75 = vpack.c.bf16 %v73, %v73
    %vm76 = vcmask 257024
    %77 = vst.msk [vmem:[#allocation2] sm:$0xf] %vm76, %v74
    %78 = vst.msk [vmem:[#allocation2 + $0x4] sm:$0xf] %vm76, %v75
  $region21: #{bartmt_forward.34} parent=0 // pred_fallthru
    _
  %v79 = vld [vmem:[#allocation2] sm:$0xf]
  %v80 = vld [vmem:[#allocation2 + $0x4] sm:$0xf]
  %v81 = vld [vmem:[%s2] sm:$0xf]
  %v82 = vld [vmem:[%s2 + $0x4] sm:$0xf]
  %v83 = vld [vmem:[%s2 + $0x8] sm:$0xf]
  %v84 = vld [vmem:[%s2 + $0xc] sm:$0xf]
  %v87 = vunpack.c.l.b16 %v79
  %v88 = vunpack.c.l.b16 %v80
  %v89 = vpack.c.b16 %v88, %v87
  %v94 = vunpack.c.l.b16 %v81
  %v95 = vunpack.c.l.b16 %v82
  %v96 = vunpack.c.l.b16 %v83
  %v97 = vunpack.c.l.b16 %v84
  %v98 = vpack.c.b16 %v95, %v94
  %v99 = vpack.c.b16 %v97, %v96
  %vm102 = vcmask 261120
  %v104 = vsel %vm102, %v89, 0
  %106 = vmatpush.bf16.msra.mxu0 0
  %107 = vmatpush.bf16.msra.mxu0 0
  %108 = vmatpush.bf16.msra.mxu0 0
  %109 = vmatpush.bf16.msra.mxu0 0
  %110 = vmatpush.bf16.msra.mxu0 0
  %111 = vmatpush.bf16.msra.mxu0 0
  %112 = vmatpush.bf16.msra.mxu0 %v99
  %113 = vmatpush.bf16.msra.mxu0 %v98
  %114 = vmatmul.bf16.gmra.mxu0 %v104
  %v115 = vpop.f32.mrf.mxu0
  %v116 = vadd.f32 0.0, %v115
  %v117 = vpop.f32.mrf.mxu0
  %v118 = vadd.f32 0.0, %v117
  %119 = vdwg.mxu0
  %v120 = vld [vmem:[%s3] sm:$0xf]
  %v121 = vld [vmem:[%s3 + $0x4] sm:$0xf]
  %v122 = vld [vmem:[%s3 + $0x8] sm:$0xf]
  %v123 = vld [vmem:[%s3 + $0xc] sm:$0xf]
  %v128 = vunpack.c.l.b16 %v120
  %v129 = vunpack.c.l.b16 %v121
  %v130 = vunpack.c.l.b16 %v122
  %v131 = vunpack.c.l.b16 %v123
  %v132 = vpack.c.b16 %v129, %v128
  %v133 = vpack.c.b16 %v131, %v130
  %136 = vmatpush.bf16.msra.mxu0 0
  %137 = vmatpush.bf16.msra.mxu0 0
  %138 = vmatpush.bf16.msra.mxu0 0
  %139 = vmatpush.bf16.msra.mxu0 0
  %140 = vmatpush.bf16.msra.mxu0 0
  %141 = vmatpush.bf16.msra.mxu0 0
  %142 = vmatpush.bf16.msra.mxu0 %v133
  %143 = vmatpush.bf16.msra.mxu0 %v132
  %144 = vmatmul.bf16.gmra.mxu0 %v104
  %v145 = vpop.f32.mrf.mxu0
  %v146 = vadd.f32 0.0, %v145
  %v147 = vpop.f32.mrf.mxu0
  %v148 = vadd.f32 0.0, %v147
  %149 = vdwg.mxu0
  %v150 = vxor.u32 %v116, 2147483648
  %v151 = vxor.u32 %v118, 2147483648
  %v152 = vmul.f32 %v150, 1.442695
  %v153 = vpow.pop %v152
  %v154 = vmul.f32 %v151, 1.442695
  %v155 = vpow.pop %v154
  %v156 = vadd.f32 %v153, 1.0
  %v157 = vadd.f32 %v155, 1.0
  %v158 = vrcp.pop %v156
  %v159 = vmul.f32 %v156, %v158
  %v160 = vsub.f32 1.0, %v159
  %v161 = vmul.f32 %v158, %v160
  %v162 = vadd.f32 %v158, %v161
  %vm163 = vweird.f32 %v156
  %vm164 = vweird.f32 %v158
  %vm165 = vmor %vm163, %vm164
  %v166 = vsel %vm165, %v158, %v162
  %v167 = vand.u32 2147483647, %v156
  %vm168 = vcmp.eq.f32.partialorder %v167, 8.507059e+37
  %v169 = vand.u32 %v156, 2147483648
  %v170 = vor.u32 1.1754944e-38, %v169
  %v171 = vsel %vm168, %v170, %v166
  %v172 = vmul.f32 1.0, %v171
  %v173 = vrcp.pop %v157
  %v174 = vmul.f32 %v157, %v173
  %v175 = vsub.f32 1.0, %v174
  %v176 = vmul.f32 %v173, %v175
  %v177 = vadd.f32 %v173, %v176
  %vm178 = vweird.f32 %v157
  %vm179 = vweird.f32 %v173
  %vm180 = vmor %vm178, %vm179
  %v181 = vsel %vm180, %v173, %v177
  %v182 = vand.u32 2147483647, %v157
  %vm183 = vcmp.eq.f32.partialorder %v182, 8.507059e+37
  %v184 = vand.u32 %v157, 2147483648
  %v185 = vor.u32 1.1754944e-38, %v184
  %v186 = vsel %vm183, %v185, %v181
  %v187 = vmul.f32 1.0, %v186
  %v188 = vmul.f32 %v116, %v172
  %v189 = vmul.f32 %v118, %v187
  %v190 = vmul.f32 %v188, %v146
  %v191 = vmul.f32 %v189, %v148
  %v192 = vpack.c.bf16 %v190, %v190
  %v193 = vpack.c.bf16 %v191, %v191
  %vm194 = vcmask 519168
  %195 = vst.msk [vmem:[%s4] sm:$0xf] %vm194, %v192
  %196 = vst.msk [vmem:[%s4 + $0x4] sm:$0xf] %vm194, %v193
  // Predicated region
  $region22: #{bartmt_forward.34} parent=0 // pred_check
    _
  $region23: #{bartmt_forward.34} parent=0 // pred_check_branch
    %198 = sbr.rel (0) target = $region25
  $region24: #{bartmt_forward.34} parent=0 // pred_region
    _
  $region25: #{bartmt_forward.34} parent=0 // pred_fallthru
    _
  // Predicated region
  $region26: #{bartmt_forward.34} parent=0 // pred_check
    _
  $region27: #{bartmt_forward.34} parent=0 // pred_check_branch
    %200 = sbr.rel (0) target = $region29
  $region28: #{bartmt_forward.34} parent=0 // pred_region
    _
  $region29: #{bartmt_forward.34} parent=0 // pred_fallthru
    _

// kernel: bartmt_forward.32
$region0: #{bartmt_forward.32}
  #allocation0 [shape = 'u32[]', space=smem, size = 0x4, offset = 0x4, fixed_abs, tag = 'smem constant byte address 0x4 - core index']
  #allocation1 [shape = 'u32[72,128]{1,0:T(1,128)}', space=vmem, size = 0x9000, scoped, tag = 'internal scratch']
  #allocation2 [shape = 'f32[8,1]{1,0:T(8,128)}', space=vmem, size = 0x1000, scoped, tag = 'scratch operand']
  #allocation3 [shape = 'f32[8,1]{1,0:T(8,128)}', space=vmem, size = 0x1000, scoped, tag = 'scratch operand']
  #allocation4 [shape = 'f32[8,8]{1,0:T(8,128)}', space=vmem, size = 0x1000, scoped, tag = 'scratch operand']
  #allocation5 [shape = 'bf16[8,8]{1,0:T(8,128)(2,1)}', space=vmem, size = 0x800, scoped, tag = 'scratch operand']
  %s0 = inlined_call_operand.vmem [shape: bf16[8,8,8], index: 0, kind: input, shape index: {}]
  %s1 = inlined_call_operand.vmem [shape: bf16[8,8,8], index: 1, kind: input, shape index: {}]
  %s2 = inlined_call_operand.vmem [shape: bf16[8,8,8], index: 2, kind: input, shape index: {}]
  %s3 = inlined_call_operand.vmem [shape: f32[8,8], index: 3, kind: input, shape index: {}, may-alias: {3,5}]
  %s4 = inlined_call_operand.vmem [shape: f32[8,8], index: 4, kind: input, shape index: {}, may-alias: {4,6}]
  %s5 = inlined_call_operand.vmem [shape: f32[8,8], index: 5, kind: input, shape index: {}, may-alias: {3,5}]
  %s6 = inlined_call_operand.vmem [shape: f32[8,8], index: 6, kind: input, shape index: {}, may-alias: {4,6}]
  %s7 = inlined_call_operand.vmem [shape: bf16[8,8,8], index: 7, kind: output, shape index: {}]
  %s8 = sld [smem:[#allocation0]]
  $region69: #{bartmt_forward.32} parent=0
    _
  %s10 = ssub.s32 1, %s8
  %s11 = scalar_select 0, %s10, %s8
  loop: start=0, step=1, limit=10
  $region2: #{bartmt_forward.32} parent=0 // loop_pre_header
    _
  $region3: #{bartmt_forward.32} parent=0 // loop_header
    %s13 = sphi 0, %s17
    %p14 = scmp.ge.s32.totalorder %s13, 10
    %s20 = sphi 0, %s39
    %s21 = sphi 0, %s35
    %s22 = sphi 0, %s31
    %s23 = sphi 0, %s20
    %s24 = sphi 0, %s21
    %s25 = sphi 0, %s22
    %s26 = sphi 0, %s23
    %s27 = sphi 0, %s24
    %s28 = sphi 0, %s25
    %s44 = sphi 0, %s46
    %s47 = sphi 0, %s44
    %s48 = sphi 0, %s47
    %s64 = sphi 0, %s48
    %s72 = sphi 0, %s74
    %s75 = sphi 0, %s72
    %s76 = sphi 0, %s75
    %s92 = sphi 0, %s76
    %s100 = sphi 0, %s102
    %s103 = sphi 0, %s100
    %s104 = sphi 0, %s103
    %s120 = sphi 0, %s104
    %s126 = sphi 0, %s128
    %s129 = sphi 0, %s126
    %s130 = sphi 0, %s129
    %s146 = sphi 0, %s130
    %s152 = sphi 0, %s154
    %s155 = sphi 0, %s152
    %s156 = sphi 0, %s155
    %s172 = sphi 0, %s156
    %s178 = sphi 0, %s180
    %s181 = sphi 0, %s178
    %s182 = sphi 0, %s181
    %s198 = sphi 0, %s182
    %s204 = sphi 0, %s206
    %s207 = sphi 0, %s204
    %s208 = sphi 0, %s207
    %s224 = sphi 0, %s208
    %s232 = sphi 0, %s234
    %s235 = sphi 0, %s232
    %s236 = sphi 0, %s235
    %s252 = sphi 0, %s236
  $region4: #{bartmt_forward.32} parent=0 // loop_header_branch
    %16 = sbr.rel (%p14) target = $region8
  $region5: #{bartmt_forward.32} parent=0 // loop_body
    %s18 = ssub.s32 %s13, 1
    %s19 = ssub.s32 %s13, 2
    %s29 = sadd.s32 1, %s22
    %p30 = scmp.ge.s32.totalorder %s29, 1
    %s31 = scalar_select %p30, 0, %s29
    %s32 = sadd.s32 1, %s21
    %s33 = scalar_select %p30, %s32, %s21
    %p34 = scmp.ge.s32.totalorder %s33, 1
    %s35 = scalar_select %p34, 0, %s33
    %s36 = sadd.s32 1, %s20
    %s37 = scalar_select %p34, %s36, %s20
    %p38 = scmp.ge.s32.totalorder %s37, 8
    %s39 = scalar_select %p38, 0, %s37
    %s40 = ssub.s32 %s20, %s39
    %s41 = ssub.s32 %s21, %s35
    %s42 = sor.u32 %s40, %s41
    %p43 = scmp.eq.s32.totalorder %s42, 0
    %s45 = sadd.s32 %s44, 1
    %s46 = scalar_select %p43, %s44, %s45
    %p49 = pneg %p43
    %p50 = scmp.eq.s32.totalorder %s13, 7
    %p51 = por %p49, %p50
    %p52 = scmp.ne.s32.totalorder %s44, %s47
    %p53 = scmp.eq.s32.totalorder %s13, 0
    %p54 = por %p52, %p53
    %p55 = scmp.ne.s32.totalorder %s44, %s47
    %p56 = scmp.eq.s32.totalorder %s18, 7
    %p57 = por %p55, %p56
    %p58 = scmp.ne.s32.totalorder %s47, %s48
    %p59 = scmp.eq.s32.totalorder %s18, 0
    %p60 = por %p58, %p59
    %p61 = scmp.ne.s32.totalorder %s47, %s48
    %p62 = scmp.eq.s32.totalorder %s19, 7
    %p63 = por %p61, %p62
    %p65 = scmp.ne.s32.totalorder %s48, %s64
    %p66 = scmp.eq.s32.totalorder %s19, 0
    %p67 = por %p65, %p66
    %s68 = ssub.s32 %s20, %s39
    %s69 = ssub.s32 %s22, %s31
    %s70 = sor.u32 %s68, %s69
    %p71 = scmp.eq.s32.totalorder %s70, 0
    %s73 = sadd.s32 %s72, 1
    %s74 = scalar_select %p71, %s72, %s73
    %p77 = pneg %p71
    %p78 = scmp.eq.s32.totalorder %s13, 7
    %p79 = por %p77, %p78
    %p80 = scmp.ne.s32.totalorder %s72, %s75
    %p81 = scmp.eq.s32.totalorder %s13, 0
    %p82 = por %p80, %p81
    %p83 = scmp.ne.s32.totalorder %s72, %s75
    %p84 = scmp.eq.s32.totalorder %s18, 7
    %p85 = por %p83, %p84
    %p86 = scmp.ne.s32.totalorder %s75, %s76
    %p87 = scmp.eq.s32.totalorder %s18, 0
    %p88 = por %p86, %p87
    %p89 = scmp.ne.s32.totalorder %s75, %s76
    %p90 = scmp.eq.s32.totalorder %s19, 7
    %p91 = por %p89, %p90
    %p93 = scmp.ne.s32.totalorder %s76, %s92
    %p94 = scmp.eq.s32.totalorder %s19, 0
    %p95 = por %p93, %p94
    %s96 = ssub.s32 %s20, %s39
    %s97 = ssub.s32 %s22, %s31
    %s98 = sor.u32 %s96, %s97
    %p99 = scmp.eq.s32.totalorder %s98, 0
    %s101 = sadd.s32 %s100, 1
    %s102 = scalar_select %p99, %s100, %s101
    %p105 = pneg %p99
    %p106 = scmp.eq.s32.totalorder %s13, 7
    %p107 = por %p105, %p106
    %p108 = scmp.ne.s32.totalorder %s100, %s103
    %p109 = scmp.eq.s32.totalorder %s13, 0
    %p110 = por %p108, %p109
    %p111 = scmp.ne.s32.totalorder %s100, %s103
    %p112 = scmp.eq.s32.totalorder %s18, 7
    %p113 = por %p111, %p112
    %p114 = scmp.ne.s32.totalorder %s103, %s104
    %p115 = scmp.eq.s32.totalorder %s18, 0
    %p116 = por %p114, %p115
    %p117 = scmp.ne.s32.totalorder %s103, %s104
    %p118 = scmp.eq.s32.totalorder %s19, 7
    %p119 = por %p117, %p118
    %p121 = scmp.ne.s32.totalorder %s104, %s120
    %p122 = scmp.eq.s32.totalorder %s19, 0
    %p123 = por %p121, %p122
    %s124 = ssub.s32 %s21, %s35
    %p125 = scmp.eq.s32.totalorder %s124, 0
    %s127 = sadd.s32 %s126, 1
    %s128 = scalar_select %p125, %s126, %s127
    %p131 = pneg %p125
    %p132 = scmp.eq.s32.totalorder %s13, 7
    %p133 = por %p131, %p132
    %p134 = scmp.ne.s32.totalorder %s126, %s129
    %p135 = scmp.eq.s32.totalorder %s13, 0
    %p136 = por %p134, %p135
    %p137 = scmp.ne.s32.totalorder %s126, %s129
    %p138 = scmp.eq.s32.totalorder %s18, 7
    %p139 = por %p137, %p138
    %p140 = scmp.ne.s32.totalorder %s129, %s130
    %p141 = scmp.eq.s32.totalorder %s18, 0
    %p142 = por %p140, %p141
    %p143 = scmp.ne.s32.totalorder %s129, %s130
    %p144 = scmp.eq.s32.totalorder %s19, 7
    %p145 = por %p143, %p144
    %p147 = scmp.ne.s32.totalorder %s130, %s146
    %p148 = scmp.eq.s32.totalorder %s19, 0
    %p149 = por %p147, %p148
    %s150 = ssub.s32 %s21, %s35
    %p151 = scmp.eq.s32.totalorder %s150, 0
    %s153 = sadd.s32 %s152, 1
    %s154 = scalar_select %p151, %s152, %s153
    %p157 = pneg %p151
    %p158 = scmp.eq.s32.totalorder %s13, 7
    %p159 = por %p157, %p158
    %p160 = scmp.ne.s32.totalorder %s152, %s155
    %p161 = scmp.eq.s32.totalorder %s13, 0
    %p162 = por %p160, %p161
    %p163 = scmp.ne.s32.totalorder %s152, %s155
    %p164 = scmp.eq.s32.totalorder %s18, 7
    %p165 = por %p163, %p164
    %p166 = scmp.ne.s32.totalorder %s155, %s156
    %p167 = scmp.eq.s32.totalorder %s18, 0
    %p168 = por %p166, %p167
    %p169 = scmp.ne.s32.totalorder %s155, %s156
    %p170 = scmp.eq.s32.totalorder %s19, 7
    %p171 = por %p169, %p170
    %p173 = scmp.ne.s32.totalorder %s156, %s172
    %p174 = scmp.eq.s32.totalorder %s19, 0
    %p175 = por %p173, %p174
    %s176 = ssub.s32 %s22, %s31
    %p177 = scmp.eq.s32.totalorder %s176, 0
    %s179 = sadd.s32 %s178, 1
    %s180 = scalar_select %p177, %s178, %s179
    %p183 = pneg %p177
    %p184 = scmp.eq.s32.totalorder %s13, 7
    %p185 = por %p183, %p184
    %p186 = scmp.ne.s32.totalorder %s178, %s181
    %p187 = scmp.eq.s32.totalorder %s13, 0
    %p188 = por %p186, %p187
    %p189 = scmp.ne.s32.totalorder %s178, %s181
    %p190 = scmp.eq.s32.totalorder %s18, 7
    %p191 = por %p189, %p190
    %p192 = scmp.ne.s32.totalorder %s181, %s182
    %p193 = scmp.eq.s32.totalorder %s18, 0
    %p194 = por %p192, %p193
    %p195 = scmp.ne.s32.totalorder %s181, %s182
    %p196 = scmp.eq.s32.totalorder %s19, 7
    %p197 = por %p195, %p196
    %p199 = scmp.ne.s32.totalorder %s182, %s198
    %p200 = scmp.eq.s32.totalorder %s19, 0
    %p201 = por %p199, %p200
    %s202 = ssub.s32 %s22, %s31
    %p203 = scmp.eq.s32.totalorder %s202, 0
    %s205 = sadd.s32 %s204, 1
    %s206 = scalar_select %p203, %s204, %s205
    %p209 = pneg %p203
    %p210 = scmp.eq.s32.totalorder %s13, 7
    %p211 = por %p209, %p210
    %p212 = scmp.ne.s32.totalorder %s204, %s207
    %p213 = scmp.eq.s32.totalorder %s13, 0
    %p214 = por %p212, %p213
    %p215 = scmp.ne.s32.totalorder %s204, %s207
    %p216 = scmp.eq.s32.totalorder %s18, 7
    %p217 = por %p215, %p216
    %p218 = scmp.ne.s32.totalorder %s207, %s208
    %p219 = scmp.eq.s32.totalorder %s18, 0
    %p220 = por %p218, %p219
    %p221 = scmp.ne.s32.totalorder %s207, %s208
    %p222 = scmp.eq.s32.totalorder %s19, 7
    %p223 = por %p221, %p222
    %p225 = scmp.ne.s32.totalorder %s208, %s224
    %p226 = scmp.eq.s32.totalorder %s19, 0
    %p227 = por %p225, %p226
    %s228 = ssub.s32 %s20, %s39
    %s229 = ssub.s32 %s21, %s35
    %s230 = sor.u32 %s228, %s229
    %p231 = scmp.eq.s32.totalorder %s230, 0
    %s233 = sadd.s32 %s232, 1
    %s234 = scalar_select %p231, %s232, %s233
    %p237 = pneg %p231
    %p238 = scmp.eq.s32.totalorder %s13, 7
    %p239 = por %p237, %p238
    %p240 = scmp.ne.s32.totalorder %s232, %s235
    %p241 = scmp.eq.s32.totalorder %s13, 0
    %p242 = por %p240, %p241
    %p243 = scmp.ne.s32.totalorder %s232, %s235
    %p244 = scmp.eq.s32.totalorder %s18, 7
    %p245 = por %p243, %p244
    %p246 = scmp.ne.s32.totalorder %s235, %s236
    %p247 = scmp.eq.s32.totalorder %s18, 0
    %p248 = por %p246, %p247
    %p249 = scmp.ne.s32.totalorder %s235, %s236
    %p250 = scmp.eq.s32.totalorder %s19, 7
    %p251 = por %p249, %p250
    %p253 = scmp.ne.s32.totalorder %s236, %s252
    %p254 = scmp.eq.s32.totalorder %s19, 0
    %p255 = por %p253, %p254
    %p256 = scmp.le.s32.totalorder 1, %s13
    %p257 = scmp.lt.s32.totalorder %s13, 9
    %p258 = pnand %p256, %p257
    %p259 = pneg %p258
    // Predicated region
    $region9: #{bartmt_forward.32} parent=5 // pred_check
      _
    $region10: #{bartmt_forward.32} parent=5 // pred_check_branch
      %261 = sbr.rel (%p258) target = $region12
    $region11: #{bartmt_forward.32} parent=5 // pred_region
      %s262 = ssub.s32 %s13, 1
      // Predicated region
      $region13: #{bartmt_forward.32} parent=11 // pred_check
        %p263 = pneg %p142
      $region14: #{bartmt_forward.32} parent=11 // pred_check_branch
        %265 = sbr.rel (%p263) target = $region16
      $region15: #{bartmt_forward.32} parent=11 // pred_region
        %p266 = scmp.lt.s32.totalorder %s24, 0
        %s267 = scalar_select %p266, %s24, 0
        %s268 = smul.addr %s267, 8
        %s269 = scalar_lea.vmem %s3, %s268
      $region16: #{bartmt_forward.32} parent=11 // pred_fallthru
        _
      // Predicated region
      $region17: #{bartmt_forward.32} parent=11 // pred_check
        %p270 = pneg %p168
      $region18: #{bartmt_forward.32} parent=11 // pred_check_branch
        %272 = sbr.rel (%p270) target = $region20
      $region19: #{bartmt_forward.32} parent=11 // pred_region
        %p273 = scmp.lt.s32.totalorder %s24, 0
        %s274 = scalar_select %p273, %s24, 0
        %s275 = smul.addr %s274, 8
        %s276 = scalar_lea.vmem %s4, %s275
      $region20: #{bartmt_forward.32} parent=11 // pred_fallthru
        _
      // Predicated region
      $region21: #{bartmt_forward.32} parent=11 // pred_check
        %p277 = pneg %p194
      $region22: #{bartmt_forward.32} parent=11 // pred_check_branch
        %279 = sbr.rel (%p277) target = $region24
      $region23: #{bartmt_forward.32} parent=11 // pred_region
        %p280 = scmp.lt.s32.totalorder %s25, 0
        %s281 = scalar_select %p280, %s25, 0
        %s282 = smul.addr %s281, 8
        %s283 = scalar_lea.vmem %s5, %s282
      $region24: #{bartmt_forward.32} parent=11 // pred_fallthru
        _
      // Predicated region
      $region25: #{bartmt_forward.32} parent=11 // pred_check
        %p284 = pneg %p220
      $region26: #{bartmt_forward.32} parent=11 // pred_check_branch
        %286 = sbr.rel (%p284) target = $region28
      $region27: #{bartmt_forward.32} parent=11 // pred_region
        %p287 = scmp.lt.s32.totalorder %s25, 0
        %s288 = scalar_select %p287, %s25, 0
        %s289 = smul.addr %s288, 8
        %s290 = scalar_lea.vmem %s6, %s289
      $region28: #{bartmt_forward.32} parent=11 // pred_fallthru
        _
    $region12: #{bartmt_forward.32} parent=5 // pred_fallthru
      _
    %p291 = scmp.lt.s32.totalorder %s13, 8
    // Predicated region
    $region29: #{bartmt_forward.32} parent=5 // pred_check
      %p292 = pneg %p291
    $region30: #{bartmt_forward.32} parent=5 // pred_check_branch
      %294 = sbr.rel (%p292) target = $region32
    $region31: #{bartmt_forward.32} parent=5 // pred_region
      // Predicated region
      $region33: #{bartmt_forward.32} parent=31 // pred_check
        %p295 = pneg %p54
      $region34: #{bartmt_forward.32} parent=31 // pred_check_branch
        %297 = sbr.rel (%p295) target = $region36
      $region35: #{bartmt_forward.32} parent=31 // pred_region
        %p298 = scmp.lt.s32.totalorder %s20, 7
        %s299 = scalar_select %p298, %s20, 7
        %p300 = scmp.lt.s32.totalorder %s21, 0
        %s301 = scalar_select %p300, %s21, 0
        %s302 = sadd.s32 %s301, %s299
        %s303 = smul.addr %s302, 4
        %s304 = scalar_lea.vmem %s0, %s303
      $region36: #{bartmt_forward.32} parent=31 // pred_fallthru
        _
      // Predicated region
      $region37: #{bartmt_forward.32} parent=31 // pred_check
        %p305 = pneg %p82
      $region38: #{bartmt_forward.32} parent=31 // pred_check_branch
        %307 = sbr.rel (%p305) target = $region40
      $region39: #{bartmt_forward.32} parent=31 // pred_region
        %p308 = scmp.lt.s32.totalorder %s20, 7
        %s309 = scalar_select %p308, %s20, 7
        %p310 = scmp.lt.s32.totalorder %s22, 0
        %s311 = scalar_select %p310, %s22, 0
        %s312 = sadd.s32 %s311, %s309
        %s313 = smul.addr %s312, 4
        %s314 = scalar_lea.vmem %s1, %s313
      $region40: #{bartmt_forward.32} parent=31 // pred_fallthru
        _
      // Predicated region
      $region41: #{bartmt_forward.32} parent=31 // pred_check
        %p315 = pneg %p110
      $region42: #{bartmt_forward.32} parent=31 // pred_check_branch
        %317 = sbr.rel (%p315) target = $region44
      $region43: #{bartmt_forward.32} parent=31 // pred_region
        %p318 = scmp.lt.s32.totalorder %s20, 7
        %s319 = scalar_select %p318, %s20, 7
        %p320 = scmp.lt.s32.totalorder %s22, 0
        %s321 = scalar_select %p320, %s22, 0
        %s322 = sadd.s32 %s321, %s319
        %s323 = smul.addr %s322, 4
        %s324 = scalar_lea.vmem %s2, %s323
      $region44: #{bartmt_forward.32} parent=31 // pred_fallthru
        _
    $region32: #{bartmt_forward.32} parent=5 // pred_fallthru
      _
    %p325 = scmp.le.s32.totalorder 1, %s13
    %p326 = scmp.lt.s32.totalorder %s13, 9
    %p327 = pnand %p325, %p326
    %p328 = pneg %p327
    // Predicated region
    $region45: #{bartmt_forward.32} parent=5 // pred_check
      _
    $region46: #{bartmt_forward.32} parent=5 // pred_check_branch
      %330 = sbr.rel (%p327) target = $region48
    $region47: #{bartmt_forward.32} parent=5 // pred_region
      %s331 = ssub.s32 %s13, 1
      %p332 = scmp.lt.s32.totalorder %s23, 7
      %s333 = scalar_select %p332, %s23, 7
      %p334 = scmp.lt.s32.totalorder %s24, 0
      %s335 = scalar_select %p334, %s24, 0
      %s336 = sadd.s32 %s335, %s333
      %s337 = smul.addr %s336, 4
      %s338 = scalar_lea.vmem %s0, %s337
      %p339 = pneg %p60
      %p340 = pneg %p57
      %p341 = scmp.lt.s32.totalorder %s23, 7
      %s342 = scalar_select %p341, %s23, 7
      %p343 = scmp.lt.s32.totalorder %s25, 0
      %s344 = scalar_select %p343, %s25, 0
      %s345 = sadd.s32 %s344, %s342
      %s346 = smul.addr %s345, 4
      %s347 = scalar_lea.vmem %s1, %s346
      %p348 = pneg %p88
      %p349 = pneg %p85
      %p350 = scmp.lt.s32.totalorder %s23, 7
      %s351 = scalar_select %p350, %s23, 7
      %p352 = scmp.lt.s32.totalorder %s25, 0
      %s353 = scalar_select %p352, %s25, 0
      %s354 = sadd.s32 %s353, %s351
      %s355 = smul.addr %s354, 4
      %s356 = scalar_lea.vmem %s2, %s355
      %p357 = pneg %p116
      %p358 = pneg %p113
      %p359 = scmp.lt.s32.totalorder %s24, 0
      %s360 = scalar_select %p359, %s24, 0
      %s361 = smul.addr %s360, 8
      %s362 = scalar_lea.vmem %s3, %s361
      %p363 = pneg %p142
      %p364 = pneg %p139
      %p365 = scmp.lt.s32.totalorder %s24, 0
      %s366 = scalar_select %p365, %s24, 0
      %s367 = smul.addr %s366, 8
      %s368 = scalar_lea.vmem %s4, %s367
      %p369 = pneg %p168
      %p370 = pneg %p165
      %p371 = scmp.lt.s32.totalorder %s25, 0
      %s372 = scalar_select %p371, %s25, 0
      %s373 = smul.addr %s372, 8
      %s374 = scalar_lea.vmem %s5, %s373
      %p375 = pneg %p194
      %p376 = pneg %p191
      %p377 = scmp.lt.s32.totalorder %s25, 0
      %s378 = scalar_select %p377, %s25, 0
      %s379 = smul.addr %s378, 8
      %s380 = scalar_lea.vmem %s6, %s379
      %p381 = pneg %p220
      %p382 = pneg %p217
      %p383 = pneg %p248
      %p384 = pneg %p245
      %p385 = scmp.lt.s32.totalorder %s23, 7
      %s386 = scalar_select %p385, %s23, 7
      %p387 = scmp.lt.s32.totalorder %s24, 0
      %s388 = scalar_select %p387, %s24, 0
      %s389 = sadd.s32 %s388, %s386
      %s390 = smul.addr %s389, 4
      %s391 = scalar_lea.vmem %s7, %s390
      %p392 = scmp.lt.s32.totalorder %s23, 7
      %s393 = scalar_select %p392, %s23, 7
      %p394 = scmp.lt.s32.totalorder %s24, 0
      %s395 = scalar_select %p394, %s24, 0
      %s396 = sadd.s32 %s395, %s393
      %s397 = smul.addr %s396, 4
      %s398 = scalar_lea.vmem %s0, %s397
      %p399 = scmp.lt.s32.totalorder %s23, 7
      %s400 = scalar_select %p399, %s23, 7
      %p401 = scmp.lt.s32.totalorder %s25, 0
      %s402 = scalar_select %p401, %s25, 0
      %s403 = sadd.s32 %s402, %s400
      %s404 = smul.addr %s403, 4
      %s405 = scalar_lea.vmem %s1, %s404
      %p406 = scmp.lt.s32.totalorder %s23, 7
      %s407 = scalar_select %p406, %s23, 7
      %p408 = scmp.lt.s32.totalorder %s25, 0
      %s409 = scalar_select %p408, %s25, 0
      %s410 = sadd.s32 %s409, %s407
      %s411 = smul.addr %s410, 4
      %s412 = scalar_lea.vmem %s2, %s411
      %p413 = scmp.lt.s32.totalorder %s24, 0
      %s414 = scalar_select %p413, %s24, 0
      %s415 = smul.addr %s414, 8
      %s416 = scalar_lea.vmem %s3, %s415
      %p417 = scmp.lt.s32.totalorder %s24, 0
      %s418 = scalar_select %p417, %s24, 0
      %s419 = smul.addr %s418, 8
      %s420 = scalar_lea.vmem %s4, %s419
      %p421 = scmp.lt.s32.totalorder %s25, 0
      %s422 = scalar_select %p421, %s25, 0
      %s423 = smul.addr %s422, 8
      %s424 = scalar_lea.vmem %s5, %s423
      %p425 = scmp.lt.s32.totalorder %s25, 0
      %s426 = scalar_select %p425, %s25, 0
      %s427 = smul.addr %s426, 8
      %s428 = scalar_lea.vmem %s6, %s427
      %p429 = scmp.lt.s32.totalorder %s23, 7
      %s430 = scalar_select %p429, %s23, 7
      %p431 = scmp.lt.s32.totalorder %s24, 0
      %s432 = scalar_select %p431, %s24, 0
      %s433 = sadd.s32 %s432, %s430
      %s434 = smul.addr %s433, 4
      %s435 = scalar_lea.vmem %s7, %s434
      %p437 = scmp.eq.s32.totalorder %s25, 0
      // Predicated region
      $region49: #{bartmt_forward.32} parent=47 // pred_check
        %p438 = pneg %p437
      $region50: #{bartmt_forward.32} parent=47 // pred_check_branch
        %440 = sbr.rel (%p438) target = $region52
      $region51: #{bartmt_forward.32} parent=47 // pred_region
        %vm441 = vcmask 7168
        %442 = vst.msk [vmem:[#allocation2] sm:$0xff] %vm441, -inf
        %443 = vst.msk [vmem:[#allocation3] sm:$0xff] %vm441, 0.0
        %vm444 = vcmask 64512
        %445 = vst.msk [vmem:[#allocation4] sm:$0xff] %vm444, 0.0
        %v446 = vld [vmem:[%s398] sm:$0xf]
        %v447 = vunpack.c.l.bf16 %v446
        %v448 = vld [vmem:[%s416] sm:$0xff]
        %v449 = vld [vmem:[%s420] sm:$0xff]
        %v450 = vsub.f32 0.0, %v447
        %452 = vrot.lane.b32.xlu0 %v450, 124
        %v453 = vpop.permute.xlu0 %452
        %456 = vrot.lane.b32.xlu0 %v447, 4
        %v457 = vpop.permute.xlu0 %456
        %vm459 = vcmask 31744
        %v460 = vsel %vm459, %v453, %v457
        %v461 = vmul.f32 %v447, %v448
        %v462 = vmul.f32 %v460, %v449
        %v463 = vadd.f32 %v461, %v462
        %v464 = vmul.f32 %v463, 0.35355338
        %v465 = vpack.c.bf16 %v464, %v464
        %vm466 = vcmask 60416
        %467 = vst.msk [vmem:[#allocation5] sm:$0xf] %vm466, %v465
      $region52: #{bartmt_forward.32} parent=47 // pred_fallthru
        _
      %v468 = vld [vmem:[%s405] sm:$0xf]
      %v469 = vunpack.c.l.bf16 %v468
      %v470 = vld [vmem:[%s424] sm:$0xff]
      %v471 = vld [vmem:[%s428] sm:$0xff]
      %v472 = vsub.f32 0.0, %v469
      %474 = vrot.lane.b32.xlu0 %v472, 124
      %v475 = vpop.permute.xlu0 %474
      %478 = vrot.lane.b32.xlu0 %v469, 4
      %v479 = vpop.permute.xlu0 %478
      %vm481 = vcmask 31744
      %v482 = vsel %vm481, %v475, %v479
      %v483 = vmul.f32 %v469, %v470
      %v484 = vmul.f32 %v482, %v471
      %v485 = vadd.f32 %v483, %v484
      %v486 = vpack.c.bf16 %v485, %v485
      %v487 = vld [vmem:[%s412] sm:$0xf]
      %v488 = vld [vmem:[#allocation5] sm:$0xf]
      %vm489 = vcmask 64512
      %v491 = vsel %vm489, %v488, 0
      %v494 = vsel %vm489, %v486, 0
      %496 = vmatpush.bf16.xpose.msra.mxu0 0
      %497 = vmatpush.bf16.xpose.msra.mxu0 0
      %498 = vmatpush.bf16.xpose.msra.mxu0 0
      %499 = vmatpush.bf16.xpose.msra.mxu0 0
      %500 = vmatpush.bf16.xpose.msra.mxu0 0
      %501 = vmatpush.bf16.xpose.msra.mxu0 0
      %502 = vmatpush.bf16.xpose.msra.mxu0 0
      %503 = vmatpush.bf16.xpose.msra.mxu0 %v494
      %504 = vmatmul.bf16.gmra.mxu0 %v491
      %v505 = vpop.f32.mrf.mxu0
      %v506 = vadd.f32 0.0, %v505
      %v507 = vpop.f32.mrf.mxu0
      %508 = vdwg.mxu0
      %v509 = vld [vmem:[#allocation2] sm:$0xff]
      %v510 = vsel %vm489, %v506, -inf
      %511 = vmax.xlane.f32.xlu0 %v510
      %v512 = vpop.xlane.xlu0 %511
      %v513 = vmax.f32 %v509, %v512
      %v514 = vsub.f32 %v509, %v513
      %v515 = vmul.f32 %v514, 1.442695
      %v516 = vpow.pop %v515
      %518 = vset.pattern.permute.xlu0 0
      %519 = vperm.xlu0 %518, %v513
      %v520 = vpop.permute.xlu0 %519
      %v522 = vsub.f32 %v506, %v520
      %v523 = vmul.f32 %v522, 1.442695
      %v524 = vpow.pop %v523
      %v525 = vld [vmem:[#allocation3] sm:$0xff]
      %v526 = vmul.f32 %v516, %v525
      %v527 = vsel %vm489, %v524, 0.0
      %528 = vadd.xlane.f32.xlu0 %v527
      %v529 = vpop.xlane.xlu0 %528
      %v530 = vadd.f32 %v526, %v529
      %vm531 = vcmask 7168
      %532 = vst.msk [vmem:[#allocation3] sm:$0xff] %vm531, %v530
      %v533 = vld [vmem:[#allocation4] sm:$0xff]
      %535 = vset.pattern.permute.xlu0 0
      %536 = vperm.xlu0 %535, %v516
      %v537 = vpop.permute.xlu0 %536
      %v539 = vmul.f32 %v537, %v533
      %v540 = vpack.c.bf16 %v524, %v524
      %v542 = vsel %vm489, %v540, 0
      %vm544 = vcmask 1043456
      %v546 = vsel %vm544, %v487, 0
      %548 = vmatpush.bf16.msra.mxu0 0
      %549 = vmatpush.bf16.msra.mxu0 0
      %550 = vmatpush.bf16.msra.mxu0 0
      %551 = vmatpush.bf16.msra.mxu0 0
      %552 = vmatpush.bf16.msra.mxu0 0
      %553 = vmatpush.bf16.msra.mxu0 0
      %554 = vmatpush.bf16.msra.mxu0 0
      %555 = vmatpush.bf16.msra.mxu0 %v546
      %556 = vmatmul.bf16.gmra.mxu0 %v542
      %v557 = vpop.f32.mrf.mxu0
      %v558 = vadd.f32 0.0, %v557
      %v559 = vpop.f32.mrf.mxu0
      %560 = vdwg.mxu0
      %v561 = vadd.f32 %v539, %v558
      %562 = vst.msk [vmem:[#allocation4] sm:$0xff] %vm489, %v561
      %563 = vst.msk [vmem:[#allocation2] sm:$0xff] %vm531, %v513
      // Predicated region
      $region53: #{bartmt_forward.32} parent=47 // pred_check
        %p564 = pneg %p437
      $region54: #{bartmt_forward.32} parent=47 // pred_check_branch
        %566 = sbr.rel (%p564) target = $region56
      $region55: #{bartmt_forward.32} parent=47 // pred_region
        %v567 = vld [vmem:[#allocation3] sm:$0xff]
        %v568 = vrcp.pop %v567
        %v569 = vld [vmem:[#allocation4] sm:$0xff]
        %571 = vset.pattern.permute.xlu0 0
        %572 = vperm.xlu0 %571, %v568
        %v573 = vpop.permute.xlu0 %572
        %v575 = vmul.f32 %v569, %v573
        %v576 = vpack.c.bf16 %v575, %v575
        %vm577 = vcmask 60416
        %578 = vst.msk [vmem:[%s435] sm:$0xf] %vm577, %v576
      $region56: #{bartmt_forward.32} parent=47 // pred_fallthru
        _
      %p579 = scmp.lt.s32.totalorder %s23, 7
      %s580 = scalar_select %p579, %s23, 7
      %p581 = scmp.lt.s32.totalorder %s24, 0
      %s582 = scalar_select %p581, %s24, 0
      %s583 = sadd.s32 %s582, %s580
      %s584 = smul.addr %s583, 4
      %s585 = scalar_lea.vmem %s7, %s584
      // Predicated region
      $region57: #{bartmt_forward.32} parent=47 // pred_check
        %p586 = pneg %p245
      $region58: #{bartmt_forward.32} parent=47 // pred_check_branch
        %588 = sbr.rel (%p586) target = $region60
      $region59: #{bartmt_forward.32} parent=47 // pred_region
        _
      $region60: #{bartmt_forward.32} parent=47 // pred_fallthru
        _
    $region48: #{bartmt_forward.32} parent=5 // pred_fallthru
      _
    %p589 = scmp.le.s32.totalorder 2, %s13
    // Predicated region
    $region61: #{bartmt_forward.32} parent=5 // pred_check
      %p590 = pneg %p589
    $region62: #{bartmt_forward.32} parent=5 // pred_check_branch
      %592 = sbr.rel (%p590) target = $region64
    $region63: #{bartmt_forward.32} parent=5 // pred_region
      %s593 = ssub.s32 %s13, 2
      // Predicated region
      $region65: #{bartmt_forward.32} parent=63 // pred_check
        %p594 = pneg %p251
      $region66: #{bartmt_forward.32} parent=63 // pred_check_branch
        %596 = sbr.rel (%p594) target = $region68
      $region67: #{bartmt_forward.32} parent=63 // pred_region
        %p597 = scmp.lt.s32.totalorder %s26, 7
        %s598 = scalar_select %p597, %s26, 7
        %p599 = scmp.lt.s32.totalorder %s27, 0
        %s600 = scalar_select %p599, %s27, 0
        %s601 = sadd.s32 %s600, %s598
        %s602 = smul.addr %s601, 4
        %s603 = scalar_lea.vmem %s7, %s602
      $region68: #{bartmt_forward.32} parent=63 // pred_fallthru
        _
    $region64: #{bartmt_forward.32} parent=5 // pred_fallthru
      _
  $region6: #{bartmt_forward.32} parent=0 // loop_footer
    %s17 = sadd.s32 1, %s13
  $region7: #{bartmt_forward.32} parent=0 // loop_footer_branch
    %12 = sbr.rel target = $region3
  $region8: #{bartmt_forward.32} parent=0 // loop_exit
    _

// kernel: bartmt_forward.47
$region0: #{bartmt_forward.47}
  #allocation0 [shape = 'u32[]', space=smem, size = 0x4, offset = 0x4, fixed_abs, tag = 'smem constant byte address 0x4 - core index']
  #allocation1 [shape = 'u32[72,128]{1,0:T(1,128)}', space=vmem, size = 0x9000, scoped, tag = 'internal scratch']
  #allocation2 [shape = 'f32[16,64]{1,0:T(8,128)}', space=vmem, size = 0x2000, scoped, tag = 'scratch operand']
  %s0 = inlined_call_operand.vmem [shape: bf16[16,32], index: 0, kind: input, shape index: {}]
  %s1 = inlined_call_operand.vmem [shape: bf16[32,64], index: 1, kind: input, shape index: {}]
  %s2 = inlined_call_operand.vmem [shape: bf16[16,64], index: 2, kind: output, shape index: {}]
  %s3 = sld [smem:[#allocation0]]
  $region26: #{bartmt_forward.47} parent=0
    _
  %s5 = ssub.s32 1, %s3
  %s6 = scalar_select 0, %s5, %s3
  // Predicated region
  $region2: #{bartmt_forward.47} parent=0 // pred_check
    _
  $region3: #{bartmt_forward.47} parent=0 // pred_check_branch
    %8 = sbr.rel (0) target = $region5
  $region4: #{bartmt_forward.47} parent=0 // pred_region
    _
  $region5: #{bartmt_forward.47} parent=0 // pred_fallthru
    _
  // Predicated region
  $region6: #{bartmt_forward.47} parent=0 // pred_check
    _
  $region7: #{bartmt_forward.47} parent=0 // pred_check_branch
    %10 = sbr.rel (0) target = $region9
  $region8: #{bartmt_forward.47} parent=0 // pred_region
    _
  $region9: #{bartmt_forward.47} parent=0 // pred_fallthru
    _
  %p12 = scmp.eq.s32.totalorder 0, 0
  // Predicated region
  $region10: #{bartmt_forward.47} parent=0 // pred_check
    %p13 = pneg %p12
  $region11: #{bartmt_forward.47} parent=0 // pred_check_branch
    %15 = sbr.rel (%p13) target = $region13
  $region12: #{bartmt_forward.47} parent=0 // pred_region
    %vm16 = vcmask 523264
    %17 = vst.msk [vmem:[#allocation2] sm:$0xff] %vm16, 0.0
    %18 = vst.msk [vmem:[#allocation2 + $0x8] sm:$0xff] %vm16, 0.0
  $region13: #{bartmt_forward.47} parent=0 // pred_fallthru
    _
  %v19 = vld [vmem:[#allocation2] sm:$0xff]
  %v20 = vld [vmem:[#allocation2 + $0x8] sm:$0xff]
  %v21 = vld [vmem:[%s0] sm:$0xf]
  %v22 = vld [vmem:[%s0 + $0x4] sm:$0xf]
  %v23 = vld [vmem:[%s1] sm:$0xf]
  %v24 = vld [vmem:[%s1 + $0x4] sm:$0xf]
  %v25 = vld [vmem:[%s1 + $0x8] sm:$0xf]
  %v26 = vld [vmem:[%s1 + $0xc] sm:$0xf]
  %v29 = vunpack.c.l.b16 %v21
  %v30 = vunpack.c.l.b16 %v22
  %v31 = vpack.c.b16 %v30, %v29
  %v36 = vunpack.c.l.b16 %v23
  %v37 = vunpack.c.l.b16 %v24
  %v38 = vunpack.c.l.b16 %v25
  %v39 = vunpack.c.l.b16 %v26
  %v40 = vpack.c.b16 %v37, %v36
  %v41 = vpack.c.b16 %v39, %v38
  %vm44 = vcmask 261120
  %v46 = vsel %vm44, %v31, 0
  %48 = vmatpush.bf16.msra.mxu0 0
  %49 = vmatpush.bf16.msra.mxu0 0
  %50 = vmatpush.bf16.msra.mxu0 0
  %51 = vmatpush.bf16.msra.mxu0 0
  %52 = vmatpush.bf16.msra.mxu0 0
  %53 = vmatpush.bf16.msra.mxu0 0
  %54 = vmatpush.bf16.msra.mxu0 %v41
  %55 = vmatpush.bf16.msra.mxu0 %v40
  %56 = vmatmul.bf16.gmra.mxu0 %v46
  %v57 = vpop.f32.mrf.mxu0
  %v58 = vadd.f32 0.0, %v57
  %v59 = vpop.f32.mrf.mxu0
  %v60 = vadd.f32 0.0, %v59
  %61 = vdwg.mxu0
  %v62 = vadd.f32 %v19, %v58
  %v63 = vadd.f32 %v20, %v60
  %vm64 = vcmask 523264
  %65 = vst.msk [vmem:[#allocation2] sm:$0xff] %vm64, %v62
  %66 = vst.msk [vmem:[#allocation2 + $0x8] sm:$0xff] %vm64, %v63
  // Predicated region
  $region14: #{bartmt_forward.47} parent=0 // pred_check
    %p67 = pneg %p12
  $region15: #{bartmt_forward.47} parent=0 // pred_check_branch
    %69 = sbr.rel (%p67) target = $region17
  $region16: #{bartmt_forward.47} parent=0 // pred_region
    %v70 = vld [vmem:[#allocation2] sm:$0xff]
    %v71 = vld [vmem:[#allocation2 + $0x8] sm:$0xff]
    %v72 = vpack.c.bf16 %v70, %v70
    %v73 = vpack.c.bf16 %v71, %v71
    %vm74 = vcmask 519168
    %75 = vst.msk [vmem:[%s2] sm:$0xf] %vm74, %v72
    %76 = vst.msk [vmem:[%s2 + $0x4] sm:$0xf] %vm74, %v73
  $region17: #{bartmt_forward.47} parent=0 // pred_fallthru
    _
  // Predicated region
  $region18: #{bartmt_forward.47} parent=0 // pred_check
    _
  $region19: #{bartmt_forward.47} parent=0 // pred_check_branch
    %78 = sbr.rel (0) target = $region21
  $region20: #{bartmt_forward.47} parent=0 // pred_region
    _
  $region21: #{bartmt_forward.47} parent=0 // pred_fallthru
    _
  // Predicated region
  $region22: #{bartmt_forward.47} parent=0 // pred_check
    _
  $region23: #{bartmt_forward.47} parent=0 // pred_check_branch
    %80 = sbr.rel (0) target = $region25
  $region24: #{bartmt_forward.47} parent=0 // pred_region
    _
  $region25: #{bartmt_forward.47} parent=0 // pred_fallthru
    _

// kernel: bartmt_forward.61
$region0: #{bartmt_forward.61}
  #allocation0 [shape = 'u32[]', space=smem, size = 0x4, offset = 0x4, fixed_abs, tag = 'smem constant byte address 0x4 - core index']
  #allocation1 [shape = 'u32[72,128]{1,0:T(1,128)}', space=vmem, size = 0x9000, scoped, tag = 'internal scratch']
  #allocation2 [shape = 'f32[16,128]{1,0:T(8,128)}', space=vmem, size = 0x2000, scoped, tag = 'scratch operand']
  %s0 = inlined_call_operand.vmem [shape: bf16[16,32], index: 0, kind: input, shape index: {}]
  %s1 = inlined_call_operand.vmem [shape: bf16[32,128], index: 1, kind: input, shape index: {}]
  %s2 = inlined_call_operand.vmem [shape: f32[1,128], index: 2, kind: input, shape index: {}]
  %s3 = inlined_call_operand.hbm [shape: f32[16,128], index: 3, kind: output, shape index: {}]
  %s4 = sld [smem:[#allocation0]]
  $region30: #{bartmt_forward.61} parent=0
    _
  %s6 = ssub.s32 1, %s4
  %s7 = scalar_select 0, %s6, %s4
  $region1: #{bartmt_forward.61} parent=0
    #allocation3 [shape = 'u8[8192]{0}', space=vmem, size = 0x2000, scoped, tag = 'output window, operand 0, single buffered']
    #allocation4 [shape = 's32[1]{0}', space=sflag, size = 0x4, scoped, tag = 'scoped memory for bartmt_forward.61']
    %8 = vsyncpa [#allocation4], 0
    // Predicated region
    $region2: #{bartmt_forward.61} parent=1 // pred_check
      _
    $region3: #{bartmt_forward.61} parent=1 // pred_check_branch
      %10 = sbr.rel (0) target = $region5
    $region4: #{bartmt_forward.61} parent=1 // pred_region
      _
    $region5: #{bartmt_forward.61} parent=1 // pred_fallthru
      _
    // Predicated region
    $region6: #{bartmt_forward.61} parent=1 // pred_check
      _
    $region7: #{bartmt_forward.61} parent=1 // pred_check_branch
      %12 = sbr.rel (0) target = $region9
    $region8: #{bartmt_forward.61} parent=1 // pred_region
      _
    $region9: #{bartmt_forward.61} parent=1 // pred_fallthru
      _
    // Predicated region
    $region10: #{bartmt_forward.61} parent=1 // pred_check
      _
    $region11: #{bartmt_forward.61} parent=1 // pred_check_branch
      %14 = sbr.rel (0) target = $region13
    $region12: #{bartmt_forward.61} parent=1 // pred_region
      _
    $region13: #{bartmt_forward.61} parent=1 // pred_fallthru
      _
    %p16 = scmp.eq.s32.totalorder 0, 0
    // Predicated region
    $region14: #{bartmt_forward.61} parent=1 // pred_check
      %p17 = pneg %p16
    $region15: #{bartmt_forward.61} parent=1 // pred_check_branch
      %19 = sbr.rel (%p17) target = $region17
    $region16: #{bartmt_forward.61} parent=1 // pred_region
      %20 = vst [vmem:[#allocation2] sm:$0xff] 0.0
      %21 = vst [vmem:[#allocation2 + $0x8] sm:$0xff] 0.0
    $region17: #{bartmt_forward.61} parent=1 // pred_fallthru
      _
    %v22 = vld [vmem:[#allocation2] sm:$0xff]
    %v23 = vld [vmem:[#allocation2 + $0x8] sm:$0xff]
    %v24 = vld [vmem:[%s0] sm:$0xf]
    %v25 = vld [vmem:[%s0 + $0x4] sm:$0xf]
    %v26 = vld [vmem:[%s1] sm:$0xf]
    %v27 = vld [vmem:[%s1 + $0x4] sm:$0xf]
    %v28 = vld [vmem:[%s1 + $0x8] sm:$0xf]
    %v29 = vld [vmem:[%s1 + $0xc] sm:$0xf]
    %v32 = vunpack.c.l.b16 %v24
    %v33 = vunpack.c.l.b16 %v25
    %v34 = vpack.c.b16 %v33, %v32
    %v39 = vunpack.c.l.b16 %v26
    %v40 = vunpack.c.l.b16 %v27
    %v41 = vunpack.c.l.b16 %v28
    %v42 = vunpack.c.l.b16 %v29
    %v43 = vpack.c.b16 %v40, %v39
    %v44 = vpack.c.b16 %v42, %v41
    %vm47 = vcmask 261120
    %v49 = vsel %vm47, %v34, 0
    %51 = vmatpush.bf16.msra.mxu0 0
    %52 = vmatpush.bf16.msra.mxu0 0
    %53 = vmatpush.bf16.msra.mxu0 0
    %54 = vmatpush.bf16.msra.mxu0 0
    %55 = vmatpush.bf16.msra.mxu0 0
    %56 = vmatpush.bf16.msra.mxu0 0
    %57 = vmatpush.bf16.msra.mxu0 %v44
    %58 = vmatpush.bf16.msra.mxu0 %v43
    %59 = vmatmul.bf16.gmra.mxu0 %v49
    %v60 = vpop.f32.mrf.mxu0
    %v61 = vadd.f32 0.0, %v60
    %v62 = vpop.f32.mrf.mxu0
    %v63 = vadd.f32 0.0, %v62
    %64 = vdwg.mxu0
    %v65 = vadd.f32 %v22, %v61
    %v66 = vadd.f32 %v23, %v63
    %67 = vst [vmem:[#allocation2] sm:$0xff] %v65
    %68 = vst [vmem:[#allocation2 + $0x8] sm:$0xff] %v66
    // Predicated region
    $region18: #{bartmt_forward.61} parent=1 // pred_check
      %p69 = pneg %p16
    $region19: #{bartmt_forward.61} parent=1 // pred_check_branch
      %71 = sbr.rel (%p69) target = $region21
    $region20: #{bartmt_forward.61} parent=1 // pred_region
      %v72 = vld [vmem:[#allocation2] sm:$0xff]
      %v73 = vld [vmem:[#allocation2 + $0x8] sm:$0xff]
      %v74 = vld [vmem:[%s2] sm:$0x1]
      %v76 = vperm.slane %v74, 0
      %v78 = vadd.f32 %v72, %v76
      %v79 = vadd.f32 %v73, %v76
      %80 = vst [vmem:[#allocation3] sm:$0xff] %v78
      %81 = vst [vmem:[#allocation3 + $0x8] sm:$0xff] %v79
    $region21: #{bartmt_forward.61} parent=1 // pred_fallthru
      _
    // Predicated region
    $region22: #{bartmt_forward.61} parent=1 // pred_check
      _
    $region23: #{bartmt_forward.61} parent=1 // pred_check_branch
      %83 = sbr.rel (0) target = $region25
    $region24: #{bartmt_forward.61} parent=1 // pred_region
      %85 = vsyncadd [#allocation4], 0
      %s86 = sshll.u32 [#allocation3], 4
      %s87 = int_to_ptr.vmem [resolvable:$true] %s86
      %s88 = sshll.u32 %s3, 4
      %s89 = int_to_ptr.hbm [resolvable:$true] %s88
      %94 = dma.vmem_to_hbm [thread:$0]  %s87, 256, %s89, [#allocation4], 128, 128, 8
    $region25: #{bartmt_forward.61} parent=1 // pred_fallthru
      _
    // Predicated region
    $region26: #{bartmt_forward.61} parent=1 // pred_check
      _
    $region27: #{bartmt_forward.61} parent=1 // pred_check_branch
      %96 = sbr.rel (0) target = $region29
    $region28: #{bartmt_forward.61} parent=1 // pred_region
      %98 = dma.done [#allocation4], 256
    $region29: #{bartmt_forward.61} parent=1 // pred_fallthru
      _
    %99 = vsyncpa [#allocation4], 1

// kernel: bartmt_forward.41
$region0: #{bartmt_forward.41}
  #allocation0 [shape = 'u32[]', space=smem, size = 0x4, offset = 0x4, fixed_abs, tag = 'smem constant byte address 0x4 - core index']
  #allocation1 [shape = 'u32[72,128]{1,0:T(1,128)}', space=vmem, size = 0x9000, scoped, tag = 'internal scratch']
  %s0 = inlined_call_operand.vmem [shape: bf16[8,32], index: 0, kind: input, shape index: {}]
  %s1 = inlined_call_operand.vmem [shape: bf16[32,32], index: 1, kind: input, shape index: {}]
  %s2 = inlined_call_operand.vmem [shape: f32[1,32], index: 2, kind: input, shape index: {}]
  %s3 = inlined_call_operand.vmem [shape: bf16[32,11], index: 3, kind: input, shape index: {}]
  %s4 = inlined_call_operand.vmem [shape: f32[1,11], index: 4, kind: input, shape index: {}]
  %s5 = inlined_call_operand.hbm [shape: f32[8,11], index: 5, kind: output, shape index: {}]
  %s6 = sld [smem:[#allocation0]]
  $region30: #{bartmt_forward.41} parent=0
    _
  %s8 = ssub.s32 1, %s6
  %s9 = scalar_select 0, %s8, %s6
  $region1: #{bartmt_forward.41} parent=0
    #allocation2 [shape = 'u8[4096]{0}', space=vmem, size = 0x1000, scoped, tag = 'output window, operand 0, single buffered']
    #allocation3 [shape = 's32[1]{0}', space=sflag, size = 0x4, scoped, tag = 'scoped memory for bartmt_forward.41']
    %10 = vsyncpa [#allocation3], 0
    // Predicated region
    $region2: #{bartmt_forward.41} parent=1 // pred_check
      _
    $region3: #{bartmt_forward.41} parent=1 // pred_check_branch
      %12 = sbr.rel (0) target = $region5
    $region4: #{bartmt_forward.41} parent=1 // pred_region
      _
    $region5: #{bartmt_forward.41} parent=1 // pred_fallthru
      _
    // Predicated region
    $region6: #{bartmt_forward.41} parent=1 // pred_check
      _
    $region7: #{bartmt_forward.41} parent=1 // pred_check_branch
      %14 = sbr.rel (0) target = $region9
    $region8: #{bartmt_forward.41} parent=1 // pred_region
      _
    $region9: #{bartmt_forward.41} parent=1 // pred_fallthru
      _
    // Predicated region
    $region10: #{bartmt_forward.41} parent=1 // pred_check
      _
    $region11: #{bartmt_forward.41} parent=1 // pred_check_branch
      %16 = sbr.rel (0) target = $region13
    $region12: #{bartmt_forward.41} parent=1 // pred_region
      _
    $region13: #{bartmt_forward.41} parent=1 // pred_fallthru
      _
    // Predicated region
    $region14: #{bartmt_forward.41} parent=1 // pred_check
      _
    $region15: #{bartmt_forward.41} parent=1 // pred_check_branch
      %18 = sbr.rel (0) target = $region17
    $region16: #{bartmt_forward.41} parent=1 // pred_region
      _
    $region17: #{bartmt_forward.41} parent=1 // pred_fallthru
      _
    // Predicated region
    $region18: #{bartmt_forward.41} parent=1 // pred_check
      _
    $region19: #{bartmt_forward.41} parent=1 // pred_check_branch
      %20 = sbr.rel (0) target = $region21
    $region20: #{bartmt_forward.41} parent=1 // pred_region
      _
    $region21: #{bartmt_forward.41} parent=1 // pred_fallthru
      _
    %v22 = vld [vmem:[%s0] sm:$0xf]
    %v23 = vld [vmem:[%s1] sm:$0xf]
    %v24 = vld [vmem:[%s1 + $0x4] sm:$0xf]
    %v25 = vld [vmem:[%s1 + $0x8] sm:$0xf]
    %v26 = vld [vmem:[%s1 + $0xc] sm:$0xf]
    %v27 = vld [vmem:[%s2] sm:$0x1]
    %v29 = vperm.slane %v27, 0
    %v35 = vunpack.c.l.b16 %v23
    %v36 = vunpack.c.l.b16 %v24
    %v37 = vunpack.c.l.b16 %v25
    %v38 = vunpack.c.l.b16 %v26
    %v39 = vpack.c.b16 %v36, %v35
    %v40 = vpack.c.b16 %v38, %v37
    %vm43 = vcmask 261120
    %v45 = vsel %vm43, %v22, 0
    %47 = vmatpush.bf16.msra.mxu0 0
    %48 = vmatpush.bf16.msra.mxu0 0
    %49 = vmatpush.bf16.msra.mxu0 0
    %50 = vmatpush.bf16.msra.mxu0 0
    %51 = vmatpush.bf16.msra.mxu0 0
    %52 = vmatpush.bf16.msra.mxu0 0
    %53 = vmatpush.bf16.msra.mxu0 %v40
    %54 = vmatpush.bf16.msra.mxu0 %v39
    %55 = vmatmul.bf16.gmra.mxu0 %v45
    %v56 = vpop.f32.mrf.mxu0
    %v57 = vadd.f32 %v29, %v56
    %v58 = vpop.f32.mrf.mxu0
    %59 = vdwg.mxu0
    %v60 = vmax.f32 %v57, 0.0
    %v61 = vpack.c.bf16 %v60, %v60
    %v62 = vld [vmem:[%s3] sm:$0xf]
    %v63 = vld [vmem:[%s3 + $0x4] sm:$0xf]
    %v64 = vld [vmem:[%s3 + $0x8] sm:$0xf]
    %v65 = vld [vmem:[%s3 + $0xc] sm:$0xf]
    %v66 = vld [vmem:[%s4] sm:$0x1]
    %v68 = vperm.slane %v66, 0
    %v74 = vunpack.c.l.b16 %v62
    %v75 = vunpack.c.l.b16 %v63
    %v76 = vunpack.c.l.b16 %v64
    %v77 = vunpack.c.l.b16 %v65
    %v78 = vpack.c.b16 %v75, %v74
    %v79 = vpack.c.b16 %v77, %v76
    %v83 = vsel %vm43, %v61, 0
    %85 = vmatpush.bf16.msra.mxu0 0
    %86 = vmatpush.bf16.msra.mxu0 0
    %87 = vmatpush.bf16.msra.mxu0 0
    %88 = vmatpush.bf16.msra.mxu0 0
    %89 = vmatpush.bf16.msra.mxu0 0
    %90 = vmatpush.bf16.msra.mxu0 0
    %91 = vmatpush.bf16.msra.mxu0 %v79
    %92 = vmatpush.bf16.msra.mxu0 %v78
    %93 = vmatmul.bf16.gmra.mxu0 %v83
    %v94 = vpop.f32.mrf.mxu0
    %v95 = vadd.f32 %v68, %v94
    %v96 = vpop.f32.mrf.mxu0
    %97 = vdwg.mxu0
    %vm98 = vcmask 89088
    %99 = vst.msk [vmem:[#allocation2] sm:$0xff] %vm98, %v95
    // Predicated region
    $region22: #{bartmt_forward.41} parent=1 // pred_check
      _
    $region23: #{bartmt_forward.41} parent=1 // pred_check_branch
      %101 = sbr.rel (0) target = $region25
    $region24: #{bartmt_forward.41} parent=1 // pred_region
      %103 = vsyncadd [#allocation3], 0
      %s105 = sshll.u32 [#allocation2], 4
      %s106 = int_to_ptr.vmem [resolvable:$true] %s105
      %s107 = sshll.u32 %s5, 4
      %s108 = int_to_ptr.hbm [resolvable:$true] %s107
      %110 = dma.vmem_to_hbm [thread:$0]  %s106, 128, %s108, [#allocation3]
    $region25: #{bartmt_forward.41} parent=1 // pred_fallthru
      _
    // Predicated region
    $region26: #{bartmt_forward.41} parent=1 // pred_check
      _
    $region27: #{bartmt_forward.41} parent=1 // pred_check_branch
      %112 = sbr.rel (0) target = $region29
    $region28: #{bartmt_forward.41} parent=1 // pred_region
      %114 = dma.done [#allocation3], 128
    $region29: #{bartmt_forward.41} parent=1 // pred_fallthru
      _
    %115 = vsyncpa [#allocation3], 1

// kernel: bartmt_forward.42
$region0: #{bartmt_forward.42}
  #allocation0 [shape = 'u32[]', space=smem, size = 0x4, offset = 0x4, fixed_abs, tag = 'smem constant byte address 0x4 - core index']
  #allocation1 [shape = 'u32[72,128]{1,0:T(1,128)}', space=vmem, size = 0x9000, scoped, tag = 'internal scratch']
  #allocation2 [shape = 'f32[1,1]{1,0:T(1,128)S(1)}', space=vmem, size = 0x200, scoped, tag = 'scoped memory for bartmt_forward.42']
  %s0 = inlined_call_operand.vmem [shape: bf16[8,32], index: 0, kind: input, shape index: {}]
  %s1 = inlined_call_operand.vmem [shape: bf16[32,32], index: 1, kind: input, shape index: {}]
  %s2 = inlined_call_operand.vmem [shape: f32[1,32], index: 2, kind: input, shape index: {}]
  %s3 = inlined_call_operand.vmem [shape: bf16[32,1], index: 3, kind: input, shape index: {}]
  %s4 = inlined_call_operand.<no memory space> [shape: f32[1,1], index: 4, kind: input, shape index: {}]
  %s5 = inlined_call_operand.vmem [shape: f32[8,1], index: 5, kind: output, shape index: {}]
  %s6 = sld [smem:[#allocation0]]
  $region30: #{bartmt_forward.42} parent=0
    _
  %s8 = ssub.s32 1, %s6
  %s9 = scalar_select 0, %s8, %s6
  %v10 = vstv %s4
  %11 = vst [vmem:[#allocation2] sm:$0x1] %v10
  // Predicated region
  $region2: #{bartmt_forward.42} parent=0 // pred_check
    _
  $region3: #{bartmt_forward.42} parent=0 // pred_check_branch
    %13 = sbr.rel (0) target = $region5
  $region4: #{bartmt_forward.42} parent=0 // pred_region
    _
  $region5: #{bartmt_forward.42} parent=0 // pred_fallthru
    _
  // Predicated region
  $region6: #{bartmt_forward.42} parent=0 // pred_check
    _
  $region7: #{bartmt_forward.42} parent=0 // pred_check_branch
    %15 = sbr.rel (0) target = $region9
  $region8: #{bartmt_forward.42} parent=0 // pred_region
    _
  $region9: #{bartmt_forward.42} parent=0 // pred_fallthru
    _
  // Predicated region
  $region10: #{bartmt_forward.42} parent=0 // pred_check
    _
  $region11: #{bartmt_forward.42} parent=0 // pred_check_branch
    %17 = sbr.rel (0) target = $region13
  $region12: #{bartmt_forward.42} parent=0 // pred_region
    _
  $region13: #{bartmt_forward.42} parent=0 // pred_fallthru
    _
  // Predicated region
  $region14: #{bartmt_forward.42} parent=0 // pred_check
    _
  $region15: #{bartmt_forward.42} parent=0 // pred_check_branch
    %19 = sbr.rel (0) target = $region17
  $region16: #{bartmt_forward.42} parent=0 // pred_region
    _
  $region17: #{bartmt_forward.42} parent=0 // pred_fallthru
    _
  // Predicated region
  $region18: #{bartmt_forward.42} parent=0 // pred_check
    _
  $region19: #{bartmt_forward.42} parent=0 // pred_check_branch
    %21 = sbr.rel (0) target = $region21
  $region20: #{bartmt_forward.42} parent=0 // pred_region
    _
  $region21: #{bartmt_forward.42} parent=0 // pred_fallthru
    _
  %v23 = vld [vmem:[%s0] sm:$0xf]
  %v24 = vld [vmem:[%s1] sm:$0xf]
  %v25 = vld [vmem:[%s1 + $0x4] sm:$0xf]
  %v26 = vld [vmem:[%s1 + $0x8] sm:$0xf]
  %v27 = vld [vmem:[%s1 + $0xc] sm:$0xf]
  %v28 = vld [vmem:[%s2] sm:$0x1]
  %v30 = vperm.slane %v28, 0
  %v36 = vunpack.c.l.b16 %v24
  %v37 = vunpack.c.l.b16 %v25
  %v38 = vunpack.c.l.b16 %v26
  %v39 = vunpack.c.l.b16 %v27
  %v40 = vpack.c.b16 %v37, %v36
  %v41 = vpack.c.b16 %v39, %v38
  %vm44 = vcmask 261120
  %v46 = vsel %vm44, %v23, 0
  %48 = vmatpush.bf16.msra.mxu0 0
  %49 = vmatpush.bf16.msra.mxu0 0
  %50 = vmatpush.bf16.msra.mxu0 0
  %51 = vmatpush.bf16.msra.mxu0 0
  %52 = vmatpush.bf16.msra.mxu0 0
  %53 = vmatpush.bf16.msra.mxu0 0
  %54 = vmatpush.bf16.msra.mxu0 %v41
  %55 = vmatpush.bf16.msra.mxu0 %v40
  %56 = vmatmul.bf16.gmra.mxu0 %v46
  %v57 = vpop.f32.mrf.mxu0
  %v58 = vadd.f32 %v30, %v57
  %v59 = vpop.f32.mrf.mxu0
  %60 = vdwg.mxu0
  %v61 = vmax.f32 %v58, 0.0
  %v62 = vpack.c.bf16 %v61, %v61
  %v63 = vld [vmem:[%s3] sm:$0xf]
  %v64 = vld [vmem:[%s3 + $0x4] sm:$0xf]
  %v65 = vld [vmem:[%s3 + $0x8] sm:$0xf]
  %v66 = vld [vmem:[%s3 + $0xc] sm:$0xf]
  %v67 = vld [vmem:[#allocation2] sm:$0x1]
  %v69 = vperm.slane %v67, 0
  %v75 = vunpack.c.l.b16 %v63
  %v76 = vunpack.c.l.b16 %v64
  %v77 = vunpack.c.l.b16 %v65
  %v78 = vunpack.c.l.b16 %v66
  %v79 = vpack.c.b16 %v76, %v75
  %v80 = vpack.c.b16 %v78, %v77
  %v84 = vsel %vm44, %v62, 0
  %86 = vmatpush.bf16.msra.mxu0 0
  %87 = vmatpush.bf16.msra.mxu0 0
  %88 = vmatpush.bf16.msra.mxu0 0
  %89 = vmatpush.bf16.msra.mxu0 0
  %90 = vmatpush.bf16.msra.mxu0 0
  %91 = vmatpush.bf16.msra.mxu0 0
  %92 = vmatpush.bf16.msra.mxu0 %v80
  %93 = vmatpush.bf16.msra.mxu0 %v79
  %94 = vmatmul.bf16.gmra.mxu0 %v84
  %v95 = vpop.f32.mrf.mxu0
  %v96 = vadd.f32 %v69, %v95
  %v97 = vpop.f32.mrf.mxu0
  %98 = vdwg.mxu0
  %vm99 = vcmask 7168
  %100 = vst.msk [vmem:[%s5] sm:$0xff] %vm99, %v96
  // Predicated region
  $region22: #{bartmt_forward.42} parent=0 // pred_check
    _
  $region23: #{bartmt_forward.42} parent=0 // pred_check_branch
    %102 = sbr.rel (0) target = $region25
  $region24: #{bartmt_forward.42} parent=0 // pred_region
    _
  $region25: #{bartmt_forward.42} parent=0 // pred_fallthru
    _
  // Predicated region
  $region26: #{bartmt_forward.42} parent=0 // pred_check
    _
  $region27: #{bartmt_forward.42} parent=0 // pred_check_branch
    %104 = sbr.rel (0) target = $region29
  $region28: #{bartmt_forward.42} parent=0 // pred_region
    _
  $region29: #{bartmt_forward.42} parent=0 // pred_fallthru
    _

// kernel: bartmt_forward.48
$region0: #{bartmt_forward.48}
  #allocation0 [shape = 'u32[]', space=smem, size = 0x4, offset = 0x4, fixed_abs, tag = 'smem constant byte address 0x4 - core index']
  #allocation1 [shape = 'u32[72,128]{1,0:T(1,128)}', space=vmem, size = 0x9000, scoped, tag = 'internal scratch']
  #allocation2 [shape = 'f32[8,1]{1,0:T(8,128)}', space=vmem, size = 0x1000, scoped, tag = 'scratch operand']
  #allocation3 [shape = 'f32[8,1]{1,0:T(8,128)}', space=vmem, size = 0x1000, scoped, tag = 'scratch operand']
  #allocation4 [shape = 'f32[8,8]{1,0:T(8,128)}', space=vmem, size = 0x1000, scoped, tag = 'scratch operand']
  #allocation5 [shape = 'bf16[8,8]{1,0:T(8,128)(2,1)}', space=vmem, size = 0x800, scoped, tag = 'scratch operand']
  %s0 = inlined_call_operand.vmem [shape: bf16[8,8,8], index: 0, kind: input, shape index: {}]
  %s1 = inlined_call_operand.vmem [shape: bf16[8,8,8], index: 1, kind: input, shape index: {}]
  %s2 = inlined_call_operand.vmem [shape: bf16[8,8,8], index: 2, kind: input, shape index: {}]
  %s3 = inlined_call_operand.vmem [shape: bf16[8,8,8], index: 3, kind: output, shape index: {}]
  %s4 = sld [smem:[#allocation0]]
  $region53: #{bartmt_forward.48} parent=0
    _
  %s6 = ssub.s32 1, %s4
  %s7 = scalar_select 0, %s6, %s4
  loop: start=0, step=1, limit=10
  $region2: #{bartmt_forward.48} parent=0 // loop_pre_header
    _
  $region3: #{bartmt_forward.48} parent=0 // loop_header
    %s9 = sphi 0, %s13
    %p10 = scmp.ge.s32.totalorder %s9, 10
    %s16 = sphi 0, %s35
    %s17 = sphi 0, %s31
    %s18 = sphi 0, %s27
    %s19 = sphi 0, %s16
    %s20 = sphi 0, %s17
    %s21 = sphi 0, %s18
    %s22 = sphi 0, %s19
    %s23 = sphi 0, %s20
    %s24 = sphi 0, %s21
    %s40 = sphi 0, %s42
    %s43 = sphi 0, %s40
    %s44 = sphi 0, %s43
    %s60 = sphi 0, %s44
    %s68 = sphi 0, %s70
    %s71 = sphi 0, %s68
    %s72 = sphi 0, %s71
    %s88 = sphi 0, %s72
    %s96 = sphi 0, %s98
    %s99 = sphi 0, %s96
    %s100 = sphi 0, %s99
    %s116 = sphi 0, %s100
    %s124 = sphi 0, %s126
    %s127 = sphi 0, %s124
    %s128 = sphi 0, %s127
    %s144 = sphi 0, %s128
  $region4: #{bartmt_forward.48} parent=0 // loop_header_branch
    %12 = sbr.rel (%p10) target = $region8
  $region5: #{bartmt_forward.48} parent=0 // loop_body
    %s14 = ssub.s32 %s9, 1
    %s15 = ssub.s32 %s9, 2
    %s25 = sadd.s32 1, %s18
    %p26 = scmp.ge.s32.totalorder %s25, 1
    %s27 = scalar_select %p26, 0, %s25
    %s28 = sadd.s32 1, %s17
    %s29 = scalar_select %p26, %s28, %s17
    %p30 = scmp.ge.s32.totalorder %s29, 1
    %s31 = scalar_select %p30, 0, %s29
    %s32 = sadd.s32 1, %s16
    %s33 = scalar_select %p30, %s32, %s16
    %p34 = scmp.ge.s32.totalorder %s33, 8
    %s35 = scalar_select %p34, 0, %s33
    %s36 = ssub.s32 %s16, %s35
    %s37 = ssub.s32 %s17, %s31
    %s38 = sor.u32 %s36, %s37
    %p39 = scmp.eq.s32.totalorder %s38, 0
    %s41 = sadd.s32 %s40, 1
    %s42 = scalar_select %p39, %s40, %s41
    %p45 = pneg %p39
    %p46 = scmp.eq.s32.totalorder %s9, 7
    %p47 = por %p45, %p46
    %p48 = scmp.ne.s32.totalorder %s40, %s43
    %p49 = scmp.eq.s32.totalorder %s9, 0
    %p50 = por %p48, %p49
    %p51 = scmp.ne.s32.totalorder %s40, %s43
    %p52 = scmp.eq.s32.totalorder %s14, 7
    %p53 = por %p51, %p52
    %p54 = scmp.ne.s32.totalorder %s43, %s44
    %p55 = scmp.eq.s32.totalorder %s14, 0
    %p56 = por %p54, %p55
    %p57 = scmp.ne.s32.totalorder %s43, %s44
    %p58 = scmp.eq.s32.totalorder %s15, 7
    %p59 = por %p57, %p58
    %p61 = scmp.ne.s32.totalorder %s44, %s60
    %p62 = scmp.eq.s32.totalorder %s15, 0
    %p63 = por %p61, %p62
    %s64 = ssub.s32 %s16, %s35
    %s65 = ssub.s32 %s18, %s27
    %s66 = sor.u32 %s64, %s65
    %p67 = scmp.eq.s32.totalorder %s66, 0
    %s69 = sadd.s32 %s68, 1
    %s70 = scalar_select %p67, %s68, %s69
    %p73 = pneg %p67
    %p74 = scmp.eq.s32.totalorder %s9, 7
    %p75 = por %p73, %p74
    %p76 = scmp.ne.s32.totalorder %s68, %s71
    %p77 = scmp.eq.s32.totalorder %s9, 0
    %p78 = por %p76, %p77
    %p79 = scmp.ne.s32.totalorder %s68, %s71
    %p80 = scmp.eq.s32.totalorder %s14, 7
    %p81 = por %p79, %p80
    %p82 = scmp.ne.s32.totalorder %s71, %s72
    %p83 = scmp.eq.s32.totalorder %s14, 0
    %p84 = por %p82, %p83
    %p85 = scmp.ne.s32.totalorder %s71, %s72
    %p86 = scmp.eq.s32.totalorder %s15, 7
    %p87 = por %p85, %p86
    %p89 = scmp.ne.s32.totalorder %s72, %s88
    %p90 = scmp.eq.s32.totalorder %s15, 0
    %p91 = por %p89, %p90
    %s92 = ssub.s32 %s16, %s35
    %s93 = ssub.s32 %s18, %s27
    %s94 = sor.u32 %s92, %s93
    %p95 = scmp.eq.s32.totalorder %s94, 0
    %s97 = sadd.s32 %s96, 1
    %s98 = scalar_select %p95, %s96, %s97
    %p101 = pneg %p95
    %p102 = scmp.eq.s32.totalorder %s9, 7
    %p103 = por %p101, %p102
    %p104 = scmp.ne.s32.totalorder %s96, %s99
    %p105 = scmp.eq.s32.totalorder %s9, 0
    %p106 = por %p104, %p105
    %p107 = scmp.ne.s32.totalorder %s96, %s99
    %p108 = scmp.eq.s32.totalorder %s14, 7
    %p109 = por %p107, %p108
    %p110 = scmp.ne.s32.totalorder %s99, %s100
    %p111 = scmp.eq.s32.totalorder %s14, 0
    %p112 = por %p110, %p111
    %p113 = scmp.ne.s32.totalorder %s99, %s100
    %p114 = scmp.eq.s32.totalorder %s15, 7
    %p115 = por %p113, %p114
    %p117 = scmp.ne.s32.totalorder %s100, %s116
    %p118 = scmp.eq.s32.totalorder %s15, 0
    %p119 = por %p117, %p118
    %s120 = ssub.s32 %s16, %s35
    %s121 = ssub.s32 %s17, %s31
    %s122 = sor.u32 %s120, %s121
    %p123 = scmp.eq.s32.totalorder %s122, 0
    %s125 = sadd.s32 %s124, 1
    %s126 = scalar_select %p123, %s124, %s125
    %p129 = pneg %p123
    %p130 = scmp.eq.s32.totalorder %s9, 7
    %p131 = por %p129, %p130
    %p132 = scmp.ne.s32.totalorder %s124, %s127
    %p133 = scmp.eq.s32.totalorder %s9, 0
    %p134 = por %p132, %p133
    %p135 = scmp.ne.s32.totalorder %s124, %s127
    %p136 = scmp.eq.s32.totalorder %s14, 7
    %p137 = por %p135, %p136
    %p138 = scmp.ne.s32.totalorder %s127, %s128
    %p139 = scmp.eq.s32.totalorder %s14, 0
    %p140 = por %p138, %p139
    %p141 = scmp.ne.s32.totalorder %s127, %s128
    %p142 = scmp.eq.s32.totalorder %s15, 7
    %p143 = por %p141, %p142
    %p145 = scmp.ne.s32.totalorder %s128, %s144
    %p146 = scmp.eq.s32.totalorder %s15, 0
    %p147 = por %p145, %p146
    %p148 = scmp.le.s32.totalorder 1, %s9
    %p149 = scmp.lt.s32.totalorder %s9, 9
    %p150 = pnand %p148, %p149
    %p151 = pneg %p150
    // Predicated region
    $region9: #{bartmt_forward.48} parent=5 // pred_check
      _
    $region10: #{bartmt_forward.48} parent=5 // pred_check_branch
      %153 = sbr.rel (%p150) target = $region12
    $region11: #{bartmt_forward.48} parent=5 // pred_region
      %s154 = ssub.s32 %s9, 1
    $region12: #{bartmt_forward.48} parent=5 // pred_fallthru
      _
    %p155 = scmp.lt.s32.totalorder %s9, 8
    // Predicated region
    $region13: #{bartmt_forward.48} parent=5 // pred_check
      %p156 = pneg %p155
    $region14: #{bartmt_forward.48} parent=5 // pred_check_branch
      %158 = sbr.rel (%p156) target = $region16
    $region15: #{bartmt_forward.48} parent=5 // pred_region
      // Predicated region
      $region17: #{bartmt_forward.48} parent=15 // pred_check
        %p159 = pneg %p50
      $region18: #{bartmt_forward.48} parent=15 // pred_check_branch
        %161 = sbr.rel (%p159) target = $region20
      $region19: #{bartmt_forward.48} parent=15 // pred_region
        %p162 = scmp.lt.s32.totalorder %s16, 7
        %s163 = scalar_select %p162, %s16, 7
        %p164 = scmp.lt.s32.totalorder %s17, 0
        %s165 = scalar_select %p164, %s17, 0
        %s166 = sadd.s32 %s165, %s163
        %s167 = smul.addr %s166, 4
        %s168 = scalar_lea.vmem %s0, %s167
      $region20: #{bartmt_forward.48} parent=15 // pred_fallthru
        _
      // Predicated region
      $region21: #{bartmt_forward.48} parent=15 // pred_check
        %p169 = pneg %p78
      $region22: #{bartmt_forward.48} parent=15 // pred_check_branch
        %171 = sbr.rel (%p169) target = $region24
      $region23: #{bartmt_forward.48} parent=15 // pred_region
        %p172 = scmp.lt.s32.totalorder %s16, 7
        %s173 = scalar_select %p172, %s16, 7
        %p174 = scmp.lt.s32.totalorder %s18, 0
        %s175 = scalar_select %p174, %s18, 0
        %s176 = sadd.s32 %s175, %s173
        %s177 = smul.addr %s176, 4
        %s178 = scalar_lea.vmem %s1, %s177
      $region24: #{bartmt_forward.48} parent=15 // pred_fallthru
        _
      // Predicated region
      $region25: #{bartmt_forward.48} parent=15 // pred_check
        %p179 = pneg %p106
      $region26: #{bartmt_forward.48} parent=15 // pred_check_branch
        %181 = sbr.rel (%p179) target = $region28
      $region27: #{bartmt_forward.48} parent=15 // pred_region
        %p182 = scmp.lt.s32.totalorder %s16, 7
        %s183 = scalar_select %p182, %s16, 7
        %p184 = scmp.lt.s32.totalorder %s18, 0
        %s185 = scalar_select %p184, %s18, 0
        %s186 = sadd.s32 %s185, %s183
        %s187 = smul.addr %s186, 4
        %s188 = scalar_lea.vmem %s2, %s187
      $region28: #{bartmt_forward.48} parent=15 // pred_fallthru
        _
    $region16: #{bartmt_forward.48} parent=5 // pred_fallthru
      _
    %p189 = scmp.le.s32.totalorder 1, %s9
    %p190 = scmp.lt.s32.totalorder %s9, 9
    %p191 = pnand %p189, %p190
    %p192 = pneg %p191
    // Predicated region
    $region29: #{bartmt_forward.48} parent=5 // pred_check
      _
    $region30: #{bartmt_forward.48} parent=5 // pred_check_branch
      %194 = sbr.rel (%p191) target = $region32
    $region31: #{bartmt_forward.48} parent=5 // pred_region
      %s195 = ssub.s32 %s9, 1
      %p196 = scmp.lt.s32.totalorder %s19, 7
      %s197 = scalar_select %p196, %s19, 7
      %p198 = scmp.lt.s32.totalorder %s20, 0
      %s199 = scalar_select %p198, %s20, 0
      %s200 = sadd.s32 %s199, %s197
      %s201 = smul.addr %s200, 4
      %s202 = scalar_lea.vmem %s0, %s201
      %p203 = pneg %p56
      %p204 = pneg %p53
      %p205 = scmp.lt.s32.totalorder %s19, 7
      %s206 = scalar_select %p205, %s19, 7
      %p207 = scmp.lt.s32.totalorder %s21, 0
      %s208 = scalar_select %p207, %s21, 0
      %s209 = sadd.s32 %s208, %s206
      %s210 = smul.addr %s209, 4
      %s211 = scalar_lea.vmem %s1, %s210
      %p212 = pneg %p84
      %p213 = pneg %p81
      %p214 = scmp.lt.s32.totalorder %s19, 7
      %s215 = scalar_select %p214, %s19, 7
      %p216 = scmp.lt.s32.totalorder %s21, 0
      %s217 = scalar_select %p216, %s21, 0
      %s218 = sadd.s32 %s217, %s215
      %s219 = smul.addr %s218, 4
      %s220 = scalar_lea.vmem %s2, %s219
      %p221 = pneg %p112
      %p222 = pneg %p109
      %p223 = pneg %p140
      %p224 = pneg %p137
      %p225 = scmp.lt.s32.totalorder %s19, 7
      %s226 = scalar_select %p225, %s19, 7
      %p227 = scmp.lt.s32.totalorder %s20, 0
      %s228 = scalar_select %p227, %s20, 0
      %s229 = sadd.s32 %s228, %s226
      %s230 = smul.addr %s229, 4
      %s231 = scalar_lea.vmem %s3, %s230
      %p232 = scmp.lt.s32.totalorder %s19, 7
      %s233 = scalar_select %p232, %s19, 7
      %p234 = scmp.lt.s32.totalorder %s20, 0
      %s235 = scalar_select %p234, %s20, 0
      %s236 = sadd.s32 %s235, %s233
      %s237 = smul.addr %s236, 4
      %s238 = scalar_lea.vmem %s0, %s237
      %p239 = scmp.lt.s32.totalorder %s19, 7
      %s240 = scalar_select %p239, %s19, 7
      %p241 = scmp.lt.s32.totalorder %s21, 0
      %s242 = scalar_select %p241, %s21, 0
      %s243 = sadd.s32 %s242, %s240
      %s244 = smul.addr %s243, 4
      %s245 = scalar_lea.vmem %s1, %s244
      %p246 = scmp.lt.s32.totalorder %s19, 7
      %s247 = scalar_select %p246, %s19, 7
      %p248 = scmp.lt.s32.totalorder %s21, 0
      %s249 = scalar_select %p248, %s21, 0
      %s250 = sadd.s32 %s249, %s247
      %s251 = smul.addr %s250, 4
      %s252 = scalar_lea.vmem %s2, %s251
      %p253 = scmp.lt.s32.totalorder %s19, 7
      %s254 = scalar_select %p253, %s19, 7
      %p255 = scmp.lt.s32.totalorder %s20, 0
      %s256 = scalar_select %p255, %s20, 0
      %s257 = sadd.s32 %s256, %s254
      %s258 = smul.addr %s257, 4
      %s259 = scalar_lea.vmem %s3, %s258
      %p261 = scmp.eq.s32.totalorder %s21, 0
      // Predicated region
      $region33: #{bartmt_forward.48} parent=31 // pred_check
        %p262 = pneg %p261
      $region34: #{bartmt_forward.48} parent=31 // pred_check_branch
        %264 = sbr.rel (%p262) target = $region36
      $region35: #{bartmt_forward.48} parent=31 // pred_region
        %vm265 = vcmask 7168
        %266 = vst.msk [vmem:[#allocation2] sm:$0xff] %vm265, -inf
        %267 = vst.msk [vmem:[#allocation3] sm:$0xff] %vm265, 0.0
        %vm268 = vcmask 64512
        %269 = vst.msk [vmem:[#allocation4] sm:$0xff] %vm268, 0.0
        %v270 = vld [vmem:[%s238] sm:$0xf]
        %v271 = vunpack.c.l.bf16 %v270
        %v272 = vmul.f32 %v271, 0.35355338
        %v273 = vpack.c.bf16 %v272, %v272
        %vm274 = vcmask 60416
        %275 = vst.msk [vmem:[#allocation5] sm:$0xf] %vm274, %v273
      $region36: #{bartmt_forward.48} parent=31 // pred_fallthru
        _
      %v276 = vld [vmem:[%s245] sm:$0xf]
      %v277 = vld [vmem:[%s252] sm:$0xf]
      %v278 = vld [vmem:[#allocation5] sm:$0xf]
      %vm279 = vcmask 64512
      %v281 = vsel %vm279, %v278, 0
      %v284 = vsel %vm279, %v276, 0
      %286 = vmatpush.bf16.xpose.msra.mxu0 0
      %287 = vmatpush.bf16.xpose.msra.mxu0 0
      %288 = vmatpush.bf16.xpose.msra.mxu0 0
      %289 = vmatpush.bf16.xpose.msra.mxu0 0
      %290 = vmatpush.bf16.xpose.msra.mxu0 0
      %291 = vmatpush.bf16.xpose.msra.mxu0 0
      %292 = vmatpush.bf16.xpose.msra.mxu0 0
      %293 = vmatpush.bf16.xpose.msra.mxu0 %v284
      %294 = vmatmul.bf16.gmra.mxu0 %v281
      %v295 = vpop.f32.mrf.mxu0
      %v296 = vadd.f32 0.0, %v295
      %v297 = vpop.f32.mrf.mxu0
      %298 = vdwg.mxu0
      %v299 = vld [vmem:[#allocation2] sm:$0xff]
      %v300 = vsel %vm279, %v296, -inf
      %301 = vmax.xlane.f32.xlu0 %v300
      %v302 = vpop.xlane.xlu0 %301
      %v303 = vmax.f32 %v299, %v302
      %v304 = vsub.f32 %v299, %v303
      %v305 = vmul.f32 %v304, 1.442695
      %v306 = vpow.pop %v305
      %308 = vset.pattern.permute.xlu0 0
      %309 = vperm.xlu0 %308, %v303
      %v310 = vpop.permute.xlu0 %309
      %v312 = vsub.f32 %v296, %v310
      %v313 = vmul.f32 %v312, 1.442695
      %v314 = vpow.pop %v313
      %v315 = vld [vmem:[#allocation3] sm:$0xff]
      %v316 = vmul.f32 %v306, %v315
      %v317 = vsel %vm279, %v314, 0.0
      %318 = vadd.xlane.f32.xlu0 %v317
      %v319 = vpop.xlane.xlu0 %318
      %v320 = vadd.f32 %v316, %v319
      %vm321 = vcmask 7168
      %322 = vst.msk [vmem:[#allocation3] sm:$0xff] %vm321, %v320
      %v323 = vld [vmem:[#allocation4] sm:$0xff]
      %325 = vset.pattern.permute.xlu0 0
      %326 = vperm.xlu0 %325, %v306
      %v327 = vpop.permute.xlu0 %326
      %v329 = vmul.f32 %v327, %v323
      %v330 = vpack.c.bf16 %v314, %v314
      %v332 = vsel %vm279, %v330, 0
      %vm334 = vcmask 1043456
      %v336 = vsel %vm334, %v277, 0
      %338 = vmatpush.bf16.msra.mxu0 0
      %339 = vmatpush.bf16.msra.mxu0 0
      %340 = vmatpush.bf16.msra.mxu0 0
      %341 = vmatpush.bf16.msra.mxu0 0
      %342 = vmatpush.bf16.msra.mxu0 0
      %343 = vmatpush.bf16.msra.mxu0 0
      %344 = vmatpush.bf16.msra.mxu0 0
      %345 = vmatpush.bf16.msra.mxu0 %v336
      %346 = vmatmul.bf16.gmra.mxu0 %v332
      %v347 = vpop.f32.mrf.mxu0
      %v348 = vadd.f32 0.0, %v347
      %v349 = vpop.f32.mrf.mxu0
      %350 = vdwg.mxu0
      %v351 = vadd.f32 %v329, %v348
      %352 = vst.msk [vmem:[#allocation4] sm:$0xff] %vm279, %v351
      %353 = vst.msk [vmem:[#allocation2] sm:$0xff] %vm321, %v303
      // Predicated region
      $region37: #{bartmt_forward.48} parent=31 // pred_check
        %p354 = pneg %p261
      $region38: #{bartmt_forward.48} parent=31 // pred_check_branch
        %356 = sbr.rel (%p354) target = $region40
      $region39: #{bartmt_forward.48} parent=31 // pred_region
        %v357 = vld [vmem:[#allocation3] sm:$0xff]
        %v358 = vrcp.pop %v357
        %v359 = vld [vmem:[#allocation4] sm:$0xff]
        %361 = vset.pattern.permute.xlu0 0
        %362 = vperm.xlu0 %361, %v358
        %v363 = vpop.permute.xlu0 %362
        %v365 = vmul.f32 %v359, %v363
        %v366 = vpack.c.bf16 %v365, %v365
        %vm367 = vcmask 60416
        %368 = vst.msk [vmem:[%s259] sm:$0xf] %vm367, %v366
      $region40: #{bartmt_forward.48} parent=31 // pred_fallthru
        _
      %p369 = scmp.lt.s32.totalorder %s19, 7
      %s370 = scalar_select %p369, %s19, 7
      %p371 = scmp.lt.s32.totalorder %s20, 0
      %s372 = scalar_select %p371, %s20, 0
      %s373 = sadd.s32 %s372, %s370
      %s374 = smul.addr %s373, 4
      %s375 = scalar_lea.vmem %s3, %s374
      // Predicated region
      $region41: #{bartmt_forward.48} parent=31 // pred_check
        %p376 = pneg %p137
      $region42: #{bartmt_forward.48} parent=31 // pred_check_branch
        %378 = sbr.rel (%p376) target = $region44
      $region43: #{bartmt_forward.48} parent=31 // pred_region
        _
      $region44: #{bartmt_forward.48} parent=31 // pred_fallthru
        _
    $region32: #{bartmt_forward.48} parent=5 // pred_fallthru
      _
    %p379 = scmp.le.s32.totalorder 2, %s9
    // Predicated region
    $region45: #{bartmt_forward.48} parent=5 // pred_check
      %p380 = pneg %p379
    $region46: #{bartmt_forward.48} parent=5 // pred_check_branch
      %382 = sbr.rel (%p380) target = $region48
    $region47: #{bartmt_forward.48} parent=5 // pred_region
      %s383 = ssub.s32 %s9, 2
      // Predicated region
      $region49: #{bartmt_forward.48} parent=47 // pred_check
        %p384 = pneg %p143
      $region50: #{bartmt_forward.48} parent=47 // pred_check_branch
        %386 = sbr.rel (%p384) target = $region52
      $region51: #{bartmt_forward.48} parent=47 // pred_region
        %p387 = scmp.lt.s32.totalorder %s22, 7
        %s388 = scalar_select %p387, %s22, 7
        %p389 = scmp.lt.s32.totalorder %s23, 0
        %s390 = scalar_select %p389, %s23, 0
        %s391 = sadd.s32 %s390, %s388
        %s392 = smul.addr %s391, 4
        %s393 = scalar_lea.vmem %s3, %s392
      $region52: #{bartmt_forward.48} parent=47 // pred_fallthru
        _
    $region48: #{bartmt_forward.48} parent=5 // pred_fallthru
      _
  $region6: #{bartmt_forward.48} parent=0 // loop_footer
    %s13 = sadd.s32 1, %s9
  $region7: #{bartmt_forward.48} parent=0 // loop_footer_branch
    %8 = sbr.rel target = $region3
  $region8: #{bartmt_forward.48} parent=0 // loop_exit
    _

</llo_original>
